<compile_context>
chip_gen: v5e
topology: v5e:2x2
jax: 0.10.0
libtpu: 0.0.40
codegen_flags: <defaults>
</compile_context>

<pallas_src>
import functools
import numpy as np
import jax
import jax.numpy as jnp
from jax import lax
from jax.experimental import pallas as pl
from jax.experimental.pallas import tpu as pltpu

# hyper-params that the original module reads from `hyp` / its constructor
FEAT3D_DIM = 4          # hyp.feat3D_dim
HIDDEN_DIM = 64         # fixed in MotNet.__init__
NUM_CLASSES = 1         # constructor arg (mot_e is treated like an occupancy map)
MOT_SMOOTH_COEFF = 1.0  # hyp.mot_smooth_coeff
LEAKY_SLOPE = 0.01      # nn.LeakyReLU() default negative_slope

LANE = 128
ROW_GRANULE = 1024      # row_tile must be a multiple of this so the (row_tile//128, 128)
                        # output blocks satisfy the (8, 128) tiling rule.


def _head_kernel(p_ref, w1_ref, b1_ref, w2_ref, b2_ref, logit_ref, prob_ref):
    """conv3x3x3 (im2col matmul, bf16 in / f32 acc) + bias + LeakyReLU + conv1x1x1 + bias.

    Outputs are lane-dense: flat voxel r of this tile lands at [r // 128, r % 128],
    so both stores are full-width vst's (K == 1 would otherwise give 1-lane stores).
    """
    # MXU matmul: [R, 128] bf16 @ [128, H] bf16 -> f32
    h = jnp.dot(p_ref[...], w1_ref[...], preferred_element_type=jnp.float32)
    h = h + b1_ref[...]
    h = jnp.where(h > 0, h, LEAKY_SLOPE * h)                     # LeakyReLU

    g = logit_ref.shape[0]                                       # R // 128
    hid = h.shape[-1]
    hr = h.reshape(g, LANE, hid)                                 # leading-dim split: layout-preserving
    # 1x1x1 conv with a single output channel: VPU multiply + XLU cross-lane reduce
    # (cheaper and lane-denser than a degenerate [R, H] @ [H, 1] MXU matmul).
    z = jnp.sum(hr * w2_ref[...].reshape(1, 1, hid), axis=-1) + b2_ref[...]   # [g, 128] f32

    logit_ref[...] = z                                           # mot_e_ (pre-sigmoid logits)
    # exp -> EUP; the single exact divide per vreg is negligible (kernel is HBM/MXU bound).
    prob_ref[...] = 1.0 / (1.0 + jnp.exp(-z))                    # mot_e = sigmoid(mot_e_)


def _smooth_kernel(l_ref, out_ref):
    """Partial sum of |d/dz| + |d/dy| + |d/dx| of the logits over one (batch, z-slab) block.

    z-diffs that cross slab boundaries are added by the wrapper (tiny strided slice),
    so blocks need no halo and both grid axes stay "parallel".
    """
    a = l_ref[...]                                               # [1, tz, Y, X] f32
    total = jnp.float32(0.0)
    if a.shape[1] > 1:                                           # intra-slab z diffs
        total = total + jnp.sum(jnp.abs(a[:, 1:] - a[:, :-1]))
    if a.shape[2] > 1:                                           # y diffs
        total = total + jnp.sum(jnp.abs(a[:, :, 1:, :] - a[:, :, :-1, :]))
    if a.shape[3] > 1:                                           # x diffs
        total = total + jnp.sum(jnp.abs(a[..., 1:] - a[..., :-1]))
    out_ref[...] = total * jnp.ones((1, 1, 1, 1), jnp.float32)


def _pick_z_tile(Z, Y, X, budget_bytes=4 << 20):
    """Largest divisor of Z whose f32 slab fits the budget; keep >=2 slabs when Z > 1."""
    best = 1
    for t in range(1, Z + 1):
        if Z % t:
            continue
        if t * Y * X * 4 > budget_bytes:
            continue
        if Z > 1 and t == Z:
            continue
        best = t
    return best


def motnet_forward(feat_ncdhw, params, row_tile=1024):
    # feat_ncdhw: [B, Cin, Z, Y, X]  (matches the PyTorch NCDHW input)
    w1, b1, w2, b2 = params  # w1:[3,3,3,Cin,H] b1:[1,H] w2:[H,K] b2:[1,K]
    B, Cin, Z, Y, X = feat_ncdhw.shape
    H = w1.shape[-1]
    K = w2.shape[-1]
    assert K == 1, "lane-dense output packing assumes num_classes == 1"
    assert row_tile % ROW_GRANULE == 0, "row_tile must be a multiple of 1024"

    N = B * Z * Y * X
    P = 27 * Cin
    Ppad = max(LANE, ((P + LANE - 1) // LANE) * LANE)            # pad contraction to full lanes

    # ---- im2col in XLA (bf16, lane-padded) --------------------------------------
    x = jnp.transpose(feat_ncdhw, (0, 2, 3, 4, 1)).astype(jnp.bfloat16)  # NDHWC, bf16
    xp = jnp.pad(x, ((0, 0), (1, 1), (1, 1), (1, 1), (0, 0)))
    cols = []
    for kz in range(3):
        for ky in range(3):
            for kx in range(3):
                cols.append(xp[:, kz:kz + Z, ky:ky + Y, kx:kx + X, :])
    patches = jnp.concatenate(cols, axis=-1).reshape(N, P)                # [N, 27*Cin] bf16

    # Pad rows so the grid has >= 2 steps (v7x megacore) and any N is handled.
    num_tiles = max(2, pl.cdiv(N, row_tile))
    Npad = num_tiles * row_tile
    patches = jnp.pad(patches, ((0, Npad - N), (0, Ppad - P)))

    w1f = jnp.pad(w1.reshape(P, H).astype(jnp.bfloat16), ((0, Ppad - P), (0, 0)))
    b1r = b1.reshape(1, H).astype(jnp.float32)
    w2r = jnp.transpose(w2.reshape(H, K)).astype(jnp.float32)             # (1, H)
    b2r = b2.reshape(1, 1).astype(jnp.float32)

    rows_per_block = row_tile // LANE                                     # multiple of 8
    logits2d, probs2d = pl.pallas_call(
        _head_kernel,
        out_shape=(jax.ShapeDtypeStruct((Npad // LANE, LANE), jnp.float32),
                   jax.ShapeDtypeStruct((Npad // LANE, LANE), jnp.float32)),
        grid=(num_tiles,),
        in_specs=[
            pl.BlockSpec((row_tile, Ppad), lambda i: (i, 0)),
            pl.BlockSpec((Ppad, H), lambda i: (0, 0)),
            pl.BlockSpec((1, H), lambda i: (0, 0)),
            pl.BlockSpec((1, H), lambda i: (0, 0)),
            pl.BlockSpec((1, 1), lambda i: (0, 0)),
        ],
        out_specs=(pl.BlockSpec((rows_per_block, LANE), lambda i: (i, 0)),
                   pl.BlockSpec((rows_per_block, LANE), lambda i: (i, 0))),
        compiler_params=pltpu.CompilerParams(dimension_semantics=("parallel",)),
    )(patches, w1f, b1r, w2r, b2r)

    logits4 = logits2d.reshape(-1)[:N].reshape(B, Z, Y, X)    # mot_e_ (K=1 squeezed)
    probs4 = probs2d.reshape(-1)[:N].reshape(B, Z, Y, X)

    # ---- smooth loss: gridded partial sums + cheap cross-slab fix-up -------------
    tz = _pick_z_tile(Z, Y, X)
    nzt = Z // tz
    partials = pl.pallas_call(
        _smooth_kernel,
        out_shape=jax.ShapeDtypeStruct((B, nzt, 1, 1), jnp.float32),
        grid=(B, nzt),
        in_specs=[pl.BlockSpec((1, tz, Y, X), lambda b, zi: (b, zi, 0, 0))],
        out_specs=pl.BlockSpec((1, 1, 1, 1), lambda b, zi: (b, zi, 0, 0)),
        compiler_params=pltpu.CompilerParams(dimension_semantics=("parallel", "parallel")),
    )(logits4)
    total_abs = jnp.sum(partials)
    if nzt > 1:
        # z-diffs between the last plane of slab m-1 and the first plane of slab m.
        lo = logits4[:, tz - 1:-1:tz]
        hi = logits4[:, tz::tz]
        total_abs = total_abs + jnp.sum(jnp.abs(hi - lo))
    # gradient3D zero-pads the diffs back to full shape before the mean, so the
    # denominator is the full voxel count B*K*Z*Y*X (matches the PyTorch module).
    smooth_loss = total_abs * (1.0 / float(B * K * Z * Y * X))

    # utils_misc.add_loss('mot/smooth_loss', 0.0, smooth_loss, hyp.mot_smooth_coeff)
    total_loss = MOT_SMOOTH_COEFF * smooth_loss
    # TODO(synk): summ_writer logging and the compute_loss (obj_g/bkg_g/valid_g) branch
    # are not part of this forward (all None), so they are not implemented here.

    mot_e = probs4[:, None]                                   # NCDHW with C = num_classes = 1
    return total_loss, mot_e


def motnet_reference(feat_ncdhw, params):
    # pure-JAX reference mirroring the PyTorch semantics; conv inputs are cast to bf16
    # with f32 accumulation to match the kernel's MXU precision (bf16*bf16 -> f32).
    w1, b1, w2, b2 = params
    B, Cin, Z, Y, X = feat_ncdhw.shape
    H, K = w1.shape[-1], w2.shape[-1]
    x = jnp.transpose(feat_ncdhw, (0, 2, 3, 4, 1)).astype(jnp.bfloat16)
    h = lax.conv_general_dilated(
        x, w1.astype(jnp.bfloat16), window_strides=(1, 1, 1), padding=[(1, 1)] * 3,
        dimension_numbers=('NDHWC', 'DHWIO', 'NDHWC'),
        preferred_element_type=jnp.float32)
    h = h + b1.reshape(1, 1, 1, 1, H)
    h = jnp.where(h > 0, h, LEAKY_SLOPE * h)
    z = jnp.einsum('bzyxh,hk->bzyxk', h, w2) + b2.reshape(1, 1, 1, 1, K)
    probs = jax.nn.sigmoid(z)
    dz = jnp.abs(z[:, 1:] - z[:, :-1])
    dy = jnp.abs(z[:, :, 1:] - z[:, :, :-1])
    dx = jnp.abs(z[:, :, :, 1:] - z[:, :, :, :-1])
    smooth_loss = (dz.sum() + dy.sum() + dx.sum()) / (B * K * Z * Y * X)
    return MOT_SMOOTH_COEFF * smooth_loss, jnp.transpose(probs, (0, 4, 1, 2, 3))


if __name__ == "__main__":
    B, Z, Y, X = 2, 8, 8, 8
    key = jax.random.PRNGKey(0)
    k1, k2, k3, k4, k5 = jax.random.split(key, 5)
    # deterministic synthetic parameters (shapes from MotNet.__init__)
    w1 = jax.random.normal(k1, (3, 3, 3, FEAT3D_DIM, HIDDEN_DIM), jnp.float32) * 0.1
    b1 = jax.random.normal(k2, (1, HIDDEN_DIM), jnp.float32) * 0.01
    w2 = jax.random.normal(k3, (HIDDEN_DIM, NUM_CLASSES), jnp.float32) * 0.1
    b2 = jax.random.normal(k4, (1, NUM_CLASSES), jnp.float32) * 0.01
    feat = jax.random.normal(k5, (B, FEAT3D_DIM, Z, Y, X), jnp.float32)
    params = (w1, b1, w2, b2)

    total_loss, mot_e = jax.jit(motnet_forward)(feat, params)
    jax.block_until_ready((total_loss, mot_e))

    ref_loss, ref_mot_e = motnet_reference(feat, params)
    assert mot_e.shape == (B, NUM_CLASSES, Z, Y, X)
    np.testing.assert_allclose(np.asarray(total_loss), np.asarray(ref_loss),
                               rtol=1e-4, atol=1e-4)
    np.testing.assert_allclose(np.asarray(mot_e), np.asarray(ref_mot_e),
                               rtol=1e-4, atol=1e-4)
    print("KERNEL_OK")
</pallas_src>

<mosaic_0001>
module attributes {stable_mosaic.version = 11 : i64} {
  func.func @_head_kernel(%arg0: i32, %arg1: memref<1024x128xbf16, #tpu.memory_space<vmem>>, %arg2: memref<128x64xbf16, #tpu.memory_space<vmem>>, %arg3: memref<1x64xf32, #tpu.memory_space<vmem>>, %arg4: memref<1x64xf32, #tpu.memory_space<vmem>>, %arg5: memref<1x1xf32, #tpu.memory_space<vmem>>, %arg6: memref<8x128xf32, #tpu.memory_space<vmem>>, %arg7: memref<8x128xf32, #tpu.memory_space<vmem>>) attributes {dimension_semantics = [#tpu.dimension_semantics<parallel>], iteration_bounds = array<i64: 2>, scalar_prefetch = 0 : i64, scratch_operands = 0 : i64, tpu.core_type = #tpu.core_type<tc>, window_params = [{transform_indices = @transform_0, window_bounds = array<i64: 1024, 128>}, {pipeline_mode = #tpu.pipeline_mode<synchronous>, transform_indices = @transform_1, window_bounds = array<i64: 128, 64>}, {pipeline_mode = #tpu.pipeline_mode<synchronous>, transform_indices = @transform_2, window_bounds = array<i64: 1, 64>}, {pipeline_mode = #tpu.pipeline_mode<synchronous>, transform_indices = @transform_3, window_bounds = array<i64: 1, 64>}, {pipeline_mode = #tpu.pipeline_mode<synchronous>, transform_indices = @transform_4, window_bounds = array<i64: 1, 1>}, {transform_indices = @transform_5, window_bounds = array<i64: 8, 128>}, {transform_indices = @transform_6, window_bounds = array<i64: 8, 128>}]} {
    %c0 = arith.constant 0 : index
    %c0_0 = arith.constant 0 : index
    %0 = vector.load %arg1[%c0, %c0_0] : memref<1024x128xbf16, #tpu.memory_space<vmem>>, vector<1024x128xbf16>
    %c0_1 = arith.constant 0 : index
    %c0_2 = arith.constant 0 : index
    %1 = vector.load %arg2[%c0_1, %c0_2] : memref<128x64xbf16, #tpu.memory_space<vmem>>, vector<128x64xbf16>
    %cst = arith.constant dense<0.000000e+00> : vector<1024x64xf32>
    %2 = tpu.matmul %0, %1, %cst {dimension_numbers = #tpu.dot_dimension_numbers<[1], [0], [0], [1], [0, 0, 1, 1], [], []>} : vector<1024x128xbf16>, vector<128x64xbf16>, vector<1024x64xf32> -> vector<1024x64xf32>
    %c0_3 = arith.constant 0 : index
    %c0_4 = arith.constant 0 : index
    %3 = vector.load %arg3[%c0_3, %c0_4] : memref<1x64xf32, #tpu.memory_space<vmem>>, vector<1x64xf32>
    %4 = vector.broadcast %3 : vector<1x64xf32> to vector<1024x64xf32>
    %5 = arith.addf %2, %4 : vector<1024x64xf32>
    %cst_5 = arith.constant 0.000000e+00 : f32
    %6 = vector.broadcast %cst_5 : f32 to vector<1024x64xf32>
    %7 = arith.cmpf ogt, %5, %6 : vector<1024x64xf32>
    %cst_6 = arith.constant 0.00999999977 : f32
    %8 = vector.broadcast %cst_6 : f32 to vector<1024x64xf32>
    %9 = arith.mulf %8, %5 : vector<1024x64xf32>
    %10 = arith.select %7, %5, %9 : vector<1024x64xi1>, vector<1024x64xf32>
    %11 = vector.shape_cast %10 : vector<1024x64xf32> to vector<8x128x64xf32>
    %c0_7 = arith.constant 0 : index
    %c0_8 = arith.constant 0 : index
    %12 = vector.load %arg4[%c0_7, %c0_8] : memref<1x64xf32, #tpu.memory_space<vmem>>, vector<1x64xf32>
    %13 = vector.shape_cast %12 : vector<1x64xf32> to vector<1x1x64xf32>
    %14 = vector.broadcast %13 : vector<1x1x64xf32> to vector<8x128x64xf32>
    %15 = arith.mulf %11, %14 : vector<8x128x64xf32>
    %cst_9 = arith.constant dense<0.000000e+00> : vector<8x128xf32>
    %16 = vector.multi_reduction <add>, %15, %cst_9 [2] : vector<8x128x64xf32> to vector<8x128xf32>
    %c0_10 = arith.constant 0 : index
    %c0_11 = arith.constant 0 : index
    %17 = vector.load %arg5[%c0_10, %c0_11] : memref<1x1xf32, #tpu.memory_space<vmem>>, vector<1x1xf32>
    %18 = vector.broadcast %17 : vector<1x1xf32> to vector<8x128xf32>
    %19 = arith.addf %16, %18 : vector<8x128xf32>
    %c0_12 = arith.constant 0 : index
    %c0_13 = arith.constant 0 : index
    %20 = vector.load %arg6[%c0_12, %c0_13] : memref<8x128xf32, #tpu.memory_space<vmem>>, vector<8x128xf32>
    tpu.vector_store %arg6[%c0_12, %c0_13], %19 {strides = array<i32>} : memref<8x128xf32, #tpu.memory_space<vmem>>, vector<8x128xf32>,
    %cst_14 = arith.constant 0.000000e+00 : f32
    %21 = vector.broadcast %cst_14 : f32 to vector<8x128xf32>
    %22 = arith.subf %21, %19 : vector<8x128xf32>
    %23 = math.exp %22 : vector<8x128xf32>
    %cst_15 = arith.constant 1.000000e+00 : f32
    %24 = vector.broadcast %cst_15 : f32 to vector<8x128xf32>
    %25 = arith.addf %24, %23 : vector<8x128xf32>
    %cst_16 = arith.constant 1.000000e+00 : f32
    %26 = vector.broadcast %cst_16 : f32 to vector<8x128xf32>
    %27 = arith.divf %26, %25 : vector<8x128xf32>
    %c0_17 = arith.constant 0 : index
    %c0_18 = arith.constant 0 : index
    %28 = vector.load %arg7[%c0_17, %c0_18] : memref<8x128xf32, #tpu.memory_space<vmem>>, vector<8x128xf32>
    tpu.vector_store %arg7[%c0_17, %c0_18], %27 {strides = array<i32>} : memref<8x128xf32, #tpu.memory_space<vmem>>, vector<8x128xf32>,
    return
  }
  func.func @transform_0(%arg0: i32) -> (i32, i32) {
    %c0_i32 = arith.constant 0 : i32
    %c0_i32_0 = arith.constant 0 : i32
    return %arg0, %c0_i32 : i32, i32
  }
  func.func @transform_1(%arg0: i32) -> (i32, i32) {
    %c0_i32 = arith.constant 0 : i32
    %c0_i32_0 = arith.constant 0 : i32
    %c0_i32_1 = arith.constant 0 : i32
    return %c0_i32, %c0_i32_0 : i32, i32
  }
  func.func @transform_2(%arg0: i32) -> (i32, i32) {
    %c0_i32 = arith.constant 0 : i32
    %c0_i32_0 = arith.constant 0 : i32
    %c0_i32_1 = arith.constant 0 : i32
    return %c0_i32, %c0_i32_0 : i32, i32
  }
  func.func @transform_3(%arg0: i32) -> (i32, i32) {
    %c0_i32 = arith.constant 0 : i32
    %c0_i32_0 = arith.constant 0 : i32
    %c0_i32_1 = arith.constant 0 : i32
    return %c0_i32, %c0_i32_0 : i32, i32
  }
  func.func @transform_4(%arg0: i32) -> (i32, i32) {
    %c0_i32 = arith.constant 0 : i32
    %c0_i32_0 = arith.constant 0 : i32
    %c0_i32_1 = arith.constant 0 : i32
    return %c0_i32, %c0_i32_0 : i32, i32
  }
  func.func @transform_5(%arg0: i32) -> (i32, i32) {
    %c0_i32 = arith.constant 0 : i32
    %c0_i32_0 = arith.constant 0 : i32
    return %arg0, %c0_i32 : i32, i32
  }
  func.func @transform_6(%arg0: i32) -> (i32, i32) {
    %c0_i32 = arith.constant 0 : i32
    %c0_i32_0 = arith.constant 0 : i32
    return %arg0, %c0_i32 : i32, i32
  }
}

module attributes {stable_mosaic.version = 11 : i64} {
  func.func @_smooth_kernel(%arg0: i32, %arg1: i32, %arg2: memref<1x4x8x8xf32, #tpu.memory_space<vmem>>, %arg3: memref<1x1x1x1xf32, #tpu.memory_space<vmem>>) attributes {dimension_semantics = [#tpu.dimension_semantics<parallel>, #tpu.dimension_semantics<parallel>], iteration_bounds = array<i64: 2, 2>, scalar_prefetch = 0 : i64, scratch_operands = 0 : i64, tpu.core_type = #tpu.core_type<tc>, window_params = [{transform_indices = @transform_0, window_bounds = array<i64: 1, 4, 8, 8>}, {transform_indices = @transform_1, window_bounds = array<i64: 1, 1, 1, 1>}]} {
    %c0 = arith.constant 0 : index
    %c0_0 = arith.constant 0 : index
    %c0_1 = arith.constant 0 : index
    %c0_2 = arith.constant 0 : index
    %0 = vector.load %arg2[%c0, %c0_0, %c0_1, %c0_2] : memref<1x4x8x8xf32, #tpu.memory_space<vmem>>, vector<1x4x8x8xf32>
    %1 = vector.extract_strided_slice %0 {offsets = [0, 1, 0, 0], sizes = [1, 3, 8, 8], strides = [1, 1, 1, 1]} : vector<1x4x8x8xf32> to vector<1x3x8x8xf32>
    %2 = vector.extract_strided_slice %0 {offsets = [0, 0, 0, 0], sizes = [1, 3, 8, 8], strides = [1, 1, 1, 1]} : vector<1x4x8x8xf32> to vector<1x3x8x8xf32>
    %3 = arith.subf %1, %2 : vector<1x3x8x8xf32>
    %4 = math.absf %3 : vector<1x3x8x8xf32>
    %5 = vector.shape_cast %4 : vector<1x3x8x8xf32> to vector<1x1x3x8x8xf32>
    %cst = arith.constant dense<0.000000e+00> : vector<1xf32>
    %6 = vector.multi_reduction <add>, %5, %cst [1, 2, 3, 4] : vector<1x1x3x8x8xf32> to vector<1xf32>
    %7 = vector.shape_cast %6 : vector<1xf32> to vector<1x1x1x1x1xf32>
    %8 = vector.extract %7[0, 0, 0, 0, 0] : f32 from vector<1x1x1x1x1xf32>
    %cst_3 = arith.constant 0.000000e+00 : f32
    %9 = arith.addf %cst_3, %8 : f32
    %10 = vector.extract_strided_slice %0 {offsets = [0, 0, 1, 0], sizes = [1, 4, 7, 8], strides = [1, 1, 1, 1]} : vector<1x4x8x8xf32> to vector<1x4x7x8xf32>
    %11 = vector.extract_strided_slice %0 {offsets = [0, 0, 0, 0], sizes = [1, 4, 7, 8], strides = [1, 1, 1, 1]} : vector<1x4x8x8xf32> to vector<1x4x7x8xf32>
    %12 = arith.subf %10, %11 : vector<1x4x7x8xf32>
    %13 = math.absf %12 : vector<1x4x7x8xf32>
    %14 = vector.shape_cast %13 : vector<1x4x7x8xf32> to vector<1x1x4x7x8xf32>
    %cst_4 = arith.constant dense<0.000000e+00> : vector<1xf32>
    %15 = vector.multi_reduction <add>, %14, %cst_4 [1, 2, 3, 4] : vector<1x1x4x7x8xf32> to vector<1xf32>
    %16 = vector.shape_cast %15 : vector<1xf32> to vector<1x1x1x1x1xf32>
    %17 = vector.extract %16[0, 0, 0, 0, 0] : f32 from vector<1x1x1x1x1xf32>
    %18 = arith.addf %9, %17 : f32
    %19 = vector.extract_strided_slice %0 {offsets = [0, 0, 0, 1], sizes = [1, 4, 8, 7], strides = [1, 1, 1, 1]} : vector<1x4x8x8xf32> to vector<1x4x8x7xf32>
    %20 = vector.extract_strided_slice %0 {offsets = [0, 0, 0, 0], sizes = [1, 4, 8, 7], strides = [1, 1, 1, 1]} : vector<1x4x8x8xf32> to vector<1x4x8x7xf32>
    %21 = arith.subf %19, %20 : vector<1x4x8x7xf32>
    %22 = math.absf %21 : vector<1x4x8x7xf32>
    %23 = vector.shape_cast %22 : vector<1x4x8x7xf32> to vector<1x1x4x8x7xf32>
    %cst_5 = arith.constant dense<0.000000e+00> : vector<1xf32>
    %24 = vector.multi_reduction <add>, %23, %cst_5 [1, 2, 3, 4] : vector<1x1x4x8x7xf32> to vector<1xf32>
    %25 = vector.shape_cast %24 : vector<1xf32> to vector<1x1x1x1x1xf32>
    %26 = vector.extract %25[0, 0, 0, 0, 0] : f32 from vector<1x1x1x1x1xf32>
    %27 = arith.addf %18, %26 : f32
    %cst_6 = arith.constant 1.000000e+00 : f32
    %28 = vector.broadcast %cst_6 : f32 to vector<1x1x1x1xf32>
    %29 = vector.broadcast %27 : f32 to vector<1x1x1x1xf32>
    %30 = arith.mulf %29, %28 : vector<1x1x1x1xf32>
    %c0_7 = arith.constant 0 : index
    %c0_8 = arith.constant 0 : index
    %c0_9 = arith.constant 0 : index
    %c0_10 = arith.constant 0 : index
    %31 = vector.load %arg3[%c0_7, %c0_8, %c0_9, %c0_10] : memref<1x1x1x1xf32, #tpu.memory_space<vmem>>, vector<1x1x1x1xf32>
    tpu.vector_store %arg3[%c0_7, %c0_8, %c0_9, %c0_10], %30 {strides = array<i32>} : memref<1x1x1x1xf32, #tpu.memory_space<vmem>>, vector<1x1x1x1xf32>,
    return
  }
  func.func @transform_0(%arg0: i32, %arg1: i32) -> (i32, i32, i32, i32) {
    %c0_i32 = arith.constant 0 : i32
    %c0_i32_0 = arith.constant 0 : i32
    %c0_i32_1 = arith.constant 0 : i32
    return %arg0, %arg1, %c0_i32, %c0_i32_0 : i32, i32, i32, i32
  }
  func.func @transform_1(%arg0: i32, %arg1: i32) -> (i32, i32, i32, i32) {
    %c0_i32 = arith.constant 0 : i32
    %c0_i32_0 = arith.constant 0 : i32
    %c0_i32_1 = arith.constant 0 : i32
    return %arg0, %arg1, %c0_i32, %c0_i32_0 : i32, i32, i32, i32
  }
}

</mosaic_0001>

<llo_original>
// kernel: motnet_forward.3
$region0: #{motnet_forward.3}
  #allocation0 [shape = 'u32[]', space=smem, size = 0x4, offset = 0x4, fixed_abs, tag = 'smem constant byte address 0x4 - core index']
  #allocation1 [shape = 'u32[72,128]{1,0:T(1,128)}', space=vmem, size = 0x9000, scoped, tag = 'internal scratch']
  %s0 = inlined_call_operand.vmem [shape: f32[2,8,8,8], index: 0, kind: input, shape index: {}]
  %s1 = inlined_call_operand.vmem [shape: f32[2,2,1,1], index: 1, kind: output, shape index: {}]
  %s2 = sld [smem:[#allocation0]]
  $region37: #{motnet_forward.3} parent=0
    _
  %s4 = ssub.s32 1, %s2
  %s5 = scalar_select 0, %s4, %s2
  loop: start=0, step=1, limit=6
  $region2: #{motnet_forward.3} parent=0 // loop_pre_header
    _
  $region3: #{motnet_forward.3} parent=0 // loop_header
    %s7 = sphi 0, %s11
    %p8 = scmp.ge.s32.totalorder %s7, 6
    %s14 = sphi 0, %s26
    %s15 = sphi 0, %s22
    %s16 = sphi 0, %s14
    %s17 = sphi 0, %s15
    %s18 = sphi 0, %s16
    %s19 = sphi 0, %s17
    %s31 = sphi 0, %s33
    %s34 = sphi 0, %s31
    %s35 = sphi 0, %s34
    %s51 = sphi 0, %s35
    %s59 = sphi 0, %s61
    %s62 = sphi 0, %s59
    %s63 = sphi 0, %s62
    %s79 = sphi 0, %s63
  $region4: #{motnet_forward.3} parent=0 // loop_header_branch
    %10 = sbr.rel (%p8) target = $region8
  $region5: #{motnet_forward.3} parent=0 // loop_body
    %s12 = ssub.s32 %s7, 1
    %s13 = ssub.s32 %s7, 2
    %s20 = sadd.s32 1, %s15
    %p21 = scmp.ge.s32.totalorder %s20, 2
    %s22 = scalar_select %p21, 0, %s20
    %s23 = sadd.s32 1, %s14
    %s24 = scalar_select %p21, %s23, %s14
    %p25 = scmp.ge.s32.totalorder %s24, 2
    %s26 = scalar_select %p25, 0, %s24
    %s27 = ssub.s32 %s14, %s26
    %s28 = ssub.s32 %s15, %s22
    %s29 = sor.u32 %s27, %s28
    %p30 = scmp.eq.s32.totalorder %s29, 0
    %s32 = sadd.s32 %s31, 1
    %s33 = scalar_select %p30, %s31, %s32
    %p36 = pneg %p30
    %p37 = scmp.eq.s32.totalorder %s7, 3
    %p38 = por %p36, %p37
    %p39 = scmp.ne.s32.totalorder %s31, %s34
    %p40 = scmp.eq.s32.totalorder %s7, 0
    %p41 = por %p39, %p40
    %p42 = scmp.ne.s32.totalorder %s31, %s34
    %p43 = scmp.eq.s32.totalorder %s12, 3
    %p44 = por %p42, %p43
    %p45 = scmp.ne.s32.totalorder %s34, %s35
    %p46 = scmp.eq.s32.totalorder %s12, 0
    %p47 = por %p45, %p46
    %p48 = scmp.ne.s32.totalorder %s34, %s35
    %p49 = scmp.eq.s32.totalorder %s13, 3
    %p50 = por %p48, %p49
    %p52 = scmp.ne.s32.totalorder %s35, %s51
    %p53 = scmp.eq.s32.totalorder %s13, 0
    %p54 = por %p52, %p53
    %s55 = ssub.s32 %s14, %s26
    %s56 = ssub.s32 %s15, %s22
    %s57 = sor.u32 %s55, %s56
    %p58 = scmp.eq.s32.totalorder %s57, 0
    %s60 = sadd.s32 %s59, 1
    %s61 = scalar_select %p58, %s59, %s60
    %p64 = pneg %p58
    %p65 = scmp.eq.s32.totalorder %s7, 3
    %p66 = por %p64, %p65
    %p67 = scmp.ne.s32.totalorder %s59, %s62
    %p68 = scmp.eq.s32.totalorder %s7, 0
    %p69 = por %p67, %p68
    %p70 = scmp.ne.s32.totalorder %s59, %s62
    %p71 = scmp.eq.s32.totalorder %s12, 3
    %p72 = por %p70, %p71
    %p73 = scmp.ne.s32.totalorder %s62, %s63
    %p74 = scmp.eq.s32.totalorder %s12, 0
    %p75 = por %p73, %p74
    %p76 = scmp.ne.s32.totalorder %s62, %s63
    %p77 = scmp.eq.s32.totalorder %s13, 3
    %p78 = por %p76, %p77
    %p80 = scmp.ne.s32.totalorder %s63, %s79
    %p81 = scmp.eq.s32.totalorder %s13, 0
    %p82 = por %p80, %p81
    %p83 = scmp.le.s32.totalorder 1, %s7
    %p84 = scmp.lt.s32.totalorder %s7, 5
    %p85 = pnand %p83, %p84
    %p86 = pneg %p85
    // Predicated region
    $region9: #{motnet_forward.3} parent=5 // pred_check
      _
    $region10: #{motnet_forward.3} parent=5 // pred_check_branch
      %88 = sbr.rel (%p85) target = $region12
    $region11: #{motnet_forward.3} parent=5 // pred_region
      %s89 = ssub.s32 %s7, 1
    $region12: #{motnet_forward.3} parent=5 // pred_fallthru
      _
    %p90 = scmp.lt.s32.totalorder %s7, 4
    // Predicated region
    $region13: #{motnet_forward.3} parent=5 // pred_check
      %p91 = pneg %p90
    $region14: #{motnet_forward.3} parent=5 // pred_check_branch
      %93 = sbr.rel (%p91) target = $region16
    $region15: #{motnet_forward.3} parent=5 // pred_region
      // Predicated region
      $region17: #{motnet_forward.3} parent=15 // pred_check
        %p94 = pneg %p41
      $region18: #{motnet_forward.3} parent=15 // pred_check_branch
        %96 = sbr.rel (%p94) target = $region20
      $region19: #{motnet_forward.3} parent=15 // pred_region
        %s97 = smul.u32 4, %s15
        %p98 = scmp.lt.s32.totalorder %s14, 1
        %s99 = scalar_select %p98, %s14, 1
        %p100 = scmp.lt.s32.totalorder %s97, 7
        %s101 = scalar_select %p100, %s97, 7
        %s102 = smul.addr %s99, 8
        %s103 = sadd.s32 %s101, %s102
        %s104 = smul.addr %s103, 8
        %s105 = scalar_lea.vmem %s0, %s104
        %s106 = smul.u32 4, %s15
      $region20: #{motnet_forward.3} parent=15 // pred_fallthru
        _
    $region16: #{motnet_forward.3} parent=5 // pred_fallthru
      _
    %p107 = scmp.le.s32.totalorder 1, %s7
    %p108 = scmp.lt.s32.totalorder %s7, 5
    %p109 = pnand %p107, %p108
    %p110 = pneg %p109
    // Predicated region
    $region21: #{motnet_forward.3} parent=5 // pred_check
      _
    $region22: #{motnet_forward.3} parent=5 // pred_check_branch
      %112 = sbr.rel (%p109) target = $region24
    $region23: #{motnet_forward.3} parent=5 // pred_region
      %s113 = ssub.s32 %s7, 1
      %s114 = smul.u32 4, %s17
      %p115 = scmp.lt.s32.totalorder %s16, 1
      %s116 = scalar_select %p115, %s16, 1
      %p117 = scmp.lt.s32.totalorder %s114, 7
      %s118 = scalar_select %p117, %s114, 7
      %s119 = smul.addr %s116, 8
      %s120 = sadd.s32 %s118, %s119
      %s121 = smul.addr %s120, 8
      %s122 = scalar_lea.vmem %s0, %s121
      %p123 = pneg %p47
      %p124 = pneg %p44
      %p125 = pneg %p75
      %p126 = pneg %p72
      %p127 = scmp.lt.s32.totalorder %s16, 1
      %s128 = scalar_select %p127, %s16, 1
      %p129 = scmp.lt.s32.totalorder %s17, 1
      %s130 = scalar_select %p129, %s17, 1
      %s131 = smul.addr %s128, 2
      %s132 = sadd.s32 %s130, %s131
      %s133 = scalar_lea.vmem %s1, %s132
      %s134 = smul.u32 4, %s17
      %p135 = scmp.lt.s32.totalorder %s16, 1
      %s136 = scalar_select %p135, %s16, 1
      %p137 = scmp.lt.s32.totalorder %s134, 7
      %s138 = scalar_select %p137, %s134, 7
      %s139 = smul.addr %s136, 8
      %s140 = sadd.s32 %s138, %s139
      %s141 = smul.addr %s140, 8
      %s142 = scalar_lea.vmem %s0, %s141
      %s143 = smul.u32 4, %s17
      %p144 = scmp.lt.s32.totalorder %s16, 1
      %s145 = scalar_select %p144, %s16, 1
      %p146 = scmp.lt.s32.totalorder %s17, 1
      %s147 = scalar_select %p146, %s17, 1
      %s148 = smul.addr %s145, 2
      %s149 = sadd.s32 %s147, %s148
      %s150 = scalar_lea.vmem %s1, %s149
      %v151 = vld [vmem:[%s142] sm:$0xff]
      %v152 = vld [vmem:[%s142 + $0x8] sm:$0xff]
      %v153 = vld [vmem:[%s142 + $0x10] sm:$0xff]
      %v154 = vld [vmem:[%s142 + $0x18] sm:$0xff]
      %v155 = vsub.f32 %v152, %v151
      %v156 = vsub.f32 %v153, %v152
      %v157 = vsub.f32 %v154, %v153
      %v158 = vand.u32 2147483647, %v155
      %v159 = vand.u32 2147483647, %v156
      %v160 = vand.u32 2147483647, %v157
      %vm161 = vcmask 64512
      %v162 = vsel %vm161, %v158, 0.0
      %v163 = vsel %vm161, %v159, 0.0
      %v164 = vadd.f32 %v162, %v163
      %v165 = vsel %vm161, %v160, 0.0
      %v166 = vadd.f32 %v164, %v165
      %167 = vadd.xlane.f32.xlu0 %v166
      %v168 = vpop.xlane.xlu0 %167
      %v169 = vrot.slane %v168, 4
      %v170 = vadd.f32 %v168, %v169
      %v171 = vrot.slane %v170, 2
      %v172 = vadd.f32 %v170, %v171
      %v173 = vrot.slane %v172, 1
      %v174 = vadd.f32 %v172, %v173
      %s175 = vtos %v174
      %s176 = sadd.f32 %s175, 0.0
      %v181 = vrot.slane %v151, 7
      %v182 = vrot.slane %v152, 7
      %v183 = vrot.slane %v153, 7
      %v184 = vrot.slane %v154, 7
      %v189 = vsub.f32 %v151, %v181
      %v190 = vsub.f32 %v152, %v182
      %v191 = vsub.f32 %v153, %v183
      %v192 = vsub.f32 %v154, %v184
      %v193 = vand.u32 2147483647, %v189
      %v194 = vand.u32 2147483647, %v190
      %v195 = vand.u32 2147483647, %v191
      %v196 = vand.u32 2147483647, %v192
      %v201 = vrot.slane %v193, 1
      %v202 = vrot.slane %v194, 1
      %v203 = vrot.slane %v195, 1
      %v204 = vrot.slane %v196, 1
      %vm209 = vcmask 63488
      %v210 = vsel %vm209, %v201, 0.0
      %v211 = vsel %vm209, %v202, 0.0
      %v212 = vadd.f32 %v210, %v211
      %v213 = vsel %vm209, %v203, 0.0
      %v214 = vadd.f32 %v212, %v213
      %v215 = vsel %vm209, %v204, 0.0
      %v216 = vadd.f32 %v214, %v215
      %217 = vadd.xlane.f32.xlu0 %v216
      %v218 = vpop.xlane.xlu0 %217
      %v219 = vrot.slane %v218, 4
      %v220 = vadd.f32 %v218, %v219
      %v221 = vrot.slane %v220, 2
      %v222 = vadd.f32 %v220, %v221
      %v223 = vrot.slane %v222, 1
      %v224 = vadd.f32 %v222, %v223
      %s225 = vtos %v224
      %s226 = sadd.f32 %s176, %s225
      %227 = vrot.lane.b32.xlu0 %v151, 1
      %v228 = vpop.permute.xlu0 %227
      %229 = vrot.lane.b32.xlu0 %v152, 1
      %v230 = vpop.permute.xlu0 %229
      %231 = vrot.lane.b32.xlu0 %v153, 1
      %v232 = vpop.permute.xlu0 %231
      %233 = vrot.lane.b32.xlu0 %v154, 1
      %v234 = vpop.permute.xlu0 %233
      %v239 = vsub.f32 %v151, %v228
      %v240 = vsub.f32 %v152, %v230
      %v241 = vsub.f32 %v153, %v232
      %v242 = vsub.f32 %v154, %v234
      %v243 = vand.u32 2147483647, %v239
      %v244 = vand.u32 2147483647, %v240
      %v245 = vand.u32 2147483647, %v241
      %v246 = vand.u32 2147483647, %v242
      %251 = vrot.lane.b32.xlu0 %v243, 127
      %v252 = vpop.permute.xlu0 %251
      %253 = vrot.lane.b32.xlu0 %v244, 127
      %v254 = vpop.permute.xlu0 %253
      %255 = vrot.lane.b32.xlu0 %v245, 127
      %v256 = vpop.permute.xlu0 %255
      %257 = vrot.lane.b32.xlu0 %v246, 127
      %v258 = vpop.permute.xlu0 %257
      %vm263 = vcmask 56320
      %v264 = vsel %vm263, %v252, 0.0
      %v265 = vsel %vm263, %v254, 0.0
      %v266 = vadd.f32 %v264, %v265
      %v267 = vsel %vm263, %v256, 0.0
      %v268 = vadd.f32 %v266, %v267
      %v269 = vsel %vm263, %v258, 0.0
      %v270 = vadd.f32 %v268, %v269
      %271 = vadd.xlane.f32.xlu0 %v270
      %v272 = vpop.xlane.xlu0 %271
      %v273 = vrot.slane %v272, 4
      %v274 = vadd.f32 %v272, %v273
      %v275 = vrot.slane %v274, 2
      %v276 = vadd.f32 %v274, %v275
      %v277 = vrot.slane %v276, 1
      %v278 = vadd.f32 %v276, %v277
      %s279 = vtos %v278
      %s280 = sadd.f32 %s226, %s279
      %v281 = vstv %s280
      %vm282 = vcmask 0
      %283 = vst.msk [vmem:[%s150] sm:$0x1] %vm282, %v281
      %p284 = scmp.lt.s32.totalorder %s16, 1
      %s285 = scalar_select %p284, %s16, 1
      %p286 = scmp.lt.s32.totalorder %s17, 1
      %s287 = scalar_select %p286, %s17, 1
      %s288 = smul.addr %s285, 2
      %s289 = sadd.s32 %s287, %s288
      %s290 = scalar_lea.vmem %s1, %s289
      // Predicated region
      $region25: #{motnet_forward.3} parent=23 // pred_check
        %p291 = pneg %p72
      $region26: #{motnet_forward.3} parent=23 // pred_check_branch
        %293 = sbr.rel (%p291) target = $region28
      $region27: #{motnet_forward.3} parent=23 // pred_region
        _
      $region28: #{motnet_forward.3} parent=23 // pred_fallthru
        _
    $region24: #{motnet_forward.3} parent=5 // pred_fallthru
      _
    %p294 = scmp.le.s32.totalorder 2, %s7
    // Predicated region
    $region29: #{motnet_forward.3} parent=5 // pred_check
      %p295 = pneg %p294
    $region30: #{motnet_forward.3} parent=5 // pred_check_branch
      %297 = sbr.rel (%p295) target = $region32
    $region31: #{motnet_forward.3} parent=5 // pred_region
      %s298 = ssub.s32 %s7, 2
      // Predicated region
      $region33: #{motnet_forward.3} parent=31 // pred_check
        %p299 = pneg %p78
      $region34: #{motnet_forward.3} parent=31 // pred_check_branch
        %301 = sbr.rel (%p299) target = $region36
      $region35: #{motnet_forward.3} parent=31 // pred_region
        %p302 = scmp.lt.s32.totalorder %s18, 1
        %s303 = scalar_select %p302, %s18, 1
        %p304 = scmp.lt.s32.totalorder %s19, 1
        %s305 = scalar_select %p304, %s19, 1
        %s306 = smul.addr %s303, 2
        %s307 = sadd.s32 %s305, %s306
        %s308 = scalar_lea.vmem %s1, %s307
      $region36: #{motnet_forward.3} parent=31 // pred_fallthru
        _
    $region32: #{motnet_forward.3} parent=5 // pred_fallthru
      _
  $region6: #{motnet_forward.3} parent=0 // loop_footer
    %s11 = sadd.s32 1, %s7
  $region7: #{motnet_forward.3} parent=0 // loop_footer_branch
    %6 = sbr.rel target = $region3
  $region8: #{motnet_forward.3} parent=0 // loop_exit
    _

// kernel: motnet_forward.2
$region0: #{motnet_forward.2}
  #allocation0 [shape = 'u32[]', space=smem, size = 0x4, offset = 0x4, fixed_abs, tag = 'smem constant byte address 0x4 - core index']
  #allocation1 [shape = 'u32[72,128]{1,0:T(1,128)}', space=vmem, size = 0x9000, scoped, tag = 'internal scratch']
  #allocation2 [shape = 'f32[1,1]{1,0:T(1,128)S(1)}', space=vmem, size = 0x200, scoped, tag = 'scoped memory for motnet_forward.2']
  %s0 = inlined_call_operand.vmem [shape: bf16[2048,128], index: 0, kind: input, shape index: {}]
  %s1 = inlined_call_operand.vmem [shape: bf16[128,64], index: 1, kind: input, shape index: {}]
  %s2 = inlined_call_operand.vmem [shape: f32[1,64], index: 2, kind: input, shape index: {}]
  %s3 = inlined_call_operand.vmem [shape: f32[1,64], index: 3, kind: input, shape index: {}]
  %s4 = inlined_call_operand.<no memory space> [shape: f32[1,1], index: 4, kind: input, shape index: {}]
  %s5 = inlined_call_operand.vmem [shape: f32[16,128], index: 5, kind: output, shape index: {0}]
  %s6 = inlined_call_operand.vmem [shape: f32[16,128], index: 6, kind: output, shape index: {1}]
  %7 = xla_tuple %s5, %s6
  %s8 = sld [smem:[#allocation0]]
  $region61: #{motnet_forward.2} parent=0
    _
  %s10 = ssub.s32 1, %s8
  %s11 = scalar_select 0, %s10, %s8
  %v12 = vstv %s4
  %13 = vst [vmem:[#allocation2] sm:$0x1] %v12
  loop: start=0, step=1, limit=4
  $region2: #{motnet_forward.2} parent=0 // loop_pre_header
    _
  $region3: #{motnet_forward.2} parent=0 // loop_header
    %s15 = sphi 0, %s19
    %p16 = scmp.ge.s32.totalorder %s15, 4
    %s25 = sphi 0, %s27
    %s28 = sphi 0, %s25
    %s29 = sphi 0, %s28
    %s45 = sphi 0, %s29
    %s49 = sphi 0, %s49
    %s51 = sphi 0, %s49
    %s52 = sphi 0, %s51
    %s66 = sphi 0, %s52
    %s70 = sphi 0, %s70
    %s72 = sphi 0, %s70
    %s73 = sphi 0, %s72
    %s87 = sphi 0, %s73
    %s91 = sphi 0, %s91
    %s93 = sphi 0, %s91
    %s94 = sphi 0, %s93
    %s108 = sphi 0, %s94
    %s112 = sphi 0, %s112
    %s114 = sphi 0, %s112
    %s115 = sphi 0, %s114
    %s129 = sphi 0, %s115
    %s135 = sphi 0, %s137
    %s138 = sphi 0, %s135
    %s139 = sphi 0, %s138
    %s155 = sphi 0, %s139
    %s161 = sphi 0, %s163
    %s164 = sphi 0, %s161
    %s165 = sphi 0, %s164
    %s181 = sphi 0, %s165
  $region4: #{motnet_forward.2} parent=0 // loop_header_branch
    %18 = sbr.rel (%p16) target = $region8
  $region5: #{motnet_forward.2} parent=0 // loop_body
    %s20 = ssub.s32 %s15, 1
    %s21 = ssub.s32 %s15, 2
    %s22 = sadd.s32 %s15, 1
    %s23 = ssub.s32 %s15, %s22
    %p24 = scmp.eq.s32.totalorder %s23, 0
    %s26 = sadd.s32 %s25, 1
    %s27 = scalar_select %p24, %s25, %s26
    %p30 = pneg %p24
    %p31 = scmp.eq.s32.totalorder %s15, 1
    %p32 = por %p30, %p31
    %p33 = scmp.ne.s32.totalorder %s25, %s28
    %p34 = scmp.eq.s32.totalorder %s15, 0
    %p35 = por %p33, %p34
    %p36 = scmp.ne.s32.totalorder %s25, %s28
    %p37 = scmp.eq.s32.totalorder %s20, 1
    %p38 = por %p36, %p37
    %p39 = scmp.ne.s32.totalorder %s28, %s29
    %p40 = scmp.eq.s32.totalorder %s20, 0
    %p41 = por %p39, %p40
    %p42 = scmp.ne.s32.totalorder %s28, %s29
    %p43 = scmp.eq.s32.totalorder %s21, 1
    %p44 = por %p42, %p43
    %p46 = scmp.ne.s32.totalorder %s29, %s45
    %p47 = scmp.eq.s32.totalorder %s21, 0
    %p48 = por %p46, %p47
    %s50 = sadd.s32 %s49, 1
    %p53 = scmp.eq.s32.totalorder %s15, 1
    %p54 = scmp.ne.s32.totalorder %s49, %s51
    %p55 = scmp.eq.s32.totalorder %s15, 0
    %p56 = por %p54, %p55
    %p57 = scmp.ne.s32.totalorder %s49, %s51
    %p58 = scmp.eq.s32.totalorder %s20, 1
    %p59 = por %p57, %p58
    %p60 = scmp.ne.s32.totalorder %s51, %s52
    %p61 = scmp.eq.s32.totalorder %s20, 0
    %p62 = por %p60, %p61
    %p63 = scmp.ne.s32.totalorder %s51, %s52
    %p64 = scmp.eq.s32.totalorder %s21, 1
    %p65 = por %p63, %p64
    %p67 = scmp.ne.s32.totalorder %s52, %s66
    %p68 = scmp.eq.s32.totalorder %s21, 0
    %p69 = por %p67, %p68
    %s71 = sadd.s32 %s70, 1
    %p74 = scmp.eq.s32.totalorder %s15, 1
    %p75 = scmp.ne.s32.totalorder %s70, %s72
    %p76 = scmp.eq.s32.totalorder %s15, 0
    %p77 = por %p75, %p76
    %p78 = scmp.ne.s32.totalorder %s70, %s72
    %p79 = scmp.eq.s32.totalorder %s20, 1
    %p80 = por %p78, %p79
    %p81 = scmp.ne.s32.totalorder %s72, %s73
    %p82 = scmp.eq.s32.totalorder %s20, 0
    %p83 = por %p81, %p82
    %p84 = scmp.ne.s32.totalorder %s72, %s73
    %p85 = scmp.eq.s32.totalorder %s21, 1
    %p86 = por %p84, %p85
    %p88 = scmp.ne.s32.totalorder %s73, %s87
    %p89 = scmp.eq.s32.totalorder %s21, 0
    %p90 = por %p88, %p89
    %s92 = sadd.s32 %s91, 1
    %p95 = scmp.eq.s32.totalorder %s15, 1
    %p96 = scmp.ne.s32.totalorder %s91, %s93
    %p97 = scmp.eq.s32.totalorder %s15, 0
    %p98 = por %p96, %p97
    %p99 = scmp.ne.s32.totalorder %s91, %s93
    %p100 = scmp.eq.s32.totalorder %s20, 1
    %p101 = por %p99, %p100
    %p102 = scmp.ne.s32.totalorder %s93, %s94
    %p103 = scmp.eq.s32.totalorder %s20, 0
    %p104 = por %p102, %p103
    %p105 = scmp.ne.s32.totalorder %s93, %s94
    %p106 = scmp.eq.s32.totalorder %s21, 1
    %p107 = por %p105, %p106
    %p109 = scmp.ne.s32.totalorder %s94, %s108
    %p110 = scmp.eq.s32.totalorder %s21, 0
    %p111 = por %p109, %p110
    %s113 = sadd.s32 %s112, 1
    %p116 = scmp.eq.s32.totalorder %s15, 1
    %p117 = scmp.ne.s32.totalorder %s112, %s114
    %p118 = scmp.eq.s32.totalorder %s15, 0
    %p119 = por %p117, %p118
    %p120 = scmp.ne.s32.totalorder %s112, %s114
    %p121 = scmp.eq.s32.totalorder %s20, 1
    %p122 = por %p120, %p121
    %p123 = scmp.ne.s32.totalorder %s114, %s115
    %p124 = scmp.eq.s32.totalorder %s20, 0
    %p125 = por %p123, %p124
    %p126 = scmp.ne.s32.totalorder %s114, %s115
    %p127 = scmp.eq.s32.totalorder %s21, 1
    %p128 = por %p126, %p127
    %p130 = scmp.ne.s32.totalorder %s115, %s129
    %p131 = scmp.eq.s32.totalorder %s21, 0
    %p132 = por %p130, %p131
    %s133 = ssub.s32 %s15, %s22
    %p134 = scmp.eq.s32.totalorder %s133, 0
    %s136 = sadd.s32 %s135, 1
    %s137 = scalar_select %p134, %s135, %s136
    %p140 = pneg %p134
    %p141 = scmp.eq.s32.totalorder %s15, 1
    %p142 = por %p140, %p141
    %p143 = scmp.ne.s32.totalorder %s135, %s138
    %p144 = scmp.eq.s32.totalorder %s15, 0
    %p145 = por %p143, %p144
    %p146 = scmp.ne.s32.totalorder %s135, %s138
    %p147 = scmp.eq.s32.totalorder %s20, 1
    %p148 = por %p146, %p147
    %p149 = scmp.ne.s32.totalorder %s138, %s139
    %p150 = scmp.eq.s32.totalorder %s20, 0
    %p151 = por %p149, %p150
    %p152 = scmp.ne.s32.totalorder %s138, %s139
    %p153 = scmp.eq.s32.totalorder %s21, 1
    %p154 = por %p152, %p153
    %p156 = scmp.ne.s32.totalorder %s139, %s155
    %p157 = scmp.eq.s32.totalorder %s21, 0
    %p158 = por %p156, %p157
    %s159 = ssub.s32 %s15, %s22
    %p160 = scmp.eq.s32.totalorder %s159, 0
    %s162 = sadd.s32 %s161, 1
    %s163 = scalar_select %p160, %s161, %s162
    %p166 = pneg %p160
    %p167 = scmp.eq.s32.totalorder %s15, 1
    %p168 = por %p166, %p167
    %p169 = scmp.ne.s32.totalorder %s161, %s164
    %p170 = scmp.eq.s32.totalorder %s15, 0
    %p171 = por %p169, %p170
    %p172 = scmp.ne.s32.totalorder %s161, %s164
    %p173 = scmp.eq.s32.totalorder %s20, 1
    %p174 = por %p172, %p173
    %p175 = scmp.ne.s32.totalorder %s164, %s165
    %p176 = scmp.eq.s32.totalorder %s20, 0
    %p177 = por %p175, %p176
    %p178 = scmp.ne.s32.totalorder %s164, %s165
    %p179 = scmp.eq.s32.totalorder %s21, 1
    %p180 = por %p178, %p179
    %p182 = scmp.ne.s32.totalorder %s165, %s181
    %p183 = scmp.eq.s32.totalorder %s21, 0
    %p184 = por %p182, %p183
    %p185 = scmp.le.s32.totalorder 1, %s15
    %p186 = scmp.lt.s32.totalorder %s15, 3
    %p187 = pnand %p185, %p186
    %p188 = pneg %p187
    // Predicated region
    $region9: #{motnet_forward.2} parent=5 // pred_check
      _
    $region10: #{motnet_forward.2} parent=5 // pred_check_branch
      %190 = sbr.rel (%p187) target = $region12
    $region11: #{motnet_forward.2} parent=5 // pred_region
      %s191 = ssub.s32 %s15, 1
      // Predicated region
      $region13: #{motnet_forward.2} parent=11 // pred_check
        %p192 = pneg %p62
      $region14: #{motnet_forward.2} parent=11 // pred_check_branch
        %194 = sbr.rel (%p192) target = $region16
      $region15: #{motnet_forward.2} parent=11 // pred_region
        _
      $region16: #{motnet_forward.2} parent=11 // pred_fallthru
        _
      // Predicated region
      $region17: #{motnet_forward.2} parent=11 // pred_check
        %p195 = pneg %p83
      $region18: #{motnet_forward.2} parent=11 // pred_check_branch
        %197 = sbr.rel (%p195) target = $region20
      $region19: #{motnet_forward.2} parent=11 // pred_region
        _
      $region20: #{motnet_forward.2} parent=11 // pred_fallthru
        _
      // Predicated region
      $region21: #{motnet_forward.2} parent=11 // pred_check
        %p198 = pneg %p104
      $region22: #{motnet_forward.2} parent=11 // pred_check_branch
        %200 = sbr.rel (%p198) target = $region24
      $region23: #{motnet_forward.2} parent=11 // pred_region
        _
      $region24: #{motnet_forward.2} parent=11 // pred_fallthru
        _
      // Predicated region
      $region25: #{motnet_forward.2} parent=11 // pred_check
        %p201 = pneg %p125
      $region26: #{motnet_forward.2} parent=11 // pred_check_branch
        %203 = sbr.rel (%p201) target = $region28
      $region27: #{motnet_forward.2} parent=11 // pred_region
        _
      $region28: #{motnet_forward.2} parent=11 // pred_fallthru
        _
    $region12: #{motnet_forward.2} parent=5 // pred_fallthru
      _
    %p204 = scmp.lt.s32.totalorder %s15, 2
    // Predicated region
    $region29: #{motnet_forward.2} parent=5 // pred_check
      %p205 = pneg %p204
    $region30: #{motnet_forward.2} parent=5 // pred_check_branch
      %207 = sbr.rel (%p205) target = $region32
    $region31: #{motnet_forward.2} parent=5 // pred_region
      // Predicated region
      $region33: #{motnet_forward.2} parent=31 // pred_check
        %p208 = pneg %p35
      $region34: #{motnet_forward.2} parent=31 // pred_check_branch
        %210 = sbr.rel (%p208) target = $region36
      $region35: #{motnet_forward.2} parent=31 // pred_region
        %s211 = smul.u32 128, %s15
        %p212 = scmp.lt.s32.totalorder %s211, 255
        %s213 = scalar_select %p212, %s211, 255
        %s214 = smul.addr %s213, 4
        %s215 = scalar_lea.vmem %s0, %s214
        %s216 = smul.u32 128, %s15
      $region36: #{motnet_forward.2} parent=31 // pred_fallthru
        _
    $region32: #{motnet_forward.2} parent=5 // pred_fallthru
      _
    %p217 = scmp.le.s32.totalorder 1, %s15
    %p218 = scmp.lt.s32.totalorder %s15, 3
    %p219 = pnand %p217, %p218
    %p220 = pneg %p219
    // Predicated region
    $region37: #{motnet_forward.2} parent=5 // pred_check
      _
    $region38: #{motnet_forward.2} parent=5 // pred_check_branch
      %222 = sbr.rel (%p219) target = $region40
    $region39: #{motnet_forward.2} parent=5 // pred_region
      %s223 = ssub.s32 %s15, 1
      %s224 = smul.u32 128, %s20
      %p225 = scmp.lt.s32.totalorder %s224, 255
      %s226 = scalar_select %p225, %s224, 255
      %s227 = smul.addr %s226, 4
      %s228 = scalar_lea.vmem %s0, %s227
      %p229 = pneg %p41
      %p230 = pneg %p38
      %p231 = pneg %p62
      %p232 = pneg %p59
      %p233 = pneg %p83
      %p234 = pneg %p80
      %p235 = pneg %p104
      %p236 = pneg %p101
      %p237 = pneg %p125
      %p238 = pneg %p122
      %p239 = pneg %p151
      %p240 = pneg %p148
      %p241 = scmp.lt.s32.totalorder %s20, 1
      %s242 = scalar_select %p241, %s20, 1
      %s243 = smul.addr %s242, 8
      %s244 = scalar_lea.vmem %s5, %s243
      %p245 = pneg %p177
      %p246 = pneg %p174
      %p247 = scmp.lt.s32.totalorder %s20, 1
      %s248 = scalar_select %p247, %s20, 1
      %s249 = smul.addr %s248, 8
      %s250 = scalar_lea.vmem %s6, %s249
      %s251 = smul.u32 128, %s20
      %p252 = scmp.lt.s32.totalorder %s251, 255
      %s253 = scalar_select %p252, %s251, 255
      %s254 = smul.addr %s253, 4
      %s255 = scalar_lea.vmem %s0, %s254
      %s256 = smul.u32 128, %s20
      %p257 = scmp.lt.s32.totalorder %s20, 1
      %s258 = scalar_select %p257, %s20, 1
      %s259 = smul.addr %s258, 8
      %s260 = scalar_lea.vmem %s5, %s259
      %p261 = scmp.lt.s32.totalorder %s20, 1
      %s262 = scalar_select %p261, %s20, 1
      %s263 = smul.addr %s262, 8
      %s264 = scalar_lea.vmem %s6, %s263
      %v265 = vld [vmem:[%s255] sm:$0xf]
      %v266 = vld [vmem:[%s255 + $0x4] sm:$0xf]
      %v267 = vld [vmem:[%s255 + $0x8] sm:$0xf]
      %v268 = vld [vmem:[%s255 + $0xc] sm:$0xf]
      %v269 = vld [vmem:[%s255 + $0x10] sm:$0xf]
      %v270 = vld [vmem:[%s255 + $0x14] sm:$0xf]
      %v271 = vld [vmem:[%s255 + $0x18] sm:$0xf]
      %v272 = vld [vmem:[%s255 + $0x1c] sm:$0xf]
      %v273 = vld [vmem:[%s255 + $0x20] sm:$0xf]
      %v274 = vld [vmem:[%s255 + $0x24] sm:$0xf]
      %v275 = vld [vmem:[%s255 + $0x28] sm:$0xf]
      %v276 = vld [vmem:[%s255 + $0x2c] sm:$0xf]
      %v277 = vld [vmem:[%s255 + $0x30] sm:$0xf]
      %v278 = vld [vmem:[%s255 + $0x34] sm:$0xf]
      %v279 = vld [vmem:[%s255 + $0x38] sm:$0xf]
      %v280 = vld [vmem:[%s255 + $0x3c] sm:$0xf]
      %v281 = vld [vmem:[%s255 + $0x40] sm:$0xf]
      %v282 = vld [vmem:[%s255 + $0x44] sm:$0xf]
      %v283 = vld [vmem:[%s255 + $0x48] sm:$0xf]
      %v284 = vld [vmem:[%s255 + $0x4c] sm:$0xf]
      %v285 = vld [vmem:[%s255 + $0x50] sm:$0xf]
      %v286 = vld [vmem:[%s255 + $0x54] sm:$0xf]
      %v287 = vld [vmem:[%s255 + $0x58] sm:$0xf]
      %v288 = vld [vmem:[%s255 + $0x5c] sm:$0xf]
      %v289 = vld [vmem:[%s255 + $0x60] sm:$0xf]
      %v290 = vld [vmem:[%s255 + $0x64] sm:$0xf]
      %v291 = vld [vmem:[%s255 + $0x68] sm:$0xf]
      %v292 = vld [vmem:[%s255 + $0x6c] sm:$0xf]
      %v293 = vld [vmem:[%s255 + $0x70] sm:$0xf]
      %v294 = vld [vmem:[%s255 + $0x74] sm:$0xf]
      %v295 = vld [vmem:[%s255 + $0x78] sm:$0xf]
      %v296 = vld [vmem:[%s255 + $0x7c] sm:$0xf]
      %v297 = vld [vmem:[%s255 + $0x80] sm:$0xf]
      %v298 = vld [vmem:[%s255 + $0x84] sm:$0xf]
      %v299 = vld [vmem:[%s255 + $0x88] sm:$0xf]
      %v300 = vld [vmem:[%s255 + $0x8c] sm:$0xf]
      %v301 = vld [vmem:[%s255 + $0x90] sm:$0xf]
      %v302 = vld [vmem:[%s255 + $0x94] sm:$0xf]
      %v303 = vld [vmem:[%s255 + $0x98] sm:$0xf]
      %v304 = vld [vmem:[%s255 + $0x9c] sm:$0xf]
      %v305 = vld [vmem:[%s255 + $0xa0] sm:$0xf]
      %v306 = vld [vmem:[%s255 + $0xa4] sm:$0xf]
      %v307 = vld [vmem:[%s255 + $0xa8] sm:$0xf]
      %v308 = vld [vmem:[%s255 + $0xac] sm:$0xf]
      %v309 = vld [vmem:[%s255 + $0xb0] sm:$0xf]
      %v310 = vld [vmem:[%s255 + $0xb4] sm:$0xf]
      %v311 = vld [vmem:[%s255 + $0xb8] sm:$0xf]
      %v312 = vld [vmem:[%s255 + $0xbc] sm:$0xf]
      %v313 = vld [vmem:[%s255 + $0xc0] sm:$0xf]
      %v314 = vld [vmem:[%s255 + $0xc4] sm:$0xf]
      %v315 = vld [vmem:[%s255 + $0xc8] sm:$0xf]
      %v316 = vld [vmem:[%s255 + $0xcc] sm:$0xf]
      %v317 = vld [vmem:[%s255 + $0xd0] sm:$0xf]
      %v318 = vld [vmem:[%s255 + $0xd4] sm:$0xf]
      %v319 = vld [vmem:[%s255 + $0xd8] sm:$0xf]
      %v320 = vld [vmem:[%s255 + $0xdc] sm:$0xf]
      %v321 = vld [vmem:[%s255 + $0xe0] sm:$0xf]
      %v322 = vld [vmem:[%s255 + $0xe4] sm:$0xf]
      %v323 = vld [vmem:[%s255 + $0xe8] sm:$0xf]
      %v324 = vld [vmem:[%s255 + $0xec] sm:$0xf]
      %v325 = vld [vmem:[%s255 + $0xf0] sm:$0xf]
      %v326 = vld [vmem:[%s255 + $0xf4] sm:$0xf]
      %v327 = vld [vmem:[%s255 + $0xf8] sm:$0xf]
      %v328 = vld [vmem:[%s255 + $0xfc] sm:$0xf]
      %v329 = vld [vmem:[%s255 + $0x100] sm:$0xf]
      %v330 = vld [vmem:[%s255 + $0x104] sm:$0xf]
      %v331 = vld [vmem:[%s255 + $0x108] sm:$0xf]
      %v332 = vld [vmem:[%s255 + $0x10c] sm:$0xf]
      %v333 = vld [vmem:[%s255 + $0x110] sm:$0xf]
      %v334 = vld [vmem:[%s255 + $0x114] sm:$0xf]
      %v335 = vld [vmem:[%s255 + $0x118] sm:$0xf]
      %v336 = vld [vmem:[%s255 + $0x11c] sm:$0xf]
      %v337 = vld [vmem:[%s255 + $0x120] sm:$0xf]
      %v338 = vld [vmem:[%s255 + $0x124] sm:$0xf]
      %v339 = vld [vmem:[%s255 + $0x128] sm:$0xf]
      %v340 = vld [vmem:[%s255 + $0x12c] sm:$0xf]
      %v341 = vld [vmem:[%s255 + $0x130] sm:$0xf]
      %v342 = vld [vmem:[%s255 + $0x134] sm:$0xf]
      %v343 = vld [vmem:[%s255 + $0x138] sm:$0xf]
      %v344 = vld [vmem:[%s255 + $0x13c] sm:$0xf]
      %v345 = vld [vmem:[%s255 + $0x140] sm:$0xf]
      %v346 = vld [vmem:[%s255 + $0x144] sm:$0xf]
      %v347 = vld [vmem:[%s255 + $0x148] sm:$0xf]
      %v348 = vld [vmem:[%s255 + $0x14c] sm:$0xf]
      %v349 = vld [vmem:[%s255 + $0x150] sm:$0xf]
      %v350 = vld [vmem:[%s255 + $0x154] sm:$0xf]
      %v351 = vld [vmem:[%s255 + $0x158] sm:$0xf]
      %v352 = vld [vmem:[%s255 + $0x15c] sm:$0xf]
      %v353 = vld [vmem:[%s255 + $0x160] sm:$0xf]
      %v354 = vld [vmem:[%s255 + $0x164] sm:$0xf]
      %v355 = vld [vmem:[%s255 + $0x168] sm:$0xf]
      %v356 = vld [vmem:[%s255 + $0x16c] sm:$0xf]
      %v357 = vld [vmem:[%s255 + $0x170] sm:$0xf]
      %v358 = vld [vmem:[%s255 + $0x174] sm:$0xf]
      %v359 = vld [vmem:[%s255 + $0x178] sm:$0xf]
      %v360 = vld [vmem:[%s255 + $0x17c] sm:$0xf]
      %v361 = vld [vmem:[%s255 + $0x180] sm:$0xf]
      %v362 = vld [vmem:[%s255 + $0x184] sm:$0xf]
      %v363 = vld [vmem:[%s255 + $0x188] sm:$0xf]
      %v364 = vld [vmem:[%s255 + $0x18c] sm:$0xf]
      %v365 = vld [vmem:[%s255 + $0x190] sm:$0xf]
      %v366 = vld [vmem:[%s255 + $0x194] sm:$0xf]
      %v367 = vld [vmem:[%s255 + $0x198] sm:$0xf]
      %v368 = vld [vmem:[%s255 + $0x19c] sm:$0xf]
      %v369 = vld [vmem:[%s255 + $0x1a0] sm:$0xf]
      %v370 = vld [vmem:[%s255 + $0x1a4] sm:$0xf]
      %v371 = vld [vmem:[%s255 + $0x1a8] sm:$0xf]
      %v372 = vld [vmem:[%s255 + $0x1ac] sm:$0xf]
      %v373 = vld [vmem:[%s255 + $0x1b0] sm:$0xf]
      %v374 = vld [vmem:[%s255 + $0x1b4] sm:$0xf]
      %v375 = vld [vmem:[%s255 + $0x1b8] sm:$0xf]
      %v376 = vld [vmem:[%s255 + $0x1bc] sm:$0xf]
      %v377 = vld [vmem:[%s255 + $0x1c0] sm:$0xf]
      %v378 = vld [vmem:[%s255 + $0x1c4] sm:$0xf]
      %v379 = vld [vmem:[%s255 + $0x1c8] sm:$0xf]
      %v380 = vld [vmem:[%s255 + $0x1cc] sm:$0xf]
      %v381 = vld [vmem:[%s255 + $0x1d0] sm:$0xf]
      %v382 = vld [vmem:[%s255 + $0x1d4] sm:$0xf]
      %v383 = vld [vmem:[%s255 + $0x1d8] sm:$0xf]
      %v384 = vld [vmem:[%s255 + $0x1dc] sm:$0xf]
      %v385 = vld [vmem:[%s255 + $0x1e0] sm:$0xf]
      %v386 = vld [vmem:[%s255 + $0x1e4] sm:$0xf]
      %v387 = vld [vmem:[%s255 + $0x1e8] sm:$0xf]
      %v388 = vld [vmem:[%s255 + $0x1ec] sm:$0xf]
      %v389 = vld [vmem:[%s255 + $0x1f0] sm:$0xf]
      %v390 = vld [vmem:[%s255 + $0x1f4] sm:$0xf]
      %v391 = vld [vmem:[%s255 + $0x1f8] sm:$0xf]
      %v392 = vld [vmem:[%s255 + $0x1fc] sm:$0xf]
      %v393 = vld [vmem:[%s1] sm:$0xf]
      %v394 = vld [vmem:[%s1 + $0x4] sm:$0xf]
      %v395 = vld [vmem:[%s1 + $0x8] sm:$0xf]
      %v396 = vld [vmem:[%s1 + $0xc] sm:$0xf]
      %v397 = vld [vmem:[%s1 + $0x10] sm:$0xf]
      %v398 = vld [vmem:[%s1 + $0x14] sm:$0xf]
      %v399 = vld [vmem:[%s1 + $0x18] sm:$0xf]
      %v400 = vld [vmem:[%s1 + $0x1c] sm:$0xf]
      %v401 = vld [vmem:[%s1 + $0x20] sm:$0xf]
      %v402 = vld [vmem:[%s1 + $0x24] sm:$0xf]
      %v403 = vld [vmem:[%s1 + $0x28] sm:$0xf]
      %v404 = vld [vmem:[%s1 + $0x2c] sm:$0xf]
      %v405 = vld [vmem:[%s1 + $0x30] sm:$0xf]
      %v406 = vld [vmem:[%s1 + $0x34] sm:$0xf]
      %v407 = vld [vmem:[%s1 + $0x38] sm:$0xf]
      %v408 = vld [vmem:[%s1 + $0x3c] sm:$0xf]
      %v409 = vld [vmem:[%s2] sm:$0x1]
      %v411 = vperm.slane %v409, 0
      %v541 = vunpack.c.l.b16 %v265
      %v542 = vunpack.c.l.b16 %v266
      %v543 = vunpack.c.l.b16 %v267
      %v544 = vunpack.c.l.b16 %v268
      %v545 = vunpack.c.l.b16 %v269
      %v546 = vunpack.c.l.b16 %v270
      %v547 = vunpack.c.l.b16 %v271
      %v548 = vunpack.c.l.b16 %v272
      %v549 = vunpack.c.l.b16 %v273
      %v550 = vunpack.c.l.b16 %v274
      %v551 = vunpack.c.l.b16 %v275
      %v552 = vunpack.c.l.b16 %v276
      %v553 = vunpack.c.l.b16 %v277
      %v554 = vunpack.c.l.b16 %v278
      %v555 = vunpack.c.l.b16 %v279
      %v556 = vunpack.c.l.b16 %v280
      %v557 = vunpack.c.l.b16 %v281
      %v558 = vunpack.c.l.b16 %v282
      %v559 = vunpack.c.l.b16 %v283
      %v560 = vunpack.c.l.b16 %v284
      %v561 = vunpack.c.l.b16 %v285
      %v562 = vunpack.c.l.b16 %v286
      %v563 = vunpack.c.l.b16 %v287
      %v564 = vunpack.c.l.b16 %v288
      %v565 = vunpack.c.l.b16 %v289
      %v566 = vunpack.c.l.b16 %v290
      %v567 = vunpack.c.l.b16 %v291
      %v568 = vunpack.c.l.b16 %v292
      %v569 = vunpack.c.l.b16 %v293
      %v570 = vunpack.c.l.b16 %v294
      %v571 = vunpack.c.l.b16 %v295
      %v572 = vunpack.c.l.b16 %v296
      %v573 = vunpack.c.l.b16 %v297
      %v574 = vunpack.c.l.b16 %v298
      %v575 = vunpack.c.l.b16 %v299
      %v576 = vunpack.c.l.b16 %v300
      %v577 = vunpack.c.l.b16 %v301
      %v578 = vunpack.c.l.b16 %v302
      %v579 = vunpack.c.l.b16 %v303
      %v580 = vunpack.c.l.b16 %v304
      %v581 = vunpack.c.l.b16 %v305
      %v582 = vunpack.c.l.b16 %v306
      %v583 = vunpack.c.l.b16 %v307
      %v584 = vunpack.c.l.b16 %v308
      %v585 = vunpack.c.l.b16 %v309
      %v586 = vunpack.c.l.b16 %v310
      %v587 = vunpack.c.l.b16 %v311
      %v588 = vunpack.c.l.b16 %v312
      %v589 = vunpack.c.l.b16 %v313
      %v590 = vunpack.c.l.b16 %v314
      %v591 = vunpack.c.l.b16 %v315
      %v592 = vunpack.c.l.b16 %v316
      %v593 = vunpack.c.l.b16 %v317
      %v594 = vunpack.c.l.b16 %v318
      %v595 = vunpack.c.l.b16 %v319
      %v596 = vunpack.c.l.b16 %v320
      %v597 = vunpack.c.l.b16 %v321
      %v598 = vunpack.c.l.b16 %v322
      %v599 = vunpack.c.l.b16 %v323
      %v600 = vunpack.c.l.b16 %v324
      %v601 = vunpack.c.l.b16 %v325
      %v602 = vunpack.c.l.b16 %v326
      %v603 = vunpack.c.l.b16 %v327
      %v604 = vunpack.c.l.b16 %v328
      %v605 = vunpack.c.l.b16 %v329
      %v606 = vunpack.c.l.b16 %v330
      %v607 = vunpack.c.l.b16 %v331
      %v608 = vunpack.c.l.b16 %v332
      %v609 = vunpack.c.l.b16 %v333
      %v610 = vunpack.c.l.b16 %v334
      %v611 = vunpack.c.l.b16 %v335
      %v612 = vunpack.c.l.b16 %v336
      %v613 = vunpack.c.l.b16 %v337
      %v614 = vunpack.c.l.b16 %v338
      %v615 = vunpack.c.l.b16 %v339
      %v616 = vunpack.c.l.b16 %v340
      %v617 = vunpack.c.l.b16 %v341
      %v618 = vunpack.c.l.b16 %v342
      %v619 = vunpack.c.l.b16 %v343
      %v620 = vunpack.c.l.b16 %v344
      %v621 = vunpack.c.l.b16 %v345
      %v622 = vunpack.c.l.b16 %v346
      %v623 = vunpack.c.l.b16 %v347
      %v624 = vunpack.c.l.b16 %v348
      %v625 = vunpack.c.l.b16 %v349
      %v626 = vunpack.c.l.b16 %v350
      %v627 = vunpack.c.l.b16 %v351
      %v628 = vunpack.c.l.b16 %v352
      %v629 = vunpack.c.l.b16 %v353
      %v630 = vunpack.c.l.b16 %v354
      %v631 = vunpack.c.l.b16 %v355
      %v632 = vunpack.c.l.b16 %v356
      %v633 = vunpack.c.l.b16 %v357
      %v634 = vunpack.c.l.b16 %v358
      %v635 = vunpack.c.l.b16 %v359
      %v636 = vunpack.c.l.b16 %v360
      %v637 = vunpack.c.l.b16 %v361
      %v638 = vunpack.c.l.b16 %v362
      %v639 = vunpack.c.l.b16 %v363
      %v640 = vunpack.c.l.b16 %v364
      %v641 = vunpack.c.l.b16 %v365
      %v642 = vunpack.c.l.b16 %v366
      %v643 = vunpack.c.l.b16 %v367
      %v644 = vunpack.c.l.b16 %v368
      %v645 = vunpack.c.l.b16 %v369
      %v646 = vunpack.c.l.b16 %v370
      %v647 = vunpack.c.l.b16 %v371
      %v648 = vunpack.c.l.b16 %v372
      %v649 = vunpack.c.l.b16 %v373
      %v650 = vunpack.c.l.b16 %v374
      %v651 = vunpack.c.l.b16 %v375
      %v652 = vunpack.c.l.b16 %v376
      %v653 = vunpack.c.l.b16 %v377
      %v654 = vunpack.c.l.b16 %v378
      %v655 = vunpack.c.l.b16 %v379
      %v656 = vunpack.c.l.b16 %v380
      %v657 = vunpack.c.l.b16 %v381
      %v658 = vunpack.c.l.b16 %v382
      %v659 = vunpack.c.l.b16 %v383
      %v660 = vunpack.c.l.b16 %v384
      %v661 = vunpack.c.l.b16 %v385
      %v662 = vunpack.c.l.b16 %v386
      %v663 = vunpack.c.l.b16 %v387
      %v664 = vunpack.c.l.b16 %v388
      %v665 = vunpack.c.l.b16 %v389
      %v666 = vunpack.c.l.b16 %v390
      %v667 = vunpack.c.l.b16 %v391
      %v668 = vunpack.c.l.b16 %v392
      %v669 = vpack.c.b16 %v542, %v541
      %v670 = vpack.c.b16 %v544, %v543
      %v671 = vpack.c.b16 %v546, %v545
      %v672 = vpack.c.b16 %v548, %v547
      %v673 = vpack.c.b16 %v550, %v549
      %v674 = vpack.c.b16 %v552, %v551
      %v675 = vpack.c.b16 %v554, %v553
      %v676 = vpack.c.b16 %v556, %v555
      %v677 = vpack.c.b16 %v558, %v557
      %v678 = vpack.c.b16 %v560, %v559
      %v679 = vpack.c.b16 %v562, %v561
      %v680 = vpack.c.b16 %v564, %v563
      %v681 = vpack.c.b16 %v566, %v565
      %v682 = vpack.c.b16 %v568, %v567
      %v683 = vpack.c.b16 %v570, %v569
      %v684 = vpack.c.b16 %v572, %v571
      %v685 = vpack.c.b16 %v574, %v573
      %v686 = vpack.c.b16 %v576, %v575
      %v687 = vpack.c.b16 %v578, %v577
      %v688 = vpack.c.b16 %v580, %v579
      %v689 = vpack.c.b16 %v582, %v581
      %v690 = vpack.c.b16 %v584, %v583
      %v691 = vpack.c.b16 %v586, %v585
      %v692 = vpack.c.b16 %v588, %v587
      %v693 = vpack.c.b16 %v590, %v589
      %v694 = vpack.c.b16 %v592, %v591
      %v695 = vpack.c.b16 %v594, %v593
      %v696 = vpack.c.b16 %v596, %v595
      %v697 = vpack.c.b16 %v598, %v597
      %v698 = vpack.c.b16 %v600, %v599
      %v699 = vpack.c.b16 %v602, %v601
      %v700 = vpack.c.b16 %v604, %v603
      %v701 = vpack.c.b16 %v606, %v605
      %v702 = vpack.c.b16 %v608, %v607
      %v703 = vpack.c.b16 %v610, %v609
      %v704 = vpack.c.b16 %v612, %v611
      %v705 = vpack.c.b16 %v614, %v613
      %v706 = vpack.c.b16 %v616, %v615
      %v707 = vpack.c.b16 %v618, %v617
      %v708 = vpack.c.b16 %v620, %v619
      %v709 = vpack.c.b16 %v622, %v621
      %v710 = vpack.c.b16 %v624, %v623
      %v711 = vpack.c.b16 %v626, %v625
      %v712 = vpack.c.b16 %v628, %v627
      %v713 = vpack.c.b16 %v630, %v629
      %v714 = vpack.c.b16 %v632, %v631
      %v715 = vpack.c.b16 %v634, %v633
      %v716 = vpack.c.b16 %v636, %v635
      %v717 = vpack.c.b16 %v638, %v637
      %v718 = vpack.c.b16 %v640, %v639
      %v719 = vpack.c.b16 %v642, %v641
      %v720 = vpack.c.b16 %v644, %v643
      %v721 = vpack.c.b16 %v646, %v645
      %v722 = vpack.c.b16 %v648, %v647
      %v723 = vpack.c.b16 %v650, %v649
      %v724 = vpack.c.b16 %v652, %v651
      %v725 = vpack.c.b16 %v654, %v653
      %v726 = vpack.c.b16 %v656, %v655
      %v727 = vpack.c.b16 %v658, %v657
      %v728 = vpack.c.b16 %v660, %v659
      %v729 = vpack.c.b16 %v662, %v661
      %v730 = vpack.c.b16 %v664, %v663
      %v731 = vpack.c.b16 %v666, %v665
      %v732 = vpack.c.b16 %v668, %v667
      %v813 = vunpack.c.l.b16 %v393
      %v814 = vunpack.c.l.b16 %v394
      %v815 = vunpack.c.l.b16 %v395
      %v816 = vunpack.c.l.b16 %v396
      %v817 = vunpack.c.l.b16 %v397
      %v818 = vunpack.c.l.b16 %v398
      %v819 = vunpack.c.l.b16 %v399
      %v820 = vunpack.c.l.b16 %v400
      %v821 = vunpack.c.l.b16 %v401
      %v822 = vunpack.c.l.b16 %v402
      %v823 = vunpack.c.l.b16 %v403
      %v824 = vunpack.c.l.b16 %v404
      %v825 = vunpack.c.l.b16 %v405
      %v826 = vunpack.c.l.b16 %v406
      %v827 = vunpack.c.l.b16 %v407
      %v828 = vunpack.c.l.b16 %v408
      %v829 = vpack.c.b16 %v814, %v813
      %v830 = vpack.c.b16 %v816, %v815
      %v831 = vpack.c.b16 %v818, %v817
      %v832 = vpack.c.b16 %v820, %v819
      %v833 = vpack.c.b16 %v822, %v821
      %v834 = vpack.c.b16 %v824, %v823
      %v835 = vpack.c.b16 %v826, %v825
      %v836 = vpack.c.b16 %v828, %v827
      %845 = vmatpush.bf16.msra.mxu0 %v836
      %846 = vmatpush.bf16.msra.mxu0 %v835
      %847 = vmatpush.bf16.msra.mxu0 %v834
      %848 = vmatpush.bf16.msra.mxu0 %v833
      %849 = vmatpush.bf16.msra.mxu0 %v832
      %850 = vmatpush.bf16.msra.mxu0 %v831
      %851 = vmatpush.bf16.msra.mxu0 %v830
      %852 = vmatpush.bf16.msra.mxu0 %v829
      %853 = vmatmul.bf16.gmra.mxu0 %v669
      %v854 = vpop.f32.mrf.mxu0
      %v855 = vadd.f32 %v411, %v854
      %v856 = vpop.f32.mrf.mxu0
      %v857 = vadd.f32 %v411, %v856
      %858 = vmatmul.bf16.gmra.mxu0 %v670
      %v859 = vpop.f32.mrf.mxu0
      %v860 = vadd.f32 %v411, %v859
      %v861 = vpop.f32.mrf.mxu0
      %v862 = vadd.f32 %v411, %v861
      %863 = vmatmul.bf16.gmra.mxu0 %v671
      %v864 = vpop.f32.mrf.mxu0
      %v865 = vadd.f32 %v411, %v864
      %v866 = vpop.f32.mrf.mxu0
      %v867 = vadd.f32 %v411, %v866
      %868 = vmatmul.bf16.gmra.mxu0 %v672
      %v869 = vpop.f32.mrf.mxu0
      %v870 = vadd.f32 %v411, %v869
      %v871 = vpop.f32.mrf.mxu0
      %v872 = vadd.f32 %v411, %v871
      %873 = vmatmul.bf16.gmra.mxu0 %v673
      %v874 = vpop.f32.mrf.mxu0
      %v875 = vadd.f32 %v411, %v874
      %v876 = vpop.f32.mrf.mxu0
      %v877 = vadd.f32 %v411, %v876
      %878 = vmatmul.bf16.gmra.mxu0 %v674
      %v879 = vpop.f32.mrf.mxu0
      %v880 = vadd.f32 %v411, %v879
      %v881 = vpop.f32.mrf.mxu0
      %v882 = vadd.f32 %v411, %v881
      %883 = vmatmul.bf16.gmra.mxu0 %v675
      %v884 = vpop.f32.mrf.mxu0
      %v885 = vadd.f32 %v411, %v884
      %v886 = vpop.f32.mrf.mxu0
      %v887 = vadd.f32 %v411, %v886
      %888 = vmatmul.bf16.gmra.mxu0 %v676
      %v889 = vpop.f32.mrf.mxu0
      %v890 = vadd.f32 %v411, %v889
      %v891 = vpop.f32.mrf.mxu0
      %v892 = vadd.f32 %v411, %v891
      %893 = vmatmul.bf16.gmra.mxu0 %v677
      %v894 = vpop.f32.mrf.mxu0
      %v895 = vadd.f32 %v411, %v894
      %v896 = vpop.f32.mrf.mxu0
      %v897 = vadd.f32 %v411, %v896
      %898 = vmatmul.bf16.gmra.mxu0 %v678
      %v899 = vpop.f32.mrf.mxu0
      %v900 = vadd.f32 %v411, %v899
      %v901 = vpop.f32.mrf.mxu0
      %v902 = vadd.f32 %v411, %v901
      %903 = vmatmul.bf16.gmra.mxu0 %v679
      %v904 = vpop.f32.mrf.mxu0
      %v905 = vadd.f32 %v411, %v904
      %v906 = vpop.f32.mrf.mxu0
      %v907 = vadd.f32 %v411, %v906
      %908 = vmatmul.bf16.gmra.mxu0 %v680
      %v909 = vpop.f32.mrf.mxu0
      %v910 = vadd.f32 %v411, %v909
      %v911 = vpop.f32.mrf.mxu0
      %v912 = vadd.f32 %v411, %v911
      %913 = vmatmul.bf16.gmra.mxu0 %v681
      %v914 = vpop.f32.mrf.mxu0
      %v915 = vadd.f32 %v411, %v914
      %v916 = vpop.f32.mrf.mxu0
      %v917 = vadd.f32 %v411, %v916
      %918 = vmatmul.bf16.gmra.mxu0 %v682
      %v919 = vpop.f32.mrf.mxu0
      %v920 = vadd.f32 %v411, %v919
      %v921 = vpop.f32.mrf.mxu0
      %v922 = vadd.f32 %v411, %v921
      %923 = vmatmul.bf16.gmra.mxu0 %v683
      %v924 = vpop.f32.mrf.mxu0
      %v925 = vadd.f32 %v411, %v924
      %v926 = vpop.f32.mrf.mxu0
      %v927 = vadd.f32 %v411, %v926
      %928 = vmatmul.bf16.gmra.mxu0 %v684
      %v929 = vpop.f32.mrf.mxu0
      %v930 = vadd.f32 %v411, %v929
      %v931 = vpop.f32.mrf.mxu0
      %v932 = vadd.f32 %v411, %v931
      %933 = vmatmul.bf16.gmra.mxu0 %v685
      %v934 = vpop.f32.mrf.mxu0
      %v935 = vadd.f32 %v411, %v934
      %v936 = vpop.f32.mrf.mxu0
      %v937 = vadd.f32 %v411, %v936
      %938 = vmatmul.bf16.gmra.mxu0 %v686
      %v939 = vpop.f32.mrf.mxu0
      %v940 = vadd.f32 %v411, %v939
      %v941 = vpop.f32.mrf.mxu0
      %v942 = vadd.f32 %v411, %v941
      %943 = vmatmul.bf16.gmra.mxu0 %v687
      %v944 = vpop.f32.mrf.mxu0
      %v945 = vadd.f32 %v411, %v944
      %v946 = vpop.f32.mrf.mxu0
      %v947 = vadd.f32 %v411, %v946
      %948 = vmatmul.bf16.gmra.mxu0 %v688
      %v949 = vpop.f32.mrf.mxu0
      %v950 = vadd.f32 %v411, %v949
      %v951 = vpop.f32.mrf.mxu0
      %v952 = vadd.f32 %v411, %v951
      %953 = vmatmul.bf16.gmra.mxu0 %v689
      %v954 = vpop.f32.mrf.mxu0
      %v955 = vadd.f32 %v411, %v954
      %v956 = vpop.f32.mrf.mxu0
      %v957 = vadd.f32 %v411, %v956
      %958 = vmatmul.bf16.gmra.mxu0 %v690
      %v959 = vpop.f32.mrf.mxu0
      %v960 = vadd.f32 %v411, %v959
      %v961 = vpop.f32.mrf.mxu0
      %v962 = vadd.f32 %v411, %v961
      %963 = vmatmul.bf16.gmra.mxu0 %v691
      %v964 = vpop.f32.mrf.mxu0
      %v965 = vadd.f32 %v411, %v964
      %v966 = vpop.f32.mrf.mxu0
      %v967 = vadd.f32 %v411, %v966
      %968 = vmatmul.bf16.gmra.mxu0 %v692
      %v969 = vpop.f32.mrf.mxu0
      %v970 = vadd.f32 %v411, %v969
      %v971 = vpop.f32.mrf.mxu0
      %v972 = vadd.f32 %v411, %v971
      %973 = vmatmul.bf16.gmra.mxu0 %v693
      %v974 = vpop.f32.mrf.mxu0
      %v975 = vadd.f32 %v411, %v974
      %v976 = vpop.f32.mrf.mxu0
      %v977 = vadd.f32 %v411, %v976
      %978 = vmatmul.bf16.gmra.mxu0 %v694
      %v979 = vpop.f32.mrf.mxu0
      %v980 = vadd.f32 %v411, %v979
      %v981 = vpop.f32.mrf.mxu0
      %v982 = vadd.f32 %v411, %v981
      %983 = vmatmul.bf16.gmra.mxu0 %v695
      %v984 = vpop.f32.mrf.mxu0
      %v985 = vadd.f32 %v411, %v984
      %v986 = vpop.f32.mrf.mxu0
      %v987 = vadd.f32 %v411, %v986
      %988 = vmatmul.bf16.gmra.mxu0 %v696
      %v989 = vpop.f32.mrf.mxu0
      %v990 = vadd.f32 %v411, %v989
      %v991 = vpop.f32.mrf.mxu0
      %v992 = vadd.f32 %v411, %v991
      %993 = vmatmul.bf16.gmra.mxu0 %v697
      %v994 = vpop.f32.mrf.mxu0
      %v995 = vadd.f32 %v411, %v994
      %v996 = vpop.f32.mrf.mxu0
      %v997 = vadd.f32 %v411, %v996
      %998 = vmatmul.bf16.gmra.mxu0 %v698
      %v999 = vpop.f32.mrf.mxu0
      %v1000 = vadd.f32 %v411, %v999
      %v1001 = vpop.f32.mrf.mxu0
      %v1002 = vadd.f32 %v411, %v1001
      %1003 = vmatmul.bf16.gmra.mxu0 %v699
      %v1004 = vpop.f32.mrf.mxu0
      %v1005 = vadd.f32 %v411, %v1004
      %v1006 = vpop.f32.mrf.mxu0
      %v1007 = vadd.f32 %v411, %v1006
      %1008 = vmatmul.bf16.gmra.mxu0 %v700
      %v1009 = vpop.f32.mrf.mxu0
      %v1010 = vadd.f32 %v411, %v1009
      %v1011 = vpop.f32.mrf.mxu0
      %v1012 = vadd.f32 %v411, %v1011
      %1013 = vmatmul.bf16.gmra.mxu0 %v701
      %v1014 = vpop.f32.mrf.mxu0
      %v1015 = vadd.f32 %v411, %v1014
      %v1016 = vpop.f32.mrf.mxu0
      %v1017 = vadd.f32 %v411, %v1016
      %1018 = vmatmul.bf16.gmra.mxu0 %v702
      %v1019 = vpop.f32.mrf.mxu0
      %v1020 = vadd.f32 %v411, %v1019
      %v1021 = vpop.f32.mrf.mxu0
      %v1022 = vadd.f32 %v411, %v1021
      %1023 = vmatmul.bf16.gmra.mxu0 %v703
      %v1024 = vpop.f32.mrf.mxu0
      %v1025 = vadd.f32 %v411, %v1024
      %v1026 = vpop.f32.mrf.mxu0
      %v1027 = vadd.f32 %v411, %v1026
      %1028 = vmatmul.bf16.gmra.mxu0 %v704
      %v1029 = vpop.f32.mrf.mxu0
      %v1030 = vadd.f32 %v411, %v1029
      %v1031 = vpop.f32.mrf.mxu0
      %v1032 = vadd.f32 %v411, %v1031
      %1033 = vmatmul.bf16.gmra.mxu0 %v705
      %v1034 = vpop.f32.mrf.mxu0
      %v1035 = vadd.f32 %v411, %v1034
      %v1036 = vpop.f32.mrf.mxu0
      %v1037 = vadd.f32 %v411, %v1036
      %1038 = vmatmul.bf16.gmra.mxu0 %v706
      %v1039 = vpop.f32.mrf.mxu0
      %v1040 = vadd.f32 %v411, %v1039
      %v1041 = vpop.f32.mrf.mxu0
      %v1042 = vadd.f32 %v411, %v1041
      %1043 = vmatmul.bf16.gmra.mxu0 %v707
      %v1044 = vpop.f32.mrf.mxu0
      %v1045 = vadd.f32 %v411, %v1044
      %v1046 = vpop.f32.mrf.mxu0
      %v1047 = vadd.f32 %v411, %v1046
      %1048 = vmatmul.bf16.gmra.mxu0 %v708
      %v1049 = vpop.f32.mrf.mxu0
      %v1050 = vadd.f32 %v411, %v1049
      %v1051 = vpop.f32.mrf.mxu0
      %v1052 = vadd.f32 %v411, %v1051
      %1053 = vmatmul.bf16.gmra.mxu0 %v709
      %v1054 = vpop.f32.mrf.mxu0
      %v1055 = vadd.f32 %v411, %v1054
      %v1056 = vpop.f32.mrf.mxu0
      %v1057 = vadd.f32 %v411, %v1056
      %1058 = vmatmul.bf16.gmra.mxu0 %v710
      %v1059 = vpop.f32.mrf.mxu0
      %v1060 = vadd.f32 %v411, %v1059
      %v1061 = vpop.f32.mrf.mxu0
      %v1062 = vadd.f32 %v411, %v1061
      %1063 = vmatmul.bf16.gmra.mxu0 %v711
      %v1064 = vpop.f32.mrf.mxu0
      %v1065 = vadd.f32 %v411, %v1064
      %v1066 = vpop.f32.mrf.mxu0
      %v1067 = vadd.f32 %v411, %v1066
      %1068 = vmatmul.bf16.gmra.mxu0 %v712
      %v1069 = vpop.f32.mrf.mxu0
      %v1070 = vadd.f32 %v411, %v1069
      %v1071 = vpop.f32.mrf.mxu0
      %v1072 = vadd.f32 %v411, %v1071
      %1073 = vmatmul.bf16.gmra.mxu0 %v713
      %v1074 = vpop.f32.mrf.mxu0
      %v1075 = vadd.f32 %v411, %v1074
      %v1076 = vpop.f32.mrf.mxu0
      %v1077 = vadd.f32 %v411, %v1076
      %1078 = vmatmul.bf16.gmra.mxu0 %v714
      %v1079 = vpop.f32.mrf.mxu0
      %v1080 = vadd.f32 %v411, %v1079
      %v1081 = vpop.f32.mrf.mxu0
      %v1082 = vadd.f32 %v411, %v1081
      %1083 = vmatmul.bf16.gmra.mxu0 %v715
      %v1084 = vpop.f32.mrf.mxu0
      %v1085 = vadd.f32 %v411, %v1084
      %v1086 = vpop.f32.mrf.mxu0
      %v1087 = vadd.f32 %v411, %v1086
      %1088 = vmatmul.bf16.gmra.mxu0 %v716
      %v1089 = vpop.f32.mrf.mxu0
      %v1090 = vadd.f32 %v411, %v1089
      %v1091 = vpop.f32.mrf.mxu0
      %v1092 = vadd.f32 %v411, %v1091
      %1093 = vmatmul.bf16.gmra.mxu0 %v717
      %v1094 = vpop.f32.mrf.mxu0
      %v1095 = vadd.f32 %v411, %v1094
      %v1096 = vpop.f32.mrf.mxu0
      %v1097 = vadd.f32 %v411, %v1096
      %1098 = vmatmul.bf16.gmra.mxu0 %v718
      %v1099 = vpop.f32.mrf.mxu0
      %v1100 = vadd.f32 %v411, %v1099
      %v1101 = vpop.f32.mrf.mxu0
      %v1102 = vadd.f32 %v411, %v1101
      %1103 = vmatmul.bf16.gmra.mxu0 %v719
      %v1104 = vpop.f32.mrf.mxu0
      %v1105 = vadd.f32 %v411, %v1104
      %v1106 = vpop.f32.mrf.mxu0
      %v1107 = vadd.f32 %v411, %v1106
      %1108 = vmatmul.bf16.gmra.mxu0 %v720
      %v1109 = vpop.f32.mrf.mxu0
      %v1110 = vadd.f32 %v411, %v1109
      %v1111 = vpop.f32.mrf.mxu0
      %v1112 = vadd.f32 %v411, %v1111
      %1113 = vmatmul.bf16.gmra.mxu0 %v721
      %v1114 = vpop.f32.mrf.mxu0
      %v1115 = vadd.f32 %v411, %v1114
      %v1116 = vpop.f32.mrf.mxu0
      %v1117 = vadd.f32 %v411, %v1116
      %1118 = vmatmul.bf16.gmra.mxu0 %v722
      %v1119 = vpop.f32.mrf.mxu0
      %v1120 = vadd.f32 %v411, %v1119
      %v1121 = vpop.f32.mrf.mxu0
      %v1122 = vadd.f32 %v411, %v1121
      %1123 = vmatmul.bf16.gmra.mxu0 %v723
      %v1124 = vpop.f32.mrf.mxu0
      %v1125 = vadd.f32 %v411, %v1124
      %v1126 = vpop.f32.mrf.mxu0
      %v1127 = vadd.f32 %v411, %v1126
      %1128 = vmatmul.bf16.gmra.mxu0 %v724
      %v1129 = vpop.f32.mrf.mxu0
      %v1130 = vadd.f32 %v411, %v1129
      %v1131 = vpop.f32.mrf.mxu0
      %v1132 = vadd.f32 %v411, %v1131
      %1133 = vmatmul.bf16.gmra.mxu0 %v725
      %v1134 = vpop.f32.mrf.mxu0
      %v1135 = vadd.f32 %v411, %v1134
      %v1136 = vpop.f32.mrf.mxu0
      %v1137 = vadd.f32 %v411, %v1136
      %1138 = vmatmul.bf16.gmra.mxu0 %v726
      %v1139 = vpop.f32.mrf.mxu0
      %v1140 = vadd.f32 %v411, %v1139
      %v1141 = vpop.f32.mrf.mxu0
      %v1142 = vadd.f32 %v411, %v1141
      %1143 = vmatmul.bf16.gmra.mxu0 %v727
      %v1144 = vpop.f32.mrf.mxu0
      %v1145 = vadd.f32 %v411, %v1144
      %v1146 = vpop.f32.mrf.mxu0
      %v1147 = vadd.f32 %v411, %v1146
      %1148 = vmatmul.bf16.gmra.mxu0 %v728
      %v1149 = vpop.f32.mrf.mxu0
      %v1150 = vadd.f32 %v411, %v1149
      %v1151 = vpop.f32.mrf.mxu0
      %v1152 = vadd.f32 %v411, %v1151
      %1153 = vmatmul.bf16.gmra.mxu0 %v729
      %v1154 = vpop.f32.mrf.mxu0
      %v1155 = vadd.f32 %v411, %v1154
      %v1156 = vpop.f32.mrf.mxu0
      %v1157 = vadd.f32 %v411, %v1156
      %1158 = vmatmul.bf16.gmra.mxu0 %v730
      %v1159 = vpop.f32.mrf.mxu0
      %v1160 = vadd.f32 %v411, %v1159
      %v1161 = vpop.f32.mrf.mxu0
      %v1162 = vadd.f32 %v411, %v1161
      %1163 = vmatmul.bf16.gmra.mxu0 %v731
      %v1164 = vpop.f32.mrf.mxu0
      %v1165 = vadd.f32 %v411, %v1164
      %v1166 = vpop.f32.mrf.mxu0
      %v1167 = vadd.f32 %v411, %v1166
      %1168 = vmatmul.bf16.gmra.mxu0 %v732
      %v1169 = vpop.f32.mrf.mxu0
      %v1170 = vadd.f32 %v411, %v1169
      %v1171 = vpop.f32.mrf.mxu0
      %v1172 = vadd.f32 %v411, %v1171
      %1173 = vdwg.mxu0
      %vm1174 = vcmp.gt.f32.partialorder %v855, 0.0
      %vm1175 = vcmp.gt.f32.partialorder %v857, 0.0
      %vm1176 = vcmp.gt.f32.partialorder %v860, 0.0
      %vm1177 = vcmp.gt.f32.partialorder %v862, 0.0
      %vm1178 = vcmp.gt.f32.partialorder %v865, 0.0
      %vm1179 = vcmp.gt.f32.partialorder %v867, 0.0
      %vm1180 = vcmp.gt.f32.partialorder %v870, 0.0
      %vm1181 = vcmp.gt.f32.partialorder %v872, 0.0
      %vm1182 = vcmp.gt.f32.partialorder %v875, 0.0
      %vm1183 = vcmp.gt.f32.partialorder %v877, 0.0
      %vm1184 = vcmp.gt.f32.partialorder %v880, 0.0
      %vm1185 = vcmp.gt.f32.partialorder %v882, 0.0
      %vm1186 = vcmp.gt.f32.partialorder %v885, 0.0
      %vm1187 = vcmp.gt.f32.partialorder %v887, 0.0
      %vm1188 = vcmp.gt.f32.partialorder %v890, 0.0
      %vm1189 = vcmp.gt.f32.partialorder %v892, 0.0
      %vm1190 = vcmp.gt.f32.partialorder %v895, 0.0
      %vm1191 = vcmp.gt.f32.partialorder %v897, 0.0
      %vm1192 = vcmp.gt.f32.partialorder %v900, 0.0
      %vm1193 = vcmp.gt.f32.partialorder %v902, 0.0
      %vm1194 = vcmp.gt.f32.partialorder %v905, 0.0
      %vm1195 = vcmp.gt.f32.partialorder %v907, 0.0
      %vm1196 = vcmp.gt.f32.partialorder %v910, 0.0
      %vm1197 = vcmp.gt.f32.partialorder %v912, 0.0
      %vm1198 = vcmp.gt.f32.partialorder %v915, 0.0
      %vm1199 = vcmp.gt.f32.partialorder %v917, 0.0
      %vm1200 = vcmp.gt.f32.partialorder %v920, 0.0
      %vm1201 = vcmp.gt.f32.partialorder %v922, 0.0
      %vm1202 = vcmp.gt.f32.partialorder %v925, 0.0
      %vm1203 = vcmp.gt.f32.partialorder %v927, 0.0
      %vm1204 = vcmp.gt.f32.partialorder %v930, 0.0
      %vm1205 = vcmp.gt.f32.partialorder %v932, 0.0
      %vm1206 = vcmp.gt.f32.partialorder %v935, 0.0
      %vm1207 = vcmp.gt.f32.partialorder %v937, 0.0
      %vm1208 = vcmp.gt.f32.partialorder %v940, 0.0
      %vm1209 = vcmp.gt.f32.partialorder %v942, 0.0
      %vm1210 = vcmp.gt.f32.partialorder %v945, 0.0
      %vm1211 = vcmp.gt.f32.partialorder %v947, 0.0
      %vm1212 = vcmp.gt.f32.partialorder %v950, 0.0
      %vm1213 = vcmp.gt.f32.partialorder %v952, 0.0
      %vm1214 = vcmp.gt.f32.partialorder %v955, 0.0
      %vm1215 = vcmp.gt.f32.partialorder %v957, 0.0
      %vm1216 = vcmp.gt.f32.partialorder %v960, 0.0
      %vm1217 = vcmp.gt.f32.partialorder %v962, 0.0
      %vm1218 = vcmp.gt.f32.partialorder %v965, 0.0
      %vm1219 = vcmp.gt.f32.partialorder %v967, 0.0
      %vm1220 = vcmp.gt.f32.partialorder %v970, 0.0
      %vm1221 = vcmp.gt.f32.partialorder %v972, 0.0
      %vm1222 = vcmp.gt.f32.partialorder %v975, 0.0
      %vm1223 = vcmp.gt.f32.partialorder %v977, 0.0
      %vm1224 = vcmp.gt.f32.partialorder %v980, 0.0
      %vm1225 = vcmp.gt.f32.partialorder %v982, 0.0
      %vm1226 = vcmp.gt.f32.partialorder %v985, 0.0
      %vm1227 = vcmp.gt.f32.partialorder %v987, 0.0
      %vm1228 = vcmp.gt.f32.partialorder %v990, 0.0
      %vm1229 = vcmp.gt.f32.partialorder %v992, 0.0
      %vm1230 = vcmp.gt.f32.partialorder %v995, 0.0
      %vm1231 = vcmp.gt.f32.partialorder %v997, 0.0
      %vm1232 = vcmp.gt.f32.partialorder %v1000, 0.0
      %vm1233 = vcmp.gt.f32.partialorder %v1002, 0.0
      %vm1234 = vcmp.gt.f32.partialorder %v1005, 0.0
      %vm1235 = vcmp.gt.f32.partialorder %v1007, 0.0
      %vm1236 = vcmp.gt.f32.partialorder %v1010, 0.0
      %vm1237 = vcmp.gt.f32.partialorder %v1012, 0.0
      %vm1238 = vcmp.gt.f32.partialorder %v1015, 0.0
      %vm1239 = vcmp.gt.f32.partialorder %v1017, 0.0
      %vm1240 = vcmp.gt.f32.partialorder %v1020, 0.0
      %vm1241 = vcmp.gt.f32.partialorder %v1022, 0.0
      %vm1242 = vcmp.gt.f32.partialorder %v1025, 0.0
      %vm1243 = vcmp.gt.f32.partialorder %v1027, 0.0
      %vm1244 = vcmp.gt.f32.partialorder %v1030, 0.0
      %vm1245 = vcmp.gt.f32.partialorder %v1032, 0.0
      %vm1246 = vcmp.gt.f32.partialorder %v1035, 0.0
      %vm1247 = vcmp.gt.f32.partialorder %v1037, 0.0
      %vm1248 = vcmp.gt.f32.partialorder %v1040, 0.0
      %vm1249 = vcmp.gt.f32.partialorder %v1042, 0.0
      %vm1250 = vcmp.gt.f32.partialorder %v1045, 0.0
      %vm1251 = vcmp.gt.f32.partialorder %v1047, 0.0
      %vm1252 = vcmp.gt.f32.partialorder %v1050, 0.0
      %vm1253 = vcmp.gt.f32.partialorder %v1052, 0.0
      %vm1254 = vcmp.gt.f32.partialorder %v1055, 0.0
      %vm1255 = vcmp.gt.f32.partialorder %v1057, 0.0
      %vm1256 = vcmp.gt.f32.partialorder %v1060, 0.0
      %vm1257 = vcmp.gt.f32.partialorder %v1062, 0.0
      %vm1258 = vcmp.gt.f32.partialorder %v1065, 0.0
      %vm1259 = vcmp.gt.f32.partialorder %v1067, 0.0
      %vm1260 = vcmp.gt.f32.partialorder %v1070, 0.0
      %vm1261 = vcmp.gt.f32.partialorder %v1072, 0.0
      %vm1262 = vcmp.gt.f32.partialorder %v1075, 0.0
      %vm1263 = vcmp.gt.f32.partialorder %v1077, 0.0
      %vm1264 = vcmp.gt.f32.partialorder %v1080, 0.0
      %vm1265 = vcmp.gt.f32.partialorder %v1082, 0.0
      %vm1266 = vcmp.gt.f32.partialorder %v1085, 0.0
      %vm1267 = vcmp.gt.f32.partialorder %v1087, 0.0
      %vm1268 = vcmp.gt.f32.partialorder %v1090, 0.0
      %vm1269 = vcmp.gt.f32.partialorder %v1092, 0.0
      %vm1270 = vcmp.gt.f32.partialorder %v1095, 0.0
      %vm1271 = vcmp.gt.f32.partialorder %v1097, 0.0
      %vm1272 = vcmp.gt.f32.partialorder %v1100, 0.0
      %vm1273 = vcmp.gt.f32.partialorder %v1102, 0.0
      %vm1274 = vcmp.gt.f32.partialorder %v1105, 0.0
      %vm1275 = vcmp.gt.f32.partialorder %v1107, 0.0
      %vm1276 = vcmp.gt.f32.partialorder %v1110, 0.0
      %vm1277 = vcmp.gt.f32.partialorder %v1112, 0.0
      %vm1278 = vcmp.gt.f32.partialorder %v1115, 0.0
      %vm1279 = vcmp.gt.f32.partialorder %v1117, 0.0
      %vm1280 = vcmp.gt.f32.partialorder %v1120, 0.0
      %vm1281 = vcmp.gt.f32.partialorder %v1122, 0.0
      %vm1282 = vcmp.gt.f32.partialorder %v1125, 0.0
      %vm1283 = vcmp.gt.f32.partialorder %v1127, 0.0
      %vm1284 = vcmp.gt.f32.partialorder %v1130, 0.0
      %vm1285 = vcmp.gt.f32.partialorder %v1132, 0.0
      %vm1286 = vcmp.gt.f32.partialorder %v1135, 0.0
      %vm1287 = vcmp.gt.f32.partialorder %v1137, 0.0
      %vm1288 = vcmp.gt.f32.partialorder %v1140, 0.0
      %vm1289 = vcmp.gt.f32.partialorder %v1142, 0.0
      %vm1290 = vcmp.gt.f32.partialorder %v1145, 0.0
      %vm1291 = vcmp.gt.f32.partialorder %v1147, 0.0
      %vm1292 = vcmp.gt.f32.partialorder %v1150, 0.0
      %vm1293 = vcmp.gt.f32.partialorder %v1152, 0.0
      %vm1294 = vcmp.gt.f32.partialorder %v1155, 0.0
      %vm1295 = vcmp.gt.f32.partialorder %v1157, 0.0
      %vm1296 = vcmp.gt.f32.partialorder %v1160, 0.0
      %vm1297 = vcmp.gt.f32.partialorder %v1162, 0.0
      %vm1298 = vcmp.gt.f32.partialorder %v1165, 0.0
      %vm1299 = vcmp.gt.f32.partialorder %v1167, 0.0
      %vm1300 = vcmp.gt.f32.partialorder %v1170, 0.0
      %vm1301 = vcmp.gt.f32.partialorder %v1172, 0.0
      %v1302 = vmul.f32 %v855, 0.01
      %v1303 = vmul.f32 %v857, 0.01
      %v1304 = vmul.f32 %v860, 0.01
      %v1305 = vmul.f32 %v862, 0.01
      %v1306 = vmul.f32 %v865, 0.01
      %v1307 = vmul.f32 %v867, 0.01
      %v1308 = vmul.f32 %v870, 0.01
      %v1309 = vmul.f32 %v872, 0.01
      %v1310 = vmul.f32 %v875, 0.01
      %v1311 = vmul.f32 %v877, 0.01
      %v1312 = vmul.f32 %v880, 0.01
      %v1313 = vmul.f32 %v882, 0.01
      %v1314 = vmul.f32 %v885, 0.01
      %v1315 = vmul.f32 %v887, 0.01
      %v1316 = vmul.f32 %v890, 0.01
      %v1317 = vmul.f32 %v892, 0.01
      %v1318 = vmul.f32 %v895, 0.01
      %v1319 = vmul.f32 %v897, 0.01
      %v1320 = vmul.f32 %v900, 0.01
      %v1321 = vmul.f32 %v902, 0.01
      %v1322 = vmul.f32 %v905, 0.01
      %v1323 = vmul.f32 %v907, 0.01
      %v1324 = vmul.f32 %v910, 0.01
      %v1325 = vmul.f32 %v912, 0.01
      %v1326 = vmul.f32 %v915, 0.01
      %v1327 = vmul.f32 %v917, 0.01
      %v1328 = vmul.f32 %v920, 0.01
      %v1329 = vmul.f32 %v922, 0.01
      %v1330 = vmul.f32 %v925, 0.01
      %v1331 = vmul.f32 %v927, 0.01
      %v1332 = vmul.f32 %v930, 0.01
      %v1333 = vmul.f32 %v932, 0.01
      %v1334 = vmul.f32 %v935, 0.01
      %v1335 = vmul.f32 %v937, 0.01
      %v1336 = vmul.f32 %v940, 0.01
      %v1337 = vmul.f32 %v942, 0.01
      %v1338 = vmul.f32 %v945, 0.01
      %v1339 = vmul.f32 %v947, 0.01
      %v1340 = vmul.f32 %v950, 0.01
      %v1341 = vmul.f32 %v952, 0.01
      %v1342 = vmul.f32 %v955, 0.01
      %v1343 = vmul.f32 %v957, 0.01
      %v1344 = vmul.f32 %v960, 0.01
      %v1345 = vmul.f32 %v962, 0.01
      %v1346 = vmul.f32 %v965, 0.01
      %v1347 = vmul.f32 %v967, 0.01
      %v1348 = vmul.f32 %v970, 0.01
      %v1349 = vmul.f32 %v972, 0.01
      %v1350 = vmul.f32 %v975, 0.01
      %v1351 = vmul.f32 %v977, 0.01
      %v1352 = vmul.f32 %v980, 0.01
      %v1353 = vmul.f32 %v982, 0.01
      %v1354 = vmul.f32 %v985, 0.01
      %v1355 = vmul.f32 %v987, 0.01
      %v1356 = vmul.f32 %v990, 0.01
      %v1357 = vmul.f32 %v992, 0.01
      %v1358 = vmul.f32 %v995, 0.01
      %v1359 = vmul.f32 %v997, 0.01
      %v1360 = vmul.f32 %v1000, 0.01
      %v1361 = vmul.f32 %v1002, 0.01
      %v1362 = vmul.f32 %v1005, 0.01
      %v1363 = vmul.f32 %v1007, 0.01
      %v1364 = vmul.f32 %v1010, 0.01
      %v1365 = vmul.f32 %v1012, 0.01
      %v1366 = vmul.f32 %v1015, 0.01
      %v1367 = vmul.f32 %v1017, 0.01
      %v1368 = vmul.f32 %v1020, 0.01
      %v1369 = vmul.f32 %v1022, 0.01
      %v1370 = vmul.f32 %v1025, 0.01
      %v1371 = vmul.f32 %v1027, 0.01
      %v1372 = vmul.f32 %v1030, 0.01
      %v1373 = vmul.f32 %v1032, 0.01
      %v1374 = vmul.f32 %v1035, 0.01
      %v1375 = vmul.f32 %v1037, 0.01
      %v1376 = vmul.f32 %v1040, 0.01
      %v1377 = vmul.f32 %v1042, 0.01
      %v1378 = vmul.f32 %v1045, 0.01
      %v1379 = vmul.f32 %v1047, 0.01
      %v1380 = vmul.f32 %v1050, 0.01
      %v1381 = vmul.f32 %v1052, 0.01
      %v1382 = vmul.f32 %v1055, 0.01
      %v1383 = vmul.f32 %v1057, 0.01
      %v1384 = vmul.f32 %v1060, 0.01
      %v1385 = vmul.f32 %v1062, 0.01
      %v1386 = vmul.f32 %v1065, 0.01
      %v1387 = vmul.f32 %v1067, 0.01
      %v1388 = vmul.f32 %v1070, 0.01
      %v1389 = vmul.f32 %v1072, 0.01
      %v1390 = vmul.f32 %v1075, 0.01
      %v1391 = vmul.f32 %v1077, 0.01
      %v1392 = vmul.f32 %v1080, 0.01
      %v1393 = vmul.f32 %v1082, 0.01
      %v1394 = vmul.f32 %v1085, 0.01
      %v1395 = vmul.f32 %v1087, 0.01
      %v1396 = vmul.f32 %v1090, 0.01
      %v1397 = vmul.f32 %v1092, 0.01
      %v1398 = vmul.f32 %v1095, 0.01
      %v1399 = vmul.f32 %v1097, 0.01
      %v1400 = vmul.f32 %v1100, 0.01
      %v1401 = vmul.f32 %v1102, 0.01
      %v1402 = vmul.f32 %v1105, 0.01
      %v1403 = vmul.f32 %v1107, 0.01
      %v1404 = vmul.f32 %v1110, 0.01
      %v1405 = vmul.f32 %v1112, 0.01
      %v1406 = vmul.f32 %v1115, 0.01
      %v1407 = vmul.f32 %v1117, 0.01
      %v1408 = vmul.f32 %v1120, 0.01
      %v1409 = vmul.f32 %v1122, 0.01
      %v1410 = vmul.f32 %v1125, 0.01
      %v1411 = vmul.f32 %v1127, 0.01
      %v1412 = vmul.f32 %v1130, 0.01
      %v1413 = vmul.f32 %v1132, 0.01
      %v1414 = vmul.f32 %v1135, 0.01
      %v1415 = vmul.f32 %v1137, 0.01
      %v1416 = vmul.f32 %v1140, 0.01
      %v1417 = vmul.f32 %v1142, 0.01
      %v1418 = vmul.f32 %v1145, 0.01
      %v1419 = vmul.f32 %v1147, 0.01
      %v1420 = vmul.f32 %v1150, 0.01
      %v1421 = vmul.f32 %v1152, 0.01
      %v1422 = vmul.f32 %v1155, 0.01
      %v1423 = vmul.f32 %v1157, 0.01
      %v1424 = vmul.f32 %v1160, 0.01
      %v1425 = vmul.f32 %v1162, 0.01
      %v1426 = vmul.f32 %v1165, 0.01
      %v1427 = vmul.f32 %v1167, 0.01
      %v1428 = vmul.f32 %v1170, 0.01
      %v1429 = vmul.f32 %v1172, 0.01
      %v1430 = vsel %vm1174, %v855, %v1302
      %v1431 = vsel %vm1175, %v857, %v1303
      %v1432 = vsel %vm1176, %v860, %v1304
      %v1433 = vsel %vm1177, %v862, %v1305
      %v1434 = vsel %vm1178, %v865, %v1306
      %v1435 = vsel %vm1179, %v867, %v1307
      %v1436 = vsel %vm1180, %v870, %v1308
      %v1437 = vsel %vm1181, %v872, %v1309
      %v1438 = vsel %vm1182, %v875, %v1310
      %v1439 = vsel %vm1183, %v877, %v1311
      %v1440 = vsel %vm1184, %v880, %v1312
      %v1441 = vsel %vm1185, %v882, %v1313
      %v1442 = vsel %vm1186, %v885, %v1314
      %v1443 = vsel %vm1187, %v887, %v1315
      %v1444 = vsel %vm1188, %v890, %v1316
      %v1445 = vsel %vm1189, %v892, %v1317
      %v1446 = vsel %vm1190, %v895, %v1318
      %v1447 = vsel %vm1191, %v897, %v1319
      %v1448 = vsel %vm1192, %v900, %v1320
      %v1449 = vsel %vm1193, %v902, %v1321
      %v1450 = vsel %vm1194, %v905, %v1322
      %v1451 = vsel %vm1195, %v907, %v1323
      %v1452 = vsel %vm1196, %v910, %v1324
      %v1453 = vsel %vm1197, %v912, %v1325
      %v1454 = vsel %vm1198, %v915, %v1326
      %v1455 = vsel %vm1199, %v917, %v1327
      %v1456 = vsel %vm1200, %v920, %v1328
      %v1457 = vsel %vm1201, %v922, %v1329
      %v1458 = vsel %vm1202, %v925, %v1330
      %v1459 = vsel %vm1203, %v927, %v1331
      %v1460 = vsel %vm1204, %v930, %v1332
      %v1461 = vsel %vm1205, %v932, %v1333
      %v1462 = vsel %vm1206, %v935, %v1334
      %v1463 = vsel %vm1207, %v937, %v1335
      %v1464 = vsel %vm1208, %v940, %v1336
      %v1465 = vsel %vm1209, %v942, %v1337
      %v1466 = vsel %vm1210, %v945, %v1338
      %v1467 = vsel %vm1211, %v947, %v1339
      %v1468 = vsel %vm1212, %v950, %v1340
      %v1469 = vsel %vm1213, %v952, %v1341
      %v1470 = vsel %vm1214, %v955, %v1342
      %v1471 = vsel %vm1215, %v957, %v1343
      %v1472 = vsel %vm1216, %v960, %v1344
      %v1473 = vsel %vm1217, %v962, %v1345
      %v1474 = vsel %vm1218, %v965, %v1346
      %v1475 = vsel %vm1219, %v967, %v1347
      %v1476 = vsel %vm1220, %v970, %v1348
      %v1477 = vsel %vm1221, %v972, %v1349
      %v1478 = vsel %vm1222, %v975, %v1350
      %v1479 = vsel %vm1223, %v977, %v1351
      %v1480 = vsel %vm1224, %v980, %v1352
      %v1481 = vsel %vm1225, %v982, %v1353
      %v1482 = vsel %vm1226, %v985, %v1354
      %v1483 = vsel %vm1227, %v987, %v1355
      %v1484 = vsel %vm1228, %v990, %v1356
      %v1485 = vsel %vm1229, %v992, %v1357
      %v1486 = vsel %vm1230, %v995, %v1358
      %v1487 = vsel %vm1231, %v997, %v1359
      %v1488 = vsel %vm1232, %v1000, %v1360
      %v1489 = vsel %vm1233, %v1002, %v1361
      %v1490 = vsel %vm1234, %v1005, %v1362
      %v1491 = vsel %vm1235, %v1007, %v1363
      %v1492 = vsel %vm1236, %v1010, %v1364
      %v1493 = vsel %vm1237, %v1012, %v1365
      %v1494 = vsel %vm1238, %v1015, %v1366
      %v1495 = vsel %vm1239, %v1017, %v1367
      %v1496 = vsel %vm1240, %v1020, %v1368
      %v1497 = vsel %vm1241, %v1022, %v1369
      %v1498 = vsel %vm1242, %v1025, %v1370
      %v1499 = vsel %vm1243, %v1027, %v1371
      %v1500 = vsel %vm1244, %v1030, %v1372
      %v1501 = vsel %vm1245, %v1032, %v1373
      %v1502 = vsel %vm1246, %v1035, %v1374
      %v1503 = vsel %vm1247, %v1037, %v1375
      %v1504 = vsel %vm1248, %v1040, %v1376
      %v1505 = vsel %vm1249, %v1042, %v1377
      %v1506 = vsel %vm1250, %v1045, %v1378
      %v1507 = vsel %vm1251, %v1047, %v1379
      %v1508 = vsel %vm1252, %v1050, %v1380
      %v1509 = vsel %vm1253, %v1052, %v1381
      %v1510 = vsel %vm1254, %v1055, %v1382
      %v1511 = vsel %vm1255, %v1057, %v1383
      %v1512 = vsel %vm1256, %v1060, %v1384
      %v1513 = vsel %vm1257, %v1062, %v1385
      %v1514 = vsel %vm1258, %v1065, %v1386
      %v1515 = vsel %vm1259, %v1067, %v1387
      %v1516 = vsel %vm1260, %v1070, %v1388
      %v1517 = vsel %vm1261, %v1072, %v1389
      %v1518 = vsel %vm1262, %v1075, %v1390
      %v1519 = vsel %vm1263, %v1077, %v1391
      %v1520 = vsel %vm1264, %v1080, %v1392
      %v1521 = vsel %vm1265, %v1082, %v1393
      %v1522 = vsel %vm1266, %v1085, %v1394
      %v1523 = vsel %vm1267, %v1087, %v1395
      %v1524 = vsel %vm1268, %v1090, %v1396
      %v1525 = vsel %vm1269, %v1092, %v1397
      %v1526 = vsel %vm1270, %v1095, %v1398
      %v1527 = vsel %vm1271, %v1097, %v1399
      %v1528 = vsel %vm1272, %v1100, %v1400
      %v1529 = vsel %vm1273, %v1102, %v1401
      %v1530 = vsel %vm1274, %v1105, %v1402
      %v1531 = vsel %vm1275, %v1107, %v1403
      %v1532 = vsel %vm1276, %v1110, %v1404
      %v1533 = vsel %vm1277, %v1112, %v1405
      %v1534 = vsel %vm1278, %v1115, %v1406
      %v1535 = vsel %vm1279, %v1117, %v1407
      %v1536 = vsel %vm1280, %v1120, %v1408
      %v1537 = vsel %vm1281, %v1122, %v1409
      %v1538 = vsel %vm1282, %v1125, %v1410
      %v1539 = vsel %vm1283, %v1127, %v1411
      %v1540 = vsel %vm1284, %v1130, %v1412
      %v1541 = vsel %vm1285, %v1132, %v1413
      %v1542 = vsel %vm1286, %v1135, %v1414
      %v1543 = vsel %vm1287, %v1137, %v1415
      %v1544 = vsel %vm1288, %v1140, %v1416
      %v1545 = vsel %vm1289, %v1142, %v1417
      %v1546 = vsel %vm1290, %v1145, %v1418
      %v1547 = vsel %vm1291, %v1147, %v1419
      %v1548 = vsel %vm1292, %v1150, %v1420
      %v1549 = vsel %vm1293, %v1152, %v1421
      %v1550 = vsel %vm1294, %v1155, %v1422
      %v1551 = vsel %vm1295, %v1157, %v1423
      %v1552 = vsel %vm1296, %v1160, %v1424
      %v1553 = vsel %vm1297, %v1162, %v1425
      %v1554 = vsel %vm1298, %v1165, %v1426
      %v1555 = vsel %vm1299, %v1167, %v1427
      %v1556 = vsel %vm1300, %v1170, %v1428
      %v1557 = vsel %vm1301, %v1172, %v1429
      %v1558 = vld [vmem:[%s3] sm:$0x1]
      %v1560 = vperm.slane %v1558, 0
      %v1562 = vmul.f32 %v1430, %v1560
      %v1563 = vmul.f32 %v1431, %v1560
      %v1564 = vmul.f32 %v1432, %v1560
      %v1565 = vmul.f32 %v1433, %v1560
      %v1566 = vmul.f32 %v1434, %v1560
      %v1567 = vmul.f32 %v1435, %v1560
      %v1568 = vmul.f32 %v1436, %v1560
      %v1569 = vmul.f32 %v1437, %v1560
      %v1570 = vmul.f32 %v1438, %v1560
      %v1571 = vmul.f32 %v1439, %v1560
      %v1572 = vmul.f32 %v1440, %v1560
      %v1573 = vmul.f32 %v1441, %v1560
      %v1574 = vmul.f32 %v1442, %v1560
      %v1575 = vmul.f32 %v1443, %v1560
      %v1576 = vmul.f32 %v1444, %v1560
      %v1577 = vmul.f32 %v1445, %v1560
      %v1578 = vmul.f32 %v1446, %v1560
      %v1579 = vmul.f32 %v1447, %v1560
      %v1580 = vmul.f32 %v1448, %v1560
      %v1581 = vmul.f32 %v1449, %v1560
      %v1582 = vmul.f32 %v1450, %v1560
      %v1583 = vmul.f32 %v1451, %v1560
      %v1584 = vmul.f32 %v1452, %v1560
      %v1585 = vmul.f32 %v1453, %v1560
      %v1586 = vmul.f32 %v1454, %v1560
      %v1587 = vmul.f32 %v1455, %v1560
      %v1588 = vmul.f32 %v1456, %v1560
      %v1589 = vmul.f32 %v1457, %v1560
      %v1590 = vmul.f32 %v1458, %v1560
      %v1591 = vmul.f32 %v1459, %v1560
      %v1592 = vmul.f32 %v1460, %v1560
      %v1593 = vmul.f32 %v1461, %v1560
      %v1594 = vmul.f32 %v1462, %v1560
      %v1595 = vmul.f32 %v1463, %v1560
      %v1596 = vmul.f32 %v1464, %v1560
      %v1597 = vmul.f32 %v1465, %v1560
      %v1598 = vmul.f32 %v1466, %v1560
      %v1599 = vmul.f32 %v1467, %v1560
      %v1600 = vmul.f32 %v1468, %v1560
      %v1601 = vmul.f32 %v1469, %v1560
      %v1602 = vmul.f32 %v1470, %v1560
      %v1603 = vmul.f32 %v1471, %v1560
      %v1604 = vmul.f32 %v1472, %v1560
      %v1605 = vmul.f32 %v1473, %v1560
      %v1606 = vmul.f32 %v1474, %v1560
      %v1607 = vmul.f32 %v1475, %v1560
      %v1608 = vmul.f32 %v1476, %v1560
      %v1609 = vmul.f32 %v1477, %v1560
      %v1610 = vmul.f32 %v1478, %v1560
      %v1611 = vmul.f32 %v1479, %v1560
      %v1612 = vmul.f32 %v1480, %v1560
      %v1613 = vmul.f32 %v1481, %v1560
      %v1614 = vmul.f32 %v1482, %v1560
      %v1615 = vmul.f32 %v1483, %v1560
      %v1616 = vmul.f32 %v1484, %v1560
      %v1617 = vmul.f32 %v1485, %v1560
      %v1618 = vmul.f32 %v1486, %v1560
      %v1619 = vmul.f32 %v1487, %v1560
      %v1620 = vmul.f32 %v1488, %v1560
      %v1621 = vmul.f32 %v1489, %v1560
      %v1622 = vmul.f32 %v1490, %v1560
      %v1623 = vmul.f32 %v1491, %v1560
      %v1624 = vmul.f32 %v1492, %v1560
      %v1625 = vmul.f32 %v1493, %v1560
      %v1626 = vmul.f32 %v1494, %v1560
      %v1627 = vmul.f32 %v1495, %v1560
      %v1628 = vmul.f32 %v1496, %v1560
      %v1629 = vmul.f32 %v1497, %v1560
      %v1630 = vmul.f32 %v1498, %v1560
      %v1631 = vmul.f32 %v1499, %v1560
      %v1632 = vmul.f32 %v1500, %v1560
      %v1633 = vmul.f32 %v1501, %v1560
      %v1634 = vmul.f32 %v1502, %v1560
      %v1635 = vmul.f32 %v1503, %v1560
      %v1636 = vmul.f32 %v1504, %v1560
      %v1637 = vmul.f32 %v1505, %v1560
      %v1638 = vmul.f32 %v1506, %v1560
      %v1639 = vmul.f32 %v1507, %v1560
      %v1640 = vmul.f32 %v1508, %v1560
      %v1641 = vmul.f32 %v1509, %v1560
      %v1642 = vmul.f32 %v1510, %v1560
      %v1643 = vmul.f32 %v1511, %v1560
      %v1644 = vmul.f32 %v1512, %v1560
      %v1645 = vmul.f32 %v1513, %v1560
      %v1646 = vmul.f32 %v1514, %v1560
      %v1647 = vmul.f32 %v1515, %v1560
      %v1648 = vmul.f32 %v1516, %v1560
      %v1649 = vmul.f32 %v1517, %v1560
      %v1650 = vmul.f32 %v1518, %v1560
      %v1651 = vmul.f32 %v1519, %v1560
      %v1652 = vmul.f32 %v1520, %v1560
      %v1653 = vmul.f32 %v1521, %v1560
      %v1654 = vmul.f32 %v1522, %v1560
      %v1655 = vmul.f32 %v1523, %v1560
      %v1656 = vmul.f32 %v1524, %v1560
      %v1657 = vmul.f32 %v1525, %v1560
      %v1658 = vmul.f32 %v1526, %v1560
      %v1659 = vmul.f32 %v1527, %v1560
      %v1660 = vmul.f32 %v1528, %v1560
      %v1661 = vmul.f32 %v1529, %v1560
      %v1662 = vmul.f32 %v1530, %v1560
      %v1663 = vmul.f32 %v1531, %v1560
      %v1664 = vmul.f32 %v1532, %v1560
      %v1665 = vmul.f32 %v1533, %v1560
      %v1666 = vmul.f32 %v1534, %v1560
      %v1667 = vmul.f32 %v1535, %v1560
      %v1668 = vmul.f32 %v1536, %v1560
      %v1669 = vmul.f32 %v1537, %v1560
      %v1670 = vmul.f32 %v1538, %v1560
      %v1671 = vmul.f32 %v1539, %v1560
      %v1672 = vmul.f32 %v1540, %v1560
      %v1673 = vmul.f32 %v1541, %v1560
      %v1674 = vmul.f32 %v1542, %v1560
      %v1675 = vmul.f32 %v1543, %v1560
      %v1676 = vmul.f32 %v1544, %v1560
      %v1677 = vmul.f32 %v1545, %v1560
      %v1678 = vmul.f32 %v1546, %v1560
      %v1679 = vmul.f32 %v1547, %v1560
      %v1680 = vmul.f32 %v1548, %v1560
      %v1681 = vmul.f32 %v1549, %v1560
      %v1682 = vmul.f32 %v1550, %v1560
      %v1683 = vmul.f32 %v1551, %v1560
      %v1684 = vmul.f32 %v1552, %v1560
      %v1685 = vmul.f32 %v1553, %v1560
      %v1686 = vmul.f32 %v1554, %v1560
      %v1687 = vmul.f32 %v1555, %v1560
      %v1688 = vmul.f32 %v1556, %v1560
      %v1689 = vmul.f32 %v1557, %v1560
      %vm1690 = vcmask 523264
      %v1691 = vsel %vm1690, %v1562, 0.0
      %1692 = vadd.xlane.f32.xlu0 %v1691
      %v1693 = vpop.xlane.xlu0 %1692
      %v1694 = vsel %vm1690, %v1563, 0.0
      %1695 = vadd.xlane.f32.xlu0 %v1694
      %v1696 = vpop.xlane.xlu0 %1695
      %v1697 = vsel %vm1690, %v1564, 0.0
      %1698 = vadd.xlane.f32.xlu0 %v1697
      %v1699 = vpop.xlane.xlu0 %1698
      %v1700 = vsel %vm1690, %v1565, 0.0
      %1701 = vadd.xlane.f32.xlu0 %v1700
      %v1702 = vpop.xlane.xlu0 %1701
      %v1703 = vsel %vm1690, %v1566, 0.0
      %1704 = vadd.xlane.f32.xlu0 %v1703
      %v1705 = vpop.xlane.xlu0 %1704
      %v1706 = vsel %vm1690, %v1567, 0.0
      %1707 = vadd.xlane.f32.xlu0 %v1706
      %v1708 = vpop.xlane.xlu0 %1707
      %v1709 = vsel %vm1690, %v1568, 0.0
      %1710 = vadd.xlane.f32.xlu0 %v1709
      %v1711 = vpop.xlane.xlu0 %1710
      %v1712 = vsel %vm1690, %v1569, 0.0
      %1713 = vadd.xlane.f32.xlu0 %v1712
      %v1714 = vpop.xlane.xlu0 %1713
      %v1715 = vsel %vm1690, %v1570, 0.0
      %1716 = vadd.xlane.f32.xlu0 %v1715
      %v1717 = vpop.xlane.xlu0 %1716
      %v1718 = vsel %vm1690, %v1571, 0.0
      %1719 = vadd.xlane.f32.xlu0 %v1718
      %v1720 = vpop.xlane.xlu0 %1719
      %v1721 = vsel %vm1690, %v1572, 0.0
      %1722 = vadd.xlane.f32.xlu0 %v1721
      %v1723 = vpop.xlane.xlu0 %1722
      %v1724 = vsel %vm1690, %v1573, 0.0
      %1725 = vadd.xlane.f32.xlu0 %v1724
      %v1726 = vpop.xlane.xlu0 %1725
      %v1727 = vsel %vm1690, %v1574, 0.0
      %1728 = vadd.xlane.f32.xlu0 %v1727
      %v1729 = vpop.xlane.xlu0 %1728
      %v1730 = vsel %vm1690, %v1575, 0.0
      %1731 = vadd.xlane.f32.xlu0 %v1730
      %v1732 = vpop.xlane.xlu0 %1731
      %v1733 = vsel %vm1690, %v1576, 0.0
      %1734 = vadd.xlane.f32.xlu0 %v1733
      %v1735 = vpop.xlane.xlu0 %1734
      %v1736 = vsel %vm1690, %v1577, 0.0
      %1737 = vadd.xlane.f32.xlu0 %v1736
      %v1738 = vpop.xlane.xlu0 %1737
      %v1739 = vsel %vm1690, %v1578, 0.0
      %1740 = vadd.xlane.f32.xlu0 %v1739
      %v1741 = vpop.xlane.xlu0 %1740
      %v1742 = vsel %vm1690, %v1579, 0.0
      %1743 = vadd.xlane.f32.xlu0 %v1742
      %v1744 = vpop.xlane.xlu0 %1743
      %v1745 = vsel %vm1690, %v1580, 0.0
      %1746 = vadd.xlane.f32.xlu0 %v1745
      %v1747 = vpop.xlane.xlu0 %1746
      %v1748 = vsel %vm1690, %v1581, 0.0
      %1749 = vadd.xlane.f32.xlu0 %v1748
      %v1750 = vpop.xlane.xlu0 %1749
      %v1751 = vsel %vm1690, %v1582, 0.0
      %1752 = vadd.xlane.f32.xlu0 %v1751
      %v1753 = vpop.xlane.xlu0 %1752
      %v1754 = vsel %vm1690, %v1583, 0.0
      %1755 = vadd.xlane.f32.xlu0 %v1754
      %v1756 = vpop.xlane.xlu0 %1755
      %v1757 = vsel %vm1690, %v1584, 0.0
      %1758 = vadd.xlane.f32.xlu0 %v1757
      %v1759 = vpop.xlane.xlu0 %1758
      %v1760 = vsel %vm1690, %v1585, 0.0
      %1761 = vadd.xlane.f32.xlu0 %v1760
      %v1762 = vpop.xlane.xlu0 %1761
      %v1763 = vsel %vm1690, %v1586, 0.0
      %1764 = vadd.xlane.f32.xlu0 %v1763
      %v1765 = vpop.xlane.xlu0 %1764
      %v1766 = vsel %vm1690, %v1587, 0.0
      %1767 = vadd.xlane.f32.xlu0 %v1766
      %v1768 = vpop.xlane.xlu0 %1767
      %v1769 = vsel %vm1690, %v1588, 0.0
      %1770 = vadd.xlane.f32.xlu0 %v1769
      %v1771 = vpop.xlane.xlu0 %1770
      %v1772 = vsel %vm1690, %v1589, 0.0
      %1773 = vadd.xlane.f32.xlu0 %v1772
      %v1774 = vpop.xlane.xlu0 %1773
      %v1775 = vsel %vm1690, %v1590, 0.0
      %1776 = vadd.xlane.f32.xlu0 %v1775
      %v1777 = vpop.xlane.xlu0 %1776
      %v1778 = vsel %vm1690, %v1591, 0.0
      %1779 = vadd.xlane.f32.xlu0 %v1778
      %v1780 = vpop.xlane.xlu0 %1779
      %v1781 = vsel %vm1690, %v1592, 0.0
      %1782 = vadd.xlane.f32.xlu0 %v1781
      %v1783 = vpop.xlane.xlu0 %1782
      %v1784 = vsel %vm1690, %v1593, 0.0
      %1785 = vadd.xlane.f32.xlu0 %v1784
      %v1786 = vpop.xlane.xlu0 %1785
      %v1787 = vsel %vm1690, %v1594, 0.0
      %1788 = vadd.xlane.f32.xlu0 %v1787
      %v1789 = vpop.xlane.xlu0 %1788
      %v1790 = vsel %vm1690, %v1595, 0.0
      %1791 = vadd.xlane.f32.xlu0 %v1790
      %v1792 = vpop.xlane.xlu0 %1791
      %v1793 = vsel %vm1690, %v1596, 0.0
      %1794 = vadd.xlane.f32.xlu0 %v1793
      %v1795 = vpop.xlane.xlu0 %1794
      %v1796 = vsel %vm1690, %v1597, 0.0
      %1797 = vadd.xlane.f32.xlu0 %v1796
      %v1798 = vpop.xlane.xlu0 %1797
      %v1799 = vsel %vm1690, %v1598, 0.0
      %1800 = vadd.xlane.f32.xlu0 %v1799
      %v1801 = vpop.xlane.xlu0 %1800
      %v1802 = vsel %vm1690, %v1599, 0.0
      %1803 = vadd.xlane.f32.xlu0 %v1802
      %v1804 = vpop.xlane.xlu0 %1803
      %v1805 = vsel %vm1690, %v1600, 0.0
      %1806 = vadd.xlane.f32.xlu0 %v1805
      %v1807 = vpop.xlane.xlu0 %1806
      %v1808 = vsel %vm1690, %v1601, 0.0
      %1809 = vadd.xlane.f32.xlu0 %v1808
      %v1810 = vpop.xlane.xlu0 %1809
      %v1811 = vsel %vm1690, %v1602, 0.0
      %1812 = vadd.xlane.f32.xlu0 %v1811
      %v1813 = vpop.xlane.xlu0 %1812
      %v1814 = vsel %vm1690, %v1603, 0.0
      %1815 = vadd.xlane.f32.xlu0 %v1814
      %v1816 = vpop.xlane.xlu0 %1815
      %v1817 = vsel %vm1690, %v1604, 0.0
      %1818 = vadd.xlane.f32.xlu0 %v1817
      %v1819 = vpop.xlane.xlu0 %1818
      %v1820 = vsel %vm1690, %v1605, 0.0
      %1821 = vadd.xlane.f32.xlu0 %v1820
      %v1822 = vpop.xlane.xlu0 %1821
      %v1823 = vsel %vm1690, %v1606, 0.0
      %1824 = vadd.xlane.f32.xlu0 %v1823
      %v1825 = vpop.xlane.xlu0 %1824
      %v1826 = vsel %vm1690, %v1607, 0.0
      %1827 = vadd.xlane.f32.xlu0 %v1826
      %v1828 = vpop.xlane.xlu0 %1827
      %v1829 = vsel %vm1690, %v1608, 0.0
      %1830 = vadd.xlane.f32.xlu0 %v1829
      %v1831 = vpop.xlane.xlu0 %1830
      %v1832 = vsel %vm1690, %v1609, 0.0
      %1833 = vadd.xlane.f32.xlu0 %v1832
      %v1834 = vpop.xlane.xlu0 %1833
      %v1835 = vsel %vm1690, %v1610, 0.0
      %1836 = vadd.xlane.f32.xlu0 %v1835
      %v1837 = vpop.xlane.xlu0 %1836
      %v1838 = vsel %vm1690, %v1611, 0.0
      %1839 = vadd.xlane.f32.xlu0 %v1838
      %v1840 = vpop.xlane.xlu0 %1839
      %v1841 = vsel %vm1690, %v1612, 0.0
      %1842 = vadd.xlane.f32.xlu0 %v1841
      %v1843 = vpop.xlane.xlu0 %1842
      %v1844 = vsel %vm1690, %v1613, 0.0
      %1845 = vadd.xlane.f32.xlu0 %v1844
      %v1846 = vpop.xlane.xlu0 %1845
      %v1847 = vsel %vm1690, %v1614, 0.0
      %1848 = vadd.xlane.f32.xlu0 %v1847
      %v1849 = vpop.xlane.xlu0 %1848
      %v1850 = vsel %vm1690, %v1615, 0.0
      %1851 = vadd.xlane.f32.xlu0 %v1850
      %v1852 = vpop.xlane.xlu0 %1851
      %v1853 = vsel %vm1690, %v1616, 0.0
      %1854 = vadd.xlane.f32.xlu0 %v1853
      %v1855 = vpop.xlane.xlu0 %1854
      %v1856 = vsel %vm1690, %v1617, 0.0
      %1857 = vadd.xlane.f32.xlu0 %v1856
      %v1858 = vpop.xlane.xlu0 %1857
      %v1859 = vsel %vm1690, %v1618, 0.0
      %1860 = vadd.xlane.f32.xlu0 %v1859
      %v1861 = vpop.xlane.xlu0 %1860
      %v1862 = vsel %vm1690, %v1619, 0.0
      %1863 = vadd.xlane.f32.xlu0 %v1862
      %v1864 = vpop.xlane.xlu0 %1863
      %v1865 = vsel %vm1690, %v1620, 0.0
      %1866 = vadd.xlane.f32.xlu0 %v1865
      %v1867 = vpop.xlane.xlu0 %1866
      %v1868 = vsel %vm1690, %v1621, 0.0
      %1869 = vadd.xlane.f32.xlu0 %v1868
      %v1870 = vpop.xlane.xlu0 %1869
      %v1871 = vsel %vm1690, %v1622, 0.0
      %1872 = vadd.xlane.f32.xlu0 %v1871
      %v1873 = vpop.xlane.xlu0 %1872
      %v1874 = vsel %vm1690, %v1623, 0.0
      %1875 = vadd.xlane.f32.xlu0 %v1874
      %v1876 = vpop.xlane.xlu0 %1875
      %v1877 = vsel %vm1690, %v1624, 0.0
      %1878 = vadd.xlane.f32.xlu0 %v1877
      %v1879 = vpop.xlane.xlu0 %1878
      %v1880 = vsel %vm1690, %v1625, 0.0
      %1881 = vadd.xlane.f32.xlu0 %v1880
      %v1882 = vpop.xlane.xlu0 %1881
      %v1883 = vsel %vm1690, %v1626, 0.0
      %1884 = vadd.xlane.f32.xlu0 %v1883
      %v1885 = vpop.xlane.xlu0 %1884
      %v1886 = vsel %vm1690, %v1627, 0.0
      %1887 = vadd.xlane.f32.xlu0 %v1886
      %v1888 = vpop.xlane.xlu0 %1887
      %v1889 = vsel %vm1690, %v1628, 0.0
      %1890 = vadd.xlane.f32.xlu0 %v1889
      %v1891 = vpop.xlane.xlu0 %1890
      %v1892 = vsel %vm1690, %v1629, 0.0
      %1893 = vadd.xlane.f32.xlu0 %v1892
      %v1894 = vpop.xlane.xlu0 %1893
      %v1895 = vsel %vm1690, %v1630, 0.0
      %1896 = vadd.xlane.f32.xlu0 %v1895
      %v1897 = vpop.xlane.xlu0 %1896
      %v1898 = vsel %vm1690, %v1631, 0.0
      %1899 = vadd.xlane.f32.xlu0 %v1898
      %v1900 = vpop.xlane.xlu0 %1899
      %v1901 = vsel %vm1690, %v1632, 0.0
      %1902 = vadd.xlane.f32.xlu0 %v1901
      %v1903 = vpop.xlane.xlu0 %1902
      %v1904 = vsel %vm1690, %v1633, 0.0
      %1905 = vadd.xlane.f32.xlu0 %v1904
      %v1906 = vpop.xlane.xlu0 %1905
      %v1907 = vsel %vm1690, %v1634, 0.0
      %1908 = vadd.xlane.f32.xlu0 %v1907
      %v1909 = vpop.xlane.xlu0 %1908
      %v1910 = vsel %vm1690, %v1635, 0.0
      %1911 = vadd.xlane.f32.xlu0 %v1910
      %v1912 = vpop.xlane.xlu0 %1911
      %v1913 = vsel %vm1690, %v1636, 0.0
      %1914 = vadd.xlane.f32.xlu0 %v1913
      %v1915 = vpop.xlane.xlu0 %1914
      %v1916 = vsel %vm1690, %v1637, 0.0
      %1917 = vadd.xlane.f32.xlu0 %v1916
      %v1918 = vpop.xlane.xlu0 %1917
      %v1919 = vsel %vm1690, %v1638, 0.0
      %1920 = vadd.xlane.f32.xlu0 %v1919
      %v1921 = vpop.xlane.xlu0 %1920
      %v1922 = vsel %vm1690, %v1639, 0.0
      %1923 = vadd.xlane.f32.xlu0 %v1922
      %v1924 = vpop.xlane.xlu0 %1923
      %v1925 = vsel %vm1690, %v1640, 0.0
      %1926 = vadd.xlane.f32.xlu0 %v1925
      %v1927 = vpop.xlane.xlu0 %1926
      %v1928 = vsel %vm1690, %v1641, 0.0
      %1929 = vadd.xlane.f32.xlu0 %v1928
      %v1930 = vpop.xlane.xlu0 %1929
      %v1931 = vsel %vm1690, %v1642, 0.0
      %1932 = vadd.xlane.f32.xlu0 %v1931
      %v1933 = vpop.xlane.xlu0 %1932
      %v1934 = vsel %vm1690, %v1643, 0.0
      %1935 = vadd.xlane.f32.xlu0 %v1934
      %v1936 = vpop.xlane.xlu0 %1935
      %v1937 = vsel %vm1690, %v1644, 0.0
      %1938 = vadd.xlane.f32.xlu0 %v1937
      %v1939 = vpop.xlane.xlu0 %1938
      %v1940 = vsel %vm1690, %v1645, 0.0
      %1941 = vadd.xlane.f32.xlu0 %v1940
      %v1942 = vpop.xlane.xlu0 %1941
      %v1943 = vsel %vm1690, %v1646, 0.0
      %1944 = vadd.xlane.f32.xlu0 %v1943
      %v1945 = vpop.xlane.xlu0 %1944
      %v1946 = vsel %vm1690, %v1647, 0.0
      %1947 = vadd.xlane.f32.xlu0 %v1946
      %v1948 = vpop.xlane.xlu0 %1947
      %v1949 = vsel %vm1690, %v1648, 0.0
      %1950 = vadd.xlane.f32.xlu0 %v1949
      %v1951 = vpop.xlane.xlu0 %1950
      %v1952 = vsel %vm1690, %v1649, 0.0
      %1953 = vadd.xlane.f32.xlu0 %v1952
      %v1954 = vpop.xlane.xlu0 %1953
      %v1955 = vsel %vm1690, %v1650, 0.0
      %1956 = vadd.xlane.f32.xlu0 %v1955
      %v1957 = vpop.xlane.xlu0 %1956
      %v1958 = vsel %vm1690, %v1651, 0.0
      %1959 = vadd.xlane.f32.xlu0 %v1958
      %v1960 = vpop.xlane.xlu0 %1959
      %v1961 = vsel %vm1690, %v1652, 0.0
      %1962 = vadd.xlane.f32.xlu0 %v1961
      %v1963 = vpop.xlane.xlu0 %1962
      %v1964 = vsel %vm1690, %v1653, 0.0
      %1965 = vadd.xlane.f32.xlu0 %v1964
      %v1966 = vpop.xlane.xlu0 %1965
      %v1967 = vsel %vm1690, %v1654, 0.0
      %1968 = vadd.xlane.f32.xlu0 %v1967
      %v1969 = vpop.xlane.xlu0 %1968
      %v1970 = vsel %vm1690, %v1655, 0.0
      %1971 = vadd.xlane.f32.xlu0 %v1970
      %v1972 = vpop.xlane.xlu0 %1971
      %v1973 = vsel %vm1690, %v1656, 0.0
      %1974 = vadd.xlane.f32.xlu0 %v1973
      %v1975 = vpop.xlane.xlu0 %1974
      %v1976 = vsel %vm1690, %v1657, 0.0
      %1977 = vadd.xlane.f32.xlu0 %v1976
      %v1978 = vpop.xlane.xlu0 %1977
      %v1979 = vsel %vm1690, %v1658, 0.0
      %1980 = vadd.xlane.f32.xlu0 %v1979
      %v1981 = vpop.xlane.xlu0 %1980
      %v1982 = vsel %vm1690, %v1659, 0.0
      %1983 = vadd.xlane.f32.xlu0 %v1982
      %v1984 = vpop.xlane.xlu0 %1983
      %v1985 = vsel %vm1690, %v1660, 0.0
      %1986 = vadd.xlane.f32.xlu0 %v1985
      %v1987 = vpop.xlane.xlu0 %1986
      %v1988 = vsel %vm1690, %v1661, 0.0
      %1989 = vadd.xlane.f32.xlu0 %v1988
      %v1990 = vpop.xlane.xlu0 %1989
      %v1991 = vsel %vm1690, %v1662, 0.0
      %1992 = vadd.xlane.f32.xlu0 %v1991
      %v1993 = vpop.xlane.xlu0 %1992
      %v1994 = vsel %vm1690, %v1663, 0.0
      %1995 = vadd.xlane.f32.xlu0 %v1994
      %v1996 = vpop.xlane.xlu0 %1995
      %v1997 = vsel %vm1690, %v1664, 0.0
      %1998 = vadd.xlane.f32.xlu0 %v1997
      %v1999 = vpop.xlane.xlu0 %1998
      %v2000 = vsel %vm1690, %v1665, 0.0
      %2001 = vadd.xlane.f32.xlu0 %v2000
      %v2002 = vpop.xlane.xlu0 %2001
      %v2003 = vsel %vm1690, %v1666, 0.0
      %2004 = vadd.xlane.f32.xlu0 %v2003
      %v2005 = vpop.xlane.xlu0 %2004
      %v2006 = vsel %vm1690, %v1667, 0.0
      %2007 = vadd.xlane.f32.xlu0 %v2006
      %v2008 = vpop.xlane.xlu0 %2007
      %v2009 = vsel %vm1690, %v1668, 0.0
      %2010 = vadd.xlane.f32.xlu0 %v2009
      %v2011 = vpop.xlane.xlu0 %2010
      %v2012 = vsel %vm1690, %v1669, 0.0
      %2013 = vadd.xlane.f32.xlu0 %v2012
      %v2014 = vpop.xlane.xlu0 %2013
      %v2015 = vsel %vm1690, %v1670, 0.0
      %2016 = vadd.xlane.f32.xlu0 %v2015
      %v2017 = vpop.xlane.xlu0 %2016
      %v2018 = vsel %vm1690, %v1671, 0.0
      %2019 = vadd.xlane.f32.xlu0 %v2018
      %v2020 = vpop.xlane.xlu0 %2019
      %v2021 = vsel %vm1690, %v1672, 0.0
      %2022 = vadd.xlane.f32.xlu0 %v2021
      %v2023 = vpop.xlane.xlu0 %2022
      %v2024 = vsel %vm1690, %v1673, 0.0
      %2025 = vadd.xlane.f32.xlu0 %v2024
      %v2026 = vpop.xlane.xlu0 %2025
      %v2027 = vsel %vm1690, %v1674, 0.0
      %2028 = vadd.xlane.f32.xlu0 %v2027
      %v2029 = vpop.xlane.xlu0 %2028
      %v2030 = vsel %vm1690, %v1675, 0.0
      %2031 = vadd.xlane.f32.xlu0 %v2030
      %v2032 = vpop.xlane.xlu0 %2031
      %v2033 = vsel %vm1690, %v1676, 0.0
      %2034 = vadd.xlane.f32.xlu0 %v2033
      %v2035 = vpop.xlane.xlu0 %2034
      %v2036 = vsel %vm1690, %v1677, 0.0
      %2037 = vadd.xlane.f32.xlu0 %v2036
      %v2038 = vpop.xlane.xlu0 %2037
      %v2039 = vsel %vm1690, %v1678, 0.0
      %2040 = vadd.xlane.f32.xlu0 %v2039
      %v2041 = vpop.xlane.xlu0 %2040
      %v2042 = vsel %vm1690, %v1679, 0.0
      %2043 = vadd.xlane.f32.xlu0 %v2042
      %v2044 = vpop.xlane.xlu0 %2043
      %v2045 = vsel %vm1690, %v1680, 0.0
      %2046 = vadd.xlane.f32.xlu0 %v2045
      %v2047 = vpop.xlane.xlu0 %2046
      %v2048 = vsel %vm1690, %v1681, 0.0
      %2049 = vadd.xlane.f32.xlu0 %v2048
      %v2050 = vpop.xlane.xlu0 %2049
      %v2051 = vsel %vm1690, %v1682, 0.0
      %2052 = vadd.xlane.f32.xlu0 %v2051
      %v2053 = vpop.xlane.xlu0 %2052
      %v2054 = vsel %vm1690, %v1683, 0.0
      %2055 = vadd.xlane.f32.xlu0 %v2054
      %v2056 = vpop.xlane.xlu0 %2055
      %v2057 = vsel %vm1690, %v1684, 0.0
      %2058 = vadd.xlane.f32.xlu0 %v2057
      %v2059 = vpop.xlane.xlu0 %2058
      %v2060 = vsel %vm1690, %v1685, 0.0
      %2061 = vadd.xlane.f32.xlu0 %v2060
      %v2062 = vpop.xlane.xlu0 %2061
      %v2063 = vsel %vm1690, %v1686, 0.0
      %2064 = vadd.xlane.f32.xlu0 %v2063
      %v2065 = vpop.xlane.xlu0 %2064
      %v2066 = vsel %vm1690, %v1687, 0.0
      %2067 = vadd.xlane.f32.xlu0 %v2066
      %v2068 = vpop.xlane.xlu0 %2067
      %v2069 = vsel %vm1690, %v1688, 0.0
      %2070 = vadd.xlane.f32.xlu0 %v2069
      %v2071 = vpop.xlane.xlu0 %2070
      %v2072 = vsel %vm1690, %v1689, 0.0
      %2073 = vadd.xlane.f32.xlu0 %v2072
      %v2074 = vpop.xlane.xlu0 %2073
      %v2075 = vld [vmem:[#allocation2] sm:$0x1]
      %v2077 = vperm.slane %v2075, 0
      %2078 = vset.pattern.permute.xlu0 0
      %2079 = vperm.xlu0 %2078, %v2077
      %v2080 = vpop.permute.xlu0 %2079
      %v2082 = vadd.f32 %v1693, %v2080
      %v2083 = vadd.f32 %v1696, %v2080
      %v2084 = vadd.f32 %v1699, %v2080
      %v2085 = vadd.f32 %v1702, %v2080
      %v2086 = vadd.f32 %v1705, %v2080
      %v2087 = vadd.f32 %v1708, %v2080
      %v2088 = vadd.f32 %v1711, %v2080
      %v2089 = vadd.f32 %v1714, %v2080
      %v2090 = vadd.f32 %v1717, %v2080
      %v2091 = vadd.f32 %v1720, %v2080
      %v2092 = vadd.f32 %v1723, %v2080
      %v2093 = vadd.f32 %v1726, %v2080
      %v2094 = vadd.f32 %v1729, %v2080
      %v2095 = vadd.f32 %v1732, %v2080
      %v2096 = vadd.f32 %v1735, %v2080
      %v2097 = vadd.f32 %v1738, %v2080
      %v2098 = vadd.f32 %v1741, %v2080
      %v2099 = vadd.f32 %v1744, %v2080
      %v2100 = vadd.f32 %v1747, %v2080
      %v2101 = vadd.f32 %v1750, %v2080
      %v2102 = vadd.f32 %v1753, %v2080
      %v2103 = vadd.f32 %v1756, %v2080
      %v2104 = vadd.f32 %v1759, %v2080
      %v2105 = vadd.f32 %v1762, %v2080
      %v2106 = vadd.f32 %v1765, %v2080
      %v2107 = vadd.f32 %v1768, %v2080
      %v2108 = vadd.f32 %v1771, %v2080
      %v2109 = vadd.f32 %v1774, %v2080
      %v2110 = vadd.f32 %v1777, %v2080
      %v2111 = vadd.f32 %v1780, %v2080
      %v2112 = vadd.f32 %v1783, %v2080
      %v2113 = vadd.f32 %v1786, %v2080
      %v2114 = vadd.f32 %v1789, %v2080
      %v2115 = vadd.f32 %v1792, %v2080
      %v2116 = vadd.f32 %v1795, %v2080
      %v2117 = vadd.f32 %v1798, %v2080
      %v2118 = vadd.f32 %v1801, %v2080
      %v2119 = vadd.f32 %v1804, %v2080
      %v2120 = vadd.f32 %v1807, %v2080
      %v2121 = vadd.f32 %v1810, %v2080
      %v2122 = vadd.f32 %v1813, %v2080
      %v2123 = vadd.f32 %v1816, %v2080
      %v2124 = vadd.f32 %v1819, %v2080
      %v2125 = vadd.f32 %v1822, %v2080
      %v2126 = vadd.f32 %v1825, %v2080
      %v2127 = vadd.f32 %v1828, %v2080
      %v2128 = vadd.f32 %v1831, %v2080
      %v2129 = vadd.f32 %v1834, %v2080
      %v2130 = vadd.f32 %v1837, %v2080
      %v2131 = vadd.f32 %v1840, %v2080
      %v2132 = vadd.f32 %v1843, %v2080
      %v2133 = vadd.f32 %v1846, %v2080
      %v2134 = vadd.f32 %v1849, %v2080
      %v2135 = vadd.f32 %v1852, %v2080
      %v2136 = vadd.f32 %v1855, %v2080
      %v2137 = vadd.f32 %v1858, %v2080
      %v2138 = vadd.f32 %v1861, %v2080
      %v2139 = vadd.f32 %v1864, %v2080
      %v2140 = vadd.f32 %v1867, %v2080
      %v2141 = vadd.f32 %v1870, %v2080
      %v2142 = vadd.f32 %v1873, %v2080
      %v2143 = vadd.f32 %v1876, %v2080
      %v2144 = vadd.f32 %v1879, %v2080
      %v2145 = vadd.f32 %v1882, %v2080
      %v2146 = vadd.f32 %v1885, %v2080
      %v2147 = vadd.f32 %v1888, %v2080
      %v2148 = vadd.f32 %v1891, %v2080
      %v2149 = vadd.f32 %v1894, %v2080
      %v2150 = vadd.f32 %v1897, %v2080
      %v2151 = vadd.f32 %v1900, %v2080
      %v2152 = vadd.f32 %v1903, %v2080
      %v2153 = vadd.f32 %v1906, %v2080
      %v2154 = vadd.f32 %v1909, %v2080
      %v2155 = vadd.f32 %v1912, %v2080
      %v2156 = vadd.f32 %v1915, %v2080
      %v2157 = vadd.f32 %v1918, %v2080
      %v2158 = vadd.f32 %v1921, %v2080
      %v2159 = vadd.f32 %v1924, %v2080
      %v2160 = vadd.f32 %v1927, %v2080
      %v2161 = vadd.f32 %v1930, %v2080
      %v2162 = vadd.f32 %v1933, %v2080
      %v2163 = vadd.f32 %v1936, %v2080
      %v2164 = vadd.f32 %v1939, %v2080
      %v2165 = vadd.f32 %v1942, %v2080
      %v2166 = vadd.f32 %v1945, %v2080
      %v2167 = vadd.f32 %v1948, %v2080
      %v2168 = vadd.f32 %v1951, %v2080
      %v2169 = vadd.f32 %v1954, %v2080
      %v2170 = vadd.f32 %v1957, %v2080
      %v2171 = vadd.f32 %v1960, %v2080
      %v2172 = vadd.f32 %v1963, %v2080
      %v2173 = vadd.f32 %v1966, %v2080
      %v2174 = vadd.f32 %v1969, %v2080
      %v2175 = vadd.f32 %v1972, %v2080
      %v2176 = vadd.f32 %v1975, %v2080
      %v2177 = vadd.f32 %v1978, %v2080
      %v2178 = vadd.f32 %v1981, %v2080
      %v2179 = vadd.f32 %v1984, %v2080
      %v2180 = vadd.f32 %v1987, %v2080
      %v2181 = vadd.f32 %v1990, %v2080
      %v2182 = vadd.f32 %v1993, %v2080
      %v2183 = vadd.f32 %v1996, %v2080
      %v2184 = vadd.f32 %v1999, %v2080
      %v2185 = vadd.f32 %v2002, %v2080
      %v2186 = vadd.f32 %v2005, %v2080
      %v2187 = vadd.f32 %v2008, %v2080
      %v2188 = vadd.f32 %v2011, %v2080
      %v2189 = vadd.f32 %v2014, %v2080
      %v2190 = vadd.f32 %v2017, %v2080
      %v2191 = vadd.f32 %v2020, %v2080
      %v2192 = vadd.f32 %v2023, %v2080
      %v2193 = vadd.f32 %v2026, %v2080
      %v2194 = vadd.f32 %v2029, %v2080
      %v2195 = vadd.f32 %v2032, %v2080
      %v2196 = vadd.f32 %v2035, %v2080
      %v2197 = vadd.f32 %v2038, %v2080
      %v2198 = vadd.f32 %v2041, %v2080
      %v2199 = vadd.f32 %v2044, %v2080
      %v2200 = vadd.f32 %v2047, %v2080
      %v2201 = vadd.f32 %v2050, %v2080
      %v2202 = vadd.f32 %v2053, %v2080
      %v2203 = vadd.f32 %v2056, %v2080
      %v2204 = vadd.f32 %v2059, %v2080
      %v2205 = vadd.f32 %v2062, %v2080
      %v2206 = vadd.f32 %v2065, %v2080
      %v2207 = vadd.f32 %v2068, %v2080
      %v2208 = vadd.f32 %v2071, %v2080
      %v2209 = vadd.f32 %v2074, %v2080
      %v2338 = vlaneseq
      %v2339 = vand.u32 %v2338, 127
      %v2340 = vperm.slane %v2082, %v2339
      %v2341 = vadd.s32 %v2339, 4294967288
      %v2342 = vperm.slane %v2083, %v2341
      %vm2343 = vcmask 130112
      %v2344 = vsel %vm2343, %v2342, %v2340
      %v2345 = vadd.s32 %v2339, 4294967280
      %v2346 = vperm.slane %v2084, %v2345
      %vm2347 = vcmask 195712
      %v2348 = vsel %vm2347, %v2346, %v2344
      %v2349 = vadd.s32 %v2339, 4294967272
      %v2350 = vperm.slane %v2085, %v2349
      %vm2351 = vcmask 261312
      %v2352 = vsel %vm2351, %v2350, %v2348
      %v2353 = vadd.s32 %v2339, 4294967264
      %v2354 = vperm.slane %v2086, %v2353
      %vm2355 = vcmask 326912
      %v2356 = vsel %vm2355, %v2354, %v2352
      %v2357 = vadd.s32 %v2339, 4294967256
      %v2358 = vperm.slane %v2087, %v2357
      %vm2359 = vcmask 392512
      %v2360 = vsel %vm2359, %v2358, %v2356
      %v2361 = vadd.s32 %v2339, 4294967248
      %v2362 = vperm.slane %v2088, %v2361
      %vm2363 = vcmask 458112
      %v2364 = vsel %vm2363, %v2362, %v2360
      %v2365 = vadd.s32 %v2339, 4294967240
      %v2366 = vperm.slane %v2089, %v2365
      %vm2367 = vcmask 523712
      %v2368 = vsel %vm2367, %v2366, %v2364
      %v2369 = vadd.s32 %v2339, 4294967232
      %v2370 = vperm.slane %v2090, %v2369
      %vm2371 = vcmask 589312
      %v2372 = vsel %vm2371, %v2370, %v2368
      %v2373 = vadd.s32 %v2339, 4294967224
      %v2374 = vperm.slane %v2091, %v2373
      %vm2375 = vcmask 654912
      %v2376 = vsel %vm2375, %v2374, %v2372
      %v2377 = vadd.s32 %v2339, 4294967216
      %v2378 = vperm.slane %v2092, %v2377
      %vm2379 = vcmask 720512
      %v2380 = vsel %vm2379, %v2378, %v2376
      %v2381 = vadd.s32 %v2339, 4294967208
      %v2382 = vperm.slane %v2093, %v2381
      %vm2383 = vcmask 786112
      %v2384 = vsel %vm2383, %v2382, %v2380
      %v2385 = vadd.s32 %v2339, 4294967200
      %v2386 = vperm.slane %v2094, %v2385
      %vm2387 = vcmask 851712
      %v2388 = vsel %vm2387, %v2386, %v2384
      %v2389 = vadd.s32 %v2339, 4294967192
      %v2390 = vperm.slane %v2095, %v2389
      %vm2391 = vcmask 917312
      %v2392 = vsel %vm2391, %v2390, %v2388
      %v2393 = vadd.s32 %v2339, 4294967184
      %v2394 = vperm.slane %v2096, %v2393
      %vm2395 = vcmask 982912
      %v2396 = vsel %vm2395, %v2394, %v2392
      %v2397 = vadd.s32 %v2339, 4294967176
      %v2398 = vperm.slane %v2097, %v2397
      %vm2399 = vcmask 1048512
      %v2400 = vsel %vm2399, %v2398, %v2396
      %v2401 = vperm.slane %v2098, %v2339
      %v2402 = vperm.slane %v2099, %v2341
      %v2403 = vsel %vm2343, %v2402, %v2401
      %v2404 = vperm.slane %v2100, %v2345
      %v2405 = vsel %vm2347, %v2404, %v2403
      %v2406 = vperm.slane %v2101, %v2349
      %v2407 = vsel %vm2351, %v2406, %v2405
      %v2408 = vperm.slane %v2102, %v2353
      %v2409 = vsel %vm2355, %v2408, %v2407
      %v2410 = vperm.slane %v2103, %v2357
      %v2411 = vsel %vm2359, %v2410, %v2409
      %v2412 = vperm.slane %v2104, %v2361
      %v2413 = vsel %vm2363, %v2412, %v2411
      %v2414 = vperm.slane %v2105, %v2365
      %v2415 = vsel %vm2367, %v2414, %v2413
      %v2416 = vperm.slane %v2106, %v2369
      %v2417 = vsel %vm2371, %v2416, %v2415
      %v2418 = vperm.slane %v2107, %v2373
      %v2419 = vsel %vm2375, %v2418, %v2417
      %v2420 = vperm.slane %v2108, %v2377
      %v2421 = vsel %vm2379, %v2420, %v2419
      %v2422 = vperm.slane %v2109, %v2381
      %v2423 = vsel %vm2383, %v2422, %v2421
      %v2424 = vperm.slane %v2110, %v2385
      %v2425 = vsel %vm2387, %v2424, %v2423
      %v2426 = vperm.slane %v2111, %v2389
      %v2427 = vsel %vm2391, %v2426, %v2425
      %v2428 = vperm.slane %v2112, %v2393
      %v2429 = vsel %vm2395, %v2428, %v2427
      %v2430 = vperm.slane %v2113, %v2397
      %v2431 = vsel %vm2399, %v2430, %v2429
      %v2432 = vperm.slane %v2114, %v2339
      %v2433 = vperm.slane %v2115, %v2341
      %v2434 = vsel %vm2343, %v2433, %v2432
      %v2435 = vperm.slane %v2116, %v2345
      %v2436 = vsel %vm2347, %v2435, %v2434
      %v2437 = vperm.slane %v2117, %v2349
      %v2438 = vsel %vm2351, %v2437, %v2436
      %v2439 = vperm.slane %v2118, %v2353
      %v2440 = vsel %vm2355, %v2439, %v2438
      %v2441 = vperm.slane %v2119, %v2357
      %v2442 = vsel %vm2359, %v2441, %v2440
      %v2443 = vperm.slane %v2120, %v2361
      %v2444 = vsel %vm2363, %v2443, %v2442
      %v2445 = vperm.slane %v2121, %v2365
      %v2446 = vsel %vm2367, %v2445, %v2444
      %v2447 = vperm.slane %v2122, %v2369
      %v2448 = vsel %vm2371, %v2447, %v2446
      %v2449 = vperm.slane %v2123, %v2373
      %v2450 = vsel %vm2375, %v2449, %v2448
      %v2451 = vperm.slane %v2124, %v2377
      %v2452 = vsel %vm2379, %v2451, %v2450
      %v2453 = vperm.slane %v2125, %v2381
      %v2454 = vsel %vm2383, %v2453, %v2452
      %v2455 = vperm.slane %v2126, %v2385
      %v2456 = vsel %vm2387, %v2455, %v2454
      %v2457 = vperm.slane %v2127, %v2389
      %v2458 = vsel %vm2391, %v2457, %v2456
      %v2459 = vperm.slane %v2128, %v2393
      %v2460 = vsel %vm2395, %v2459, %v2458
      %v2461 = vperm.slane %v2129, %v2397
      %v2462 = vsel %vm2399, %v2461, %v2460
      %v2463 = vperm.slane %v2130, %v2339
      %v2464 = vperm.slane %v2131, %v2341
      %v2465 = vsel %vm2343, %v2464, %v2463
      %v2466 = vperm.slane %v2132, %v2345
      %v2467 = vsel %vm2347, %v2466, %v2465
      %v2468 = vperm.slane %v2133, %v2349
      %v2469 = vsel %vm2351, %v2468, %v2467
      %v2470 = vperm.slane %v2134, %v2353
      %v2471 = vsel %vm2355, %v2470, %v2469
      %v2472 = vperm.slane %v2135, %v2357
      %v2473 = vsel %vm2359, %v2472, %v2471
      %v2474 = vperm.slane %v2136, %v2361
      %v2475 = vsel %vm2363, %v2474, %v2473
      %v2476 = vperm.slane %v2137, %v2365
      %v2477 = vsel %vm2367, %v2476, %v2475
      %v2478 = vperm.slane %v2138, %v2369
      %v2479 = vsel %vm2371, %v2478, %v2477
      %v2480 = vperm.slane %v2139, %v2373
      %v2481 = vsel %vm2375, %v2480, %v2479
      %v2482 = vperm.slane %v2140, %v2377
      %v2483 = vsel %vm2379, %v2482, %v2481
      %v2484 = vperm.slane %v2141, %v2381
      %v2485 = vsel %vm2383, %v2484, %v2483
      %v2486 = vperm.slane %v2142, %v2385
      %v2487 = vsel %vm2387, %v2486, %v2485
      %v2488 = vperm.slane %v2143, %v2389
      %v2489 = vsel %vm2391, %v2488, %v2487
      %v2490 = vperm.slane %v2144, %v2393
      %v2491 = vsel %vm2395, %v2490, %v2489
      %v2492 = vperm.slane %v2145, %v2397
      %v2493 = vsel %vm2399, %v2492, %v2491
      %v2494 = vperm.slane %v2146, %v2339
      %v2495 = vperm.slane %v2147, %v2341
      %v2496 = vsel %vm2343, %v2495, %v2494
      %v2497 = vperm.slane %v2148, %v2345
      %v2498 = vsel %vm2347, %v2497, %v2496
      %v2499 = vperm.slane %v2149, %v2349
      %v2500 = vsel %vm2351, %v2499, %v2498
      %v2501 = vperm.slane %v2150, %v2353
      %v2502 = vsel %vm2355, %v2501, %v2500
      %v2503 = vperm.slane %v2151, %v2357
      %v2504 = vsel %vm2359, %v2503, %v2502
      %v2505 = vperm.slane %v2152, %v2361
      %v2506 = vsel %vm2363, %v2505, %v2504
      %v2507 = vperm.slane %v2153, %v2365
      %v2508 = vsel %vm2367, %v2507, %v2506
      %v2509 = vperm.slane %v2154, %v2369
      %v2510 = vsel %vm2371, %v2509, %v2508
      %v2511 = vperm.slane %v2155, %v2373
      %v2512 = vsel %vm2375, %v2511, %v2510
      %v2513 = vperm.slane %v2156, %v2377
      %v2514 = vsel %vm2379, %v2513, %v2512
      %v2515 = vperm.slane %v2157, %v2381
      %v2516 = vsel %vm2383, %v2515, %v2514
      %v2517 = vperm.slane %v2158, %v2385
      %v2518 = vsel %vm2387, %v2517, %v2516
      %v2519 = vperm.slane %v2159, %v2389
      %v2520 = vsel %vm2391, %v2519, %v2518
      %v2521 = vperm.slane %v2160, %v2393
      %v2522 = vsel %vm2395, %v2521, %v2520
      %v2523 = vperm.slane %v2161, %v2397
      %v2524 = vsel %vm2399, %v2523, %v2522
      %v2525 = vperm.slane %v2162, %v2339
      %v2526 = vperm.slane %v2163, %v2341
      %v2527 = vsel %vm2343, %v2526, %v2525
      %v2528 = vperm.slane %v2164, %v2345
      %v2529 = vsel %vm2347, %v2528, %v2527
      %v2530 = vperm.slane %v2165, %v2349
      %v2531 = vsel %vm2351, %v2530, %v2529
      %v2532 = vperm.slane %v2166, %v2353
      %v2533 = vsel %vm2355, %v2532, %v2531
      %v2534 = vperm.slane %v2167, %v2357
      %v2535 = vsel %vm2359, %v2534, %v2533
      %v2536 = vperm.slane %v2168, %v2361
      %v2537 = vsel %vm2363, %v2536, %v2535
      %v2538 = vperm.slane %v2169, %v2365
      %v2539 = vsel %vm2367, %v2538, %v2537
      %v2540 = vperm.slane %v2170, %v2369
      %v2541 = vsel %vm2371, %v2540, %v2539
      %v2542 = vperm.slane %v2171, %v2373
      %v2543 = vsel %vm2375, %v2542, %v2541
      %v2544 = vperm.slane %v2172, %v2377
      %v2545 = vsel %vm2379, %v2544, %v2543
      %v2546 = vperm.slane %v2173, %v2381
      %v2547 = vsel %vm2383, %v2546, %v2545
      %v2548 = vperm.slane %v2174, %v2385
      %v2549 = vsel %vm2387, %v2548, %v2547
      %v2550 = vperm.slane %v2175, %v2389
      %v2551 = vsel %vm2391, %v2550, %v2549
      %v2552 = vperm.slane %v2176, %v2393
      %v2553 = vsel %vm2395, %v2552, %v2551
      %v2554 = vperm.slane %v2177, %v2397
      %v2555 = vsel %vm2399, %v2554, %v2553
      %v2556 = vperm.slane %v2178, %v2339
      %v2557 = vperm.slane %v2179, %v2341
      %v2558 = vsel %vm2343, %v2557, %v2556
      %v2559 = vperm.slane %v2180, %v2345
      %v2560 = vsel %vm2347, %v2559, %v2558
      %v2561 = vperm.slane %v2181, %v2349
      %v2562 = vsel %vm2351, %v2561, %v2560
      %v2563 = vperm.slane %v2182, %v2353
      %v2564 = vsel %vm2355, %v2563, %v2562
      %v2565 = vperm.slane %v2183, %v2357
      %v2566 = vsel %vm2359, %v2565, %v2564
      %v2567 = vperm.slane %v2184, %v2361
      %v2568 = vsel %vm2363, %v2567, %v2566
      %v2569 = vperm.slane %v2185, %v2365
      %v2570 = vsel %vm2367, %v2569, %v2568
      %v2571 = vperm.slane %v2186, %v2369
      %v2572 = vsel %vm2371, %v2571, %v2570
      %v2573 = vperm.slane %v2187, %v2373
      %v2574 = vsel %vm2375, %v2573, %v2572
      %v2575 = vperm.slane %v2188, %v2377
      %v2576 = vsel %vm2379, %v2575, %v2574
      %v2577 = vperm.slane %v2189, %v2381
      %v2578 = vsel %vm2383, %v2577, %v2576
      %v2579 = vperm.slane %v2190, %v2385
      %v2580 = vsel %vm2387, %v2579, %v2578
      %v2581 = vperm.slane %v2191, %v2389
      %v2582 = vsel %vm2391, %v2581, %v2580
      %v2583 = vperm.slane %v2192, %v2393
      %v2584 = vsel %vm2395, %v2583, %v2582
      %v2585 = vperm.slane %v2193, %v2397
      %v2586 = vsel %vm2399, %v2585, %v2584
      %v2587 = vperm.slane %v2194, %v2339
      %v2588 = vperm.slane %v2195, %v2341
      %v2589 = vsel %vm2343, %v2588, %v2587
      %v2590 = vperm.slane %v2196, %v2345
      %v2591 = vsel %vm2347, %v2590, %v2589
      %v2592 = vperm.slane %v2197, %v2349
      %v2593 = vsel %vm2351, %v2592, %v2591
      %v2594 = vperm.slane %v2198, %v2353
      %v2595 = vsel %vm2355, %v2594, %v2593
      %v2596 = vperm.slane %v2199, %v2357
      %v2597 = vsel %vm2359, %v2596, %v2595
      %v2598 = vperm.slane %v2200, %v2361
      %v2599 = vsel %vm2363, %v2598, %v2597
      %v2600 = vperm.slane %v2201, %v2365
      %v2601 = vsel %vm2367, %v2600, %v2599
      %v2602 = vperm.slane %v2202, %v2369
      %v2603 = vsel %vm2371, %v2602, %v2601
      %v2604 = vperm.slane %v2203, %v2373
      %v2605 = vsel %vm2375, %v2604, %v2603
      %v2606 = vperm.slane %v2204, %v2377
      %v2607 = vsel %vm2379, %v2606, %v2605
      %v2608 = vperm.slane %v2205, %v2381
      %v2609 = vsel %vm2383, %v2608, %v2607
      %v2610 = vperm.slane %v2206, %v2385
      %v2611 = vsel %vm2387, %v2610, %v2609
      %v2612 = vperm.slane %v2207, %v2389
      %v2613 = vsel %vm2391, %v2612, %v2611
      %v2614 = vperm.slane %v2208, %v2393
      %v2615 = vsel %vm2395, %v2614, %v2613
      %v2616 = vperm.slane %v2209, %v2397
      %v2617 = vsel %vm2399, %v2616, %v2615
      %vm2618 = vcmask 1041409
      %v2619 = vsel %vm2618, %v2431, %v2400
      %vm2620 = vcmask 1042434
      %v2621 = vsel %vm2620, %v2462, %v2619
      %vm2622 = vcmask 1043459
      %v2623 = vsel %vm2622, %v2493, %v2621
      %vm2624 = vcmask 1044484
      %v2625 = vsel %vm2624, %v2524, %v2623
      %vm2626 = vcmask 1045509
      %v2627 = vsel %vm2626, %v2555, %v2625
      %vm2628 = vcmask 1046534
      %v2629 = vsel %vm2628, %v2586, %v2627
      %vm2630 = vcmask 1047559
      %v2631 = vsel %vm2630, %v2617, %v2629
      %2633 = vst [vmem:[%s260] sm:$0xff] %v2631
      %v2634 = vsub.f32 0.0, %v2082
      %v2635 = vsub.f32 0.0, %v2083
      %v2636 = vsub.f32 0.0, %v2084
      %v2637 = vsub.f32 0.0, %v2085
      %v2638 = vsub.f32 0.0, %v2086
      %v2639 = vsub.f32 0.0, %v2087
      %v2640 = vsub.f32 0.0, %v2088
      %v2641 = vsub.f32 0.0, %v2089
      %v2642 = vsub.f32 0.0, %v2090
      %v2643 = vsub.f32 0.0, %v2091
      %v2644 = vsub.f32 0.0, %v2092
      %v2645 = vsub.f32 0.0, %v2093
      %v2646 = vsub.f32 0.0, %v2094
      %v2647 = vsub.f32 0.0, %v2095
      %v2648 = vsub.f32 0.0, %v2096
      %v2649 = vsub.f32 0.0, %v2097
      %v2650 = vsub.f32 0.0, %v2098
      %v2651 = vsub.f32 0.0, %v2099
      %v2652 = vsub.f32 0.0, %v2100
      %v2653 = vsub.f32 0.0, %v2101
      %v2654 = vsub.f32 0.0, %v2102
      %v2655 = vsub.f32 0.0, %v2103
      %v2656 = vsub.f32 0.0, %v2104
      %v2657 = vsub.f32 0.0, %v2105
      %v2658 = vsub.f32 0.0, %v2106
      %v2659 = vsub.f32 0.0, %v2107
      %v2660 = vsub.f32 0.0, %v2108
      %v2661 = vsub.f32 0.0, %v2109
      %v2662 = vsub.f32 0.0, %v2110
      %v2663 = vsub.f32 0.0, %v2111
      %v2664 = vsub.f32 0.0, %v2112
      %v2665 = vsub.f32 0.0, %v2113
      %v2666 = vsub.f32 0.0, %v2114
      %v2667 = vsub.f32 0.0, %v2115
      %v2668 = vsub.f32 0.0, %v2116
      %v2669 = vsub.f32 0.0, %v2117
      %v2670 = vsub.f32 0.0, %v2118
      %v2671 = vsub.f32 0.0, %v2119
      %v2672 = vsub.f32 0.0, %v2120
      %v2673 = vsub.f32 0.0, %v2121
      %v2674 = vsub.f32 0.0, %v2122
      %v2675 = vsub.f32 0.0, %v2123
      %v2676 = vsub.f32 0.0, %v2124
      %v2677 = vsub.f32 0.0, %v2125
      %v2678 = vsub.f32 0.0, %v2126
      %v2679 = vsub.f32 0.0, %v2127
      %v2680 = vsub.f32 0.0, %v2128
      %v2681 = vsub.f32 0.0, %v2129
      %v2682 = vsub.f32 0.0, %v2130
      %v2683 = vsub.f32 0.0, %v2131
      %v2684 = vsub.f32 0.0, %v2132
      %v2685 = vsub.f32 0.0, %v2133
      %v2686 = vsub.f32 0.0, %v2134
      %v2687 = vsub.f32 0.0, %v2135
      %v2688 = vsub.f32 0.0, %v2136
      %v2689 = vsub.f32 0.0, %v2137
      %v2690 = vsub.f32 0.0, %v2138
      %v2691 = vsub.f32 0.0, %v2139
      %v2692 = vsub.f32 0.0, %v2140
      %v2693 = vsub.f32 0.0, %v2141
      %v2694 = vsub.f32 0.0, %v2142
      %v2695 = vsub.f32 0.0, %v2143
      %v2696 = vsub.f32 0.0, %v2144
      %v2697 = vsub.f32 0.0, %v2145
      %v2698 = vsub.f32 0.0, %v2146
      %v2699 = vsub.f32 0.0, %v2147
      %v2700 = vsub.f32 0.0, %v2148
      %v2701 = vsub.f32 0.0, %v2149
      %v2702 = vsub.f32 0.0, %v2150
      %v2703 = vsub.f32 0.0, %v2151
      %v2704 = vsub.f32 0.0, %v2152
      %v2705 = vsub.f32 0.0, %v2153
      %v2706 = vsub.f32 0.0, %v2154
      %v2707 = vsub.f32 0.0, %v2155
      %v2708 = vsub.f32 0.0, %v2156
      %v2709 = vsub.f32 0.0, %v2157
      %v2710 = vsub.f32 0.0, %v2158
      %v2711 = vsub.f32 0.0, %v2159
      %v2712 = vsub.f32 0.0, %v2160
      %v2713 = vsub.f32 0.0, %v2161
      %v2714 = vsub.f32 0.0, %v2162
      %v2715 = vsub.f32 0.0, %v2163
      %v2716 = vsub.f32 0.0, %v2164
      %v2717 = vsub.f32 0.0, %v2165
      %v2718 = vsub.f32 0.0, %v2166
      %v2719 = vsub.f32 0.0, %v2167
      %v2720 = vsub.f32 0.0, %v2168
      %v2721 = vsub.f32 0.0, %v2169
      %v2722 = vsub.f32 0.0, %v2170
      %v2723 = vsub.f32 0.0, %v2171
      %v2724 = vsub.f32 0.0, %v2172
      %v2725 = vsub.f32 0.0, %v2173
      %v2726 = vsub.f32 0.0, %v2174
      %v2727 = vsub.f32 0.0, %v2175
      %v2728 = vsub.f32 0.0, %v2176
      %v2729 = vsub.f32 0.0, %v2177
      %v2730 = vsub.f32 0.0, %v2178
      %v2731 = vsub.f32 0.0, %v2179
      %v2732 = vsub.f32 0.0, %v2180
      %v2733 = vsub.f32 0.0, %v2181
      %v2734 = vsub.f32 0.0, %v2182
      %v2735 = vsub.f32 0.0, %v2183
      %v2736 = vsub.f32 0.0, %v2184
      %v2737 = vsub.f32 0.0, %v2185
      %v2738 = vsub.f32 0.0, %v2186
      %v2739 = vsub.f32 0.0, %v2187
      %v2740 = vsub.f32 0.0, %v2188
      %v2741 = vsub.f32 0.0, %v2189
      %v2742 = vsub.f32 0.0, %v2190
      %v2743 = vsub.f32 0.0, %v2191
      %v2744 = vsub.f32 0.0, %v2192
      %v2745 = vsub.f32 0.0, %v2193
      %v2746 = vsub.f32 0.0, %v2194
      %v2747 = vsub.f32 0.0, %v2195
      %v2748 = vsub.f32 0.0, %v2196
      %v2749 = vsub.f32 0.0, %v2197
      %v2750 = vsub.f32 0.0, %v2198
      %v2751 = vsub.f32 0.0, %v2199
      %v2752 = vsub.f32 0.0, %v2200
      %v2753 = vsub.f32 0.0, %v2201
      %v2754 = vsub.f32 0.0, %v2202
      %v2755 = vsub.f32 0.0, %v2203
      %v2756 = vsub.f32 0.0, %v2204
      %v2757 = vsub.f32 0.0, %v2205
      %v2758 = vsub.f32 0.0, %v2206
      %v2759 = vsub.f32 0.0, %v2207
      %v2760 = vsub.f32 0.0, %v2208
      %v2761 = vsub.f32 0.0, %v2209
      %v2762 = vmul.f32 %v2634, 1.442695
      %v2763 = vpow.pop %v2762
      %v2764 = vmul.f32 %v2635, 1.442695
      %v2765 = vpow.pop %v2764
      %v2766 = vmul.f32 %v2636, 1.442695
      %v2767 = vpow.pop %v2766
      %v2768 = vmul.f32 %v2637, 1.442695
      %v2769 = vpow.pop %v2768
      %v2770 = vmul.f32 %v2638, 1.442695
      %v2771 = vpow.pop %v2770
      %v2772 = vmul.f32 %v2639, 1.442695
      %v2773 = vpow.pop %v2772
      %v2774 = vmul.f32 %v2640, 1.442695
      %v2775 = vpow.pop %v2774
      %v2776 = vmul.f32 %v2641, 1.442695
      %v2777 = vpow.pop %v2776
      %v2778 = vmul.f32 %v2642, 1.442695
      %v2779 = vpow.pop %v2778
      %v2780 = vmul.f32 %v2643, 1.442695
      %v2781 = vpow.pop %v2780
      %v2782 = vmul.f32 %v2644, 1.442695
      %v2783 = vpow.pop %v2782
      %v2784 = vmul.f32 %v2645, 1.442695
      %v2785 = vpow.pop %v2784
      %v2786 = vmul.f32 %v2646, 1.442695
      %v2787 = vpow.pop %v2786
      %v2788 = vmul.f32 %v2647, 1.442695
      %v2789 = vpow.pop %v2788
      %v2790 = vmul.f32 %v2648, 1.442695
      %v2791 = vpow.pop %v2790
      %v2792 = vmul.f32 %v2649, 1.442695
      %v2793 = vpow.pop %v2792
      %v2794 = vmul.f32 %v2650, 1.442695
      %v2795 = vpow.pop %v2794
      %v2796 = vmul.f32 %v2651, 1.442695
      %v2797 = vpow.pop %v2796
      %v2798 = vmul.f32 %v2652, 1.442695
      %v2799 = vpow.pop %v2798
      %v2800 = vmul.f32 %v2653, 1.442695
      %v2801 = vpow.pop %v2800
      %v2802 = vmul.f32 %v2654, 1.442695
      %v2803 = vpow.pop %v2802
      %v2804 = vmul.f32 %v2655, 1.442695
      %v2805 = vpow.pop %v2804
      %v2806 = vmul.f32 %v2656, 1.442695
      %v2807 = vpow.pop %v2806
      %v2808 = vmul.f32 %v2657, 1.442695
      %v2809 = vpow.pop %v2808
      %v2810 = vmul.f32 %v2658, 1.442695
      %v2811 = vpow.pop %v2810
      %v2812 = vmul.f32 %v2659, 1.442695
      %v2813 = vpow.pop %v2812
      %v2814 = vmul.f32 %v2660, 1.442695
      %v2815 = vpow.pop %v2814
      %v2816 = vmul.f32 %v2661, 1.442695
      %v2817 = vpow.pop %v2816
      %v2818 = vmul.f32 %v2662, 1.442695
      %v2819 = vpow.pop %v2818
      %v2820 = vmul.f32 %v2663, 1.442695
      %v2821 = vpow.pop %v2820
      %v2822 = vmul.f32 %v2664, 1.442695
      %v2823 = vpow.pop %v2822
      %v2824 = vmul.f32 %v2665, 1.442695
      %v2825 = vpow.pop %v2824
      %v2826 = vmul.f32 %v2666, 1.442695
      %v2827 = vpow.pop %v2826
      %v2828 = vmul.f32 %v2667, 1.442695
      %v2829 = vpow.pop %v2828
      %v2830 = vmul.f32 %v2668, 1.442695
      %v2831 = vpow.pop %v2830
      %v2832 = vmul.f32 %v2669, 1.442695
      %v2833 = vpow.pop %v2832
      %v2834 = vmul.f32 %v2670, 1.442695
      %v2835 = vpow.pop %v2834
      %v2836 = vmul.f32 %v2671, 1.442695
      %v2837 = vpow.pop %v2836
      %v2838 = vmul.f32 %v2672, 1.442695
      %v2839 = vpow.pop %v2838
      %v2840 = vmul.f32 %v2673, 1.442695
      %v2841 = vpow.pop %v2840
      %v2842 = vmul.f32 %v2674, 1.442695
      %v2843 = vpow.pop %v2842
      %v2844 = vmul.f32 %v2675, 1.442695
      %v2845 = vpow.pop %v2844
      %v2846 = vmul.f32 %v2676, 1.442695
      %v2847 = vpow.pop %v2846
      %v2848 = vmul.f32 %v2677, 1.442695
      %v2849 = vpow.pop %v2848
      %v2850 = vmul.f32 %v2678, 1.442695
      %v2851 = vpow.pop %v2850
      %v2852 = vmul.f32 %v2679, 1.442695
      %v2853 = vpow.pop %v2852
      %v2854 = vmul.f32 %v2680, 1.442695
      %v2855 = vpow.pop %v2854
      %v2856 = vmul.f32 %v2681, 1.442695
      %v2857 = vpow.pop %v2856
      %v2858 = vmul.f32 %v2682, 1.442695
      %v2859 = vpow.pop %v2858
      %v2860 = vmul.f32 %v2683, 1.442695
      %v2861 = vpow.pop %v2860
      %v2862 = vmul.f32 %v2684, 1.442695
      %v2863 = vpow.pop %v2862
      %v2864 = vmul.f32 %v2685, 1.442695
      %v2865 = vpow.pop %v2864
      %v2866 = vmul.f32 %v2686, 1.442695
      %v2867 = vpow.pop %v2866
      %v2868 = vmul.f32 %v2687, 1.442695
      %v2869 = vpow.pop %v2868
      %v2870 = vmul.f32 %v2688, 1.442695
      %v2871 = vpow.pop %v2870
      %v2872 = vmul.f32 %v2689, 1.442695
      %v2873 = vpow.pop %v2872
      %v2874 = vmul.f32 %v2690, 1.442695
      %v2875 = vpow.pop %v2874
      %v2876 = vmul.f32 %v2691, 1.442695
      %v2877 = vpow.pop %v2876
      %v2878 = vmul.f32 %v2692, 1.442695
      %v2879 = vpow.pop %v2878
      %v2880 = vmul.f32 %v2693, 1.442695
      %v2881 = vpow.pop %v2880
      %v2882 = vmul.f32 %v2694, 1.442695
      %v2883 = vpow.pop %v2882
      %v2884 = vmul.f32 %v2695, 1.442695
      %v2885 = vpow.pop %v2884
      %v2886 = vmul.f32 %v2696, 1.442695
      %v2887 = vpow.pop %v2886
      %v2888 = vmul.f32 %v2697, 1.442695
      %v2889 = vpow.pop %v2888
      %v2890 = vmul.f32 %v2698, 1.442695
      %v2891 = vpow.pop %v2890
      %v2892 = vmul.f32 %v2699, 1.442695
      %v2893 = vpow.pop %v2892
      %v2894 = vmul.f32 %v2700, 1.442695
      %v2895 = vpow.pop %v2894
      %v2896 = vmul.f32 %v2701, 1.442695
      %v2897 = vpow.pop %v2896
      %v2898 = vmul.f32 %v2702, 1.442695
      %v2899 = vpow.pop %v2898
      %v2900 = vmul.f32 %v2703, 1.442695
      %v2901 = vpow.pop %v2900
      %v2902 = vmul.f32 %v2704, 1.442695
      %v2903 = vpow.pop %v2902
      %v2904 = vmul.f32 %v2705, 1.442695
      %v2905 = vpow.pop %v2904
      %v2906 = vmul.f32 %v2706, 1.442695
      %v2907 = vpow.pop %v2906
      %v2908 = vmul.f32 %v2707, 1.442695
      %v2909 = vpow.pop %v2908
      %v2910 = vmul.f32 %v2708, 1.442695
      %v2911 = vpow.pop %v2910
      %v2912 = vmul.f32 %v2709, 1.442695
      %v2913 = vpow.pop %v2912
      %v2914 = vmul.f32 %v2710, 1.442695
      %v2915 = vpow.pop %v2914
      %v2916 = vmul.f32 %v2711, 1.442695
      %v2917 = vpow.pop %v2916
      %v2918 = vmul.f32 %v2712, 1.442695
      %v2919 = vpow.pop %v2918
      %v2920 = vmul.f32 %v2713, 1.442695
      %v2921 = vpow.pop %v2920
      %v2922 = vmul.f32 %v2714, 1.442695
      %v2923 = vpow.pop %v2922
      %v2924 = vmul.f32 %v2715, 1.442695
      %v2925 = vpow.pop %v2924
      %v2926 = vmul.f32 %v2716, 1.442695
      %v2927 = vpow.pop %v2926
      %v2928 = vmul.f32 %v2717, 1.442695
      %v2929 = vpow.pop %v2928
      %v2930 = vmul.f32 %v2718, 1.442695
      %v2931 = vpow.pop %v2930
      %v2932 = vmul.f32 %v2719, 1.442695
      %v2933 = vpow.pop %v2932
      %v2934 = vmul.f32 %v2720, 1.442695
      %v2935 = vpow.pop %v2934
      %v2936 = vmul.f32 %v2721, 1.442695
      %v2937 = vpow.pop %v2936
      %v2938 = vmul.f32 %v2722, 1.442695
      %v2939 = vpow.pop %v2938
      %v2940 = vmul.f32 %v2723, 1.442695
      %v2941 = vpow.pop %v2940
      %v2942 = vmul.f32 %v2724, 1.442695
      %v2943 = vpow.pop %v2942
      %v2944 = vmul.f32 %v2725, 1.442695
      %v2945 = vpow.pop %v2944
      %v2946 = vmul.f32 %v2726, 1.442695
      %v2947 = vpow.pop %v2946
      %v2948 = vmul.f32 %v2727, 1.442695
      %v2949 = vpow.pop %v2948
      %v2950 = vmul.f32 %v2728, 1.442695
      %v2951 = vpow.pop %v2950
      %v2952 = vmul.f32 %v2729, 1.442695
      %v2953 = vpow.pop %v2952
      %v2954 = vmul.f32 %v2730, 1.442695
      %v2955 = vpow.pop %v2954
      %v2956 = vmul.f32 %v2731, 1.442695
      %v2957 = vpow.pop %v2956
      %v2958 = vmul.f32 %v2732, 1.442695
      %v2959 = vpow.pop %v2958
      %v2960 = vmul.f32 %v2733, 1.442695
      %v2961 = vpow.pop %v2960
      %v2962 = vmul.f32 %v2734, 1.442695
      %v2963 = vpow.pop %v2962
      %v2964 = vmul.f32 %v2735, 1.442695
      %v2965 = vpow.pop %v2964
      %v2966 = vmul.f32 %v2736, 1.442695
      %v2967 = vpow.pop %v2966
      %v2968 = vmul.f32 %v2737, 1.442695
      %v2969 = vpow.pop %v2968
      %v2970 = vmul.f32 %v2738, 1.442695
      %v2971 = vpow.pop %v2970
      %v2972 = vmul.f32 %v2739, 1.442695
      %v2973 = vpow.pop %v2972
      %v2974 = vmul.f32 %v2740, 1.442695
      %v2975 = vpow.pop %v2974
      %v2976 = vmul.f32 %v2741, 1.442695
      %v2977 = vpow.pop %v2976
      %v2978 = vmul.f32 %v2742, 1.442695
      %v2979 = vpow.pop %v2978
      %v2980 = vmul.f32 %v2743, 1.442695
      %v2981 = vpow.pop %v2980
      %v2982 = vmul.f32 %v2744, 1.442695
      %v2983 = vpow.pop %v2982
      %v2984 = vmul.f32 %v2745, 1.442695
      %v2985 = vpow.pop %v2984
      %v2986 = vmul.f32 %v2746, 1.442695
      %v2987 = vpow.pop %v2986
      %v2988 = vmul.f32 %v2747, 1.442695
      %v2989 = vpow.pop %v2988
      %v2990 = vmul.f32 %v2748, 1.442695
      %v2991 = vpow.pop %v2990
      %v2992 = vmul.f32 %v2749, 1.442695
      %v2993 = vpow.pop %v2992
      %v2994 = vmul.f32 %v2750, 1.442695
      %v2995 = vpow.pop %v2994
      %v2996 = vmul.f32 %v2751, 1.442695
      %v2997 = vpow.pop %v2996
      %v2998 = vmul.f32 %v2752, 1.442695
      %v2999 = vpow.pop %v2998
      %v3000 = vmul.f32 %v2753, 1.442695
      %v3001 = vpow.pop %v3000
      %v3002 = vmul.f32 %v2754, 1.442695
      %v3003 = vpow.pop %v3002
      %v3004 = vmul.f32 %v2755, 1.442695
      %v3005 = vpow.pop %v3004
      %v3006 = vmul.f32 %v2756, 1.442695
      %v3007 = vpow.pop %v3006
      %v3008 = vmul.f32 %v2757, 1.442695
      %v3009 = vpow.pop %v3008
      %v3010 = vmul.f32 %v2758, 1.442695
      %v3011 = vpow.pop %v3010
      %v3012 = vmul.f32 %v2759, 1.442695
      %v3013 = vpow.pop %v3012
      %v3014 = vmul.f32 %v2760, 1.442695
      %v3015 = vpow.pop %v3014
      %v3016 = vmul.f32 %v2761, 1.442695
      %v3017 = vpow.pop %v3016
      %v3018 = vadd.f32 %v2763, 1.0
      %v3019 = vadd.f32 %v2765, 1.0
      %v3020 = vadd.f32 %v2767, 1.0
      %v3021 = vadd.f32 %v2769, 1.0
      %v3022 = vadd.f32 %v2771, 1.0
      %v3023 = vadd.f32 %v2773, 1.0
      %v3024 = vadd.f32 %v2775, 1.0
      %v3025 = vadd.f32 %v2777, 1.0
      %v3026 = vadd.f32 %v2779, 1.0
      %v3027 = vadd.f32 %v2781, 1.0
      %v3028 = vadd.f32 %v2783, 1.0
      %v3029 = vadd.f32 %v2785, 1.0
      %v3030 = vadd.f32 %v2787, 1.0
      %v3031 = vadd.f32 %v2789, 1.0
      %v3032 = vadd.f32 %v2791, 1.0
      %v3033 = vadd.f32 %v2793, 1.0
      %v3034 = vadd.f32 %v2795, 1.0
      %v3035 = vadd.f32 %v2797, 1.0
      %v3036 = vadd.f32 %v2799, 1.0
      %v3037 = vadd.f32 %v2801, 1.0
      %v3038 = vadd.f32 %v2803, 1.0
      %v3039 = vadd.f32 %v2805, 1.0
      %v3040 = vadd.f32 %v2807, 1.0
      %v3041 = vadd.f32 %v2809, 1.0
      %v3042 = vadd.f32 %v2811, 1.0
      %v3043 = vadd.f32 %v2813, 1.0
      %v3044 = vadd.f32 %v2815, 1.0
      %v3045 = vadd.f32 %v2817, 1.0
      %v3046 = vadd.f32 %v2819, 1.0
      %v3047 = vadd.f32 %v2821, 1.0
      %v3048 = vadd.f32 %v2823, 1.0
      %v3049 = vadd.f32 %v2825, 1.0
      %v3050 = vadd.f32 %v2827, 1.0
      %v3051 = vadd.f32 %v2829, 1.0
      %v3052 = vadd.f32 %v2831, 1.0
      %v3053 = vadd.f32 %v2833, 1.0
      %v3054 = vadd.f32 %v2835, 1.0
      %v3055 = vadd.f32 %v2837, 1.0
      %v3056 = vadd.f32 %v2839, 1.0
      %v3057 = vadd.f32 %v2841, 1.0
      %v3058 = vadd.f32 %v2843, 1.0
      %v3059 = vadd.f32 %v2845, 1.0
      %v3060 = vadd.f32 %v2847, 1.0
      %v3061 = vadd.f32 %v2849, 1.0
      %v3062 = vadd.f32 %v2851, 1.0
      %v3063 = vadd.f32 %v2853, 1.0
      %v3064 = vadd.f32 %v2855, 1.0
      %v3065 = vadd.f32 %v2857, 1.0
      %v3066 = vadd.f32 %v2859, 1.0
      %v3067 = vadd.f32 %v2861, 1.0
      %v3068 = vadd.f32 %v2863, 1.0
      %v3069 = vadd.f32 %v2865, 1.0
      %v3070 = vadd.f32 %v2867, 1.0
      %v3071 = vadd.f32 %v2869, 1.0
      %v3072 = vadd.f32 %v2871, 1.0
      %v3073 = vadd.f32 %v2873, 1.0
      %v3074 = vadd.f32 %v2875, 1.0
      %v3075 = vadd.f32 %v2877, 1.0
      %v3076 = vadd.f32 %v2879, 1.0
      %v3077 = vadd.f32 %v2881, 1.0
      %v3078 = vadd.f32 %v2883, 1.0
      %v3079 = vadd.f32 %v2885, 1.0
      %v3080 = vadd.f32 %v2887, 1.0
      %v3081 = vadd.f32 %v2889, 1.0
      %v3082 = vadd.f32 %v2891, 1.0
      %v3083 = vadd.f32 %v2893, 1.0
      %v3084 = vadd.f32 %v2895, 1.0
      %v3085 = vadd.f32 %v2897, 1.0
      %v3086 = vadd.f32 %v2899, 1.0
      %v3087 = vadd.f32 %v2901, 1.0
      %v3088 = vadd.f32 %v2903, 1.0
      %v3089 = vadd.f32 %v2905, 1.0
      %v3090 = vadd.f32 %v2907, 1.0
      %v3091 = vadd.f32 %v2909, 1.0
      %v3092 = vadd.f32 %v2911, 1.0
      %v3093 = vadd.f32 %v2913, 1.0
      %v3094 = vadd.f32 %v2915, 1.0
      %v3095 = vadd.f32 %v2917, 1.0
      %v3096 = vadd.f32 %v2919, 1.0
      %v3097 = vadd.f32 %v2921, 1.0
      %v3098 = vadd.f32 %v2923, 1.0
      %v3099 = vadd.f32 %v2925, 1.0
      %v3100 = vadd.f32 %v2927, 1.0
      %v3101 = vadd.f32 %v2929, 1.0
      %v3102 = vadd.f32 %v2931, 1.0
      %v3103 = vadd.f32 %v2933, 1.0
      %v3104 = vadd.f32 %v2935, 1.0
      %v3105 = vadd.f32 %v2937, 1.0
      %v3106 = vadd.f32 %v2939, 1.0
      %v3107 = vadd.f32 %v2941, 1.0
      %v3108 = vadd.f32 %v2943, 1.0
      %v3109 = vadd.f32 %v2945, 1.0
      %v3110 = vadd.f32 %v2947, 1.0
      %v3111 = vadd.f32 %v2949, 1.0
      %v3112 = vadd.f32 %v2951, 1.0
      %v3113 = vadd.f32 %v2953, 1.0
      %v3114 = vadd.f32 %v2955, 1.0
      %v3115 = vadd.f32 %v2957, 1.0
      %v3116 = vadd.f32 %v2959, 1.0
      %v3117 = vadd.f32 %v2961, 1.0
      %v3118 = vadd.f32 %v2963, 1.0
      %v3119 = vadd.f32 %v2965, 1.0
      %v3120 = vadd.f32 %v2967, 1.0
      %v3121 = vadd.f32 %v2969, 1.0
      %v3122 = vadd.f32 %v2971, 1.0
      %v3123 = vadd.f32 %v2973, 1.0
      %v3124 = vadd.f32 %v2975, 1.0
      %v3125 = vadd.f32 %v2977, 1.0
      %v3126 = vadd.f32 %v2979, 1.0
      %v3127 = vadd.f32 %v2981, 1.0
      %v3128 = vadd.f32 %v2983, 1.0
      %v3129 = vadd.f32 %v2985, 1.0
      %v3130 = vadd.f32 %v2987, 1.0
      %v3131 = vadd.f32 %v2989, 1.0
      %v3132 = vadd.f32 %v2991, 1.0
      %v3133 = vadd.f32 %v2993, 1.0
      %v3134 = vadd.f32 %v2995, 1.0
      %v3135 = vadd.f32 %v2997, 1.0
      %v3136 = vadd.f32 %v2999, 1.0
      %v3137 = vadd.f32 %v3001, 1.0
      %v3138 = vadd.f32 %v3003, 1.0
      %v3139 = vadd.f32 %v3005, 1.0
      %v3140 = vadd.f32 %v3007, 1.0
      %v3141 = vadd.f32 %v3009, 1.0
      %v3142 = vadd.f32 %v3011, 1.0
      %v3143 = vadd.f32 %v3013, 1.0
      %v3144 = vadd.f32 %v3015, 1.0
      %v3145 = vadd.f32 %v3017, 1.0
      %v3146 = vrcp.pop %v3018
      %v3147 = vmul.f32 %v3018, %v3146
      %v3148 = vsub.f32 1.0, %v3147
      %v3149 = vmul.f32 %v3146, %v3148
      %v3150 = vadd.f32 %v3146, %v3149
      %vm3151 = vweird.f32 %v3018
      %vm3152 = vweird.f32 %v3146
      %vm3153 = vmor %vm3151, %vm3152
      %v3154 = vsel %vm3153, %v3146, %v3150
      %v3155 = vand.u32 2147483647, %v3018
      %vm3156 = vcmp.eq.f32.partialorder %v3155, 8.507059e+37
      %v3157 = vand.u32 %v3018, 2147483648
      %v3158 = vor.u32 1.1754944e-38, %v3157
      %v3159 = vsel %vm3156, %v3158, %v3154
      %v3160 = vmul.f32 1.0, %v3159
      %v3161 = vrcp.pop %v3019
      %v3162 = vmul.f32 %v3019, %v3161
      %v3163 = vsub.f32 1.0, %v3162
      %v3164 = vmul.f32 %v3161, %v3163
      %v3165 = vadd.f32 %v3161, %v3164
      %vm3166 = vweird.f32 %v3019
      %vm3167 = vweird.f32 %v3161
      %vm3168 = vmor %vm3166, %vm3167
      %v3169 = vsel %vm3168, %v3161, %v3165
      %v3170 = vand.u32 2147483647, %v3019
      %vm3171 = vcmp.eq.f32.partialorder %v3170, 8.507059e+37
      %v3172 = vand.u32 %v3019, 2147483648
      %v3173 = vor.u32 1.1754944e-38, %v3172
      %v3174 = vsel %vm3171, %v3173, %v3169
      %v3175 = vmul.f32 1.0, %v3174
      %v3176 = vrcp.pop %v3020
      %v3177 = vmul.f32 %v3020, %v3176
      %v3178 = vsub.f32 1.0, %v3177
      %v3179 = vmul.f32 %v3176, %v3178
      %v3180 = vadd.f32 %v3176, %v3179
      %vm3181 = vweird.f32 %v3020
      %vm3182 = vweird.f32 %v3176
      %vm3183 = vmor %vm3181, %vm3182
      %v3184 = vsel %vm3183, %v3176, %v3180
      %v3185 = vand.u32 2147483647, %v3020
      %vm3186 = vcmp.eq.f32.partialorder %v3185, 8.507059e+37
      %v3187 = vand.u32 %v3020, 2147483648
      %v3188 = vor.u32 1.1754944e-38, %v3187
      %v3189 = vsel %vm3186, %v3188, %v3184
      %v3190 = vmul.f32 1.0, %v3189
      %v3191 = vrcp.pop %v3021
      %v3192 = vmul.f32 %v3021, %v3191
      %v3193 = vsub.f32 1.0, %v3192
      %v3194 = vmul.f32 %v3191, %v3193
      %v3195 = vadd.f32 %v3191, %v3194
      %vm3196 = vweird.f32 %v3021
      %vm3197 = vweird.f32 %v3191
      %vm3198 = vmor %vm3196, %vm3197
      %v3199 = vsel %vm3198, %v3191, %v3195
      %v3200 = vand.u32 2147483647, %v3021
      %vm3201 = vcmp.eq.f32.partialorder %v3200, 8.507059e+37
      %v3202 = vand.u32 %v3021, 2147483648
      %v3203 = vor.u32 1.1754944e-38, %v3202
      %v3204 = vsel %vm3201, %v3203, %v3199
      %v3205 = vmul.f32 1.0, %v3204
      %v3206 = vrcp.pop %v3022
      %v3207 = vmul.f32 %v3022, %v3206
      %v3208 = vsub.f32 1.0, %v3207
      %v3209 = vmul.f32 %v3206, %v3208
      %v3210 = vadd.f32 %v3206, %v3209
      %vm3211 = vweird.f32 %v3022
      %vm3212 = vweird.f32 %v3206
      %vm3213 = vmor %vm3211, %vm3212
      %v3214 = vsel %vm3213, %v3206, %v3210
      %v3215 = vand.u32 2147483647, %v3022
      %vm3216 = vcmp.eq.f32.partialorder %v3215, 8.507059e+37
      %v3217 = vand.u32 %v3022, 2147483648
      %v3218 = vor.u32 1.1754944e-38, %v3217
      %v3219 = vsel %vm3216, %v3218, %v3214
      %v3220 = vmul.f32 1.0, %v3219
      %v3221 = vrcp.pop %v3023
      %v3222 = vmul.f32 %v3023, %v3221
      %v3223 = vsub.f32 1.0, %v3222
      %v3224 = vmul.f32 %v3221, %v3223
      %v3225 = vadd.f32 %v3221, %v3224
      %vm3226 = vweird.f32 %v3023
      %vm3227 = vweird.f32 %v3221
      %vm3228 = vmor %vm3226, %vm3227
      %v3229 = vsel %vm3228, %v3221, %v3225
      %v3230 = vand.u32 2147483647, %v3023
      %vm3231 = vcmp.eq.f32.partialorder %v3230, 8.507059e+37
      %v3232 = vand.u32 %v3023, 2147483648
      %v3233 = vor.u32 1.1754944e-38, %v3232
      %v3234 = vsel %vm3231, %v3233, %v3229
      %v3235 = vmul.f32 1.0, %v3234
      %v3236 = vrcp.pop %v3024
      %v3237 = vmul.f32 %v3024, %v3236
      %v3238 = vsub.f32 1.0, %v3237
      %v3239 = vmul.f32 %v3236, %v3238
      %v3240 = vadd.f32 %v3236, %v3239
      %vm3241 = vweird.f32 %v3024
      %vm3242 = vweird.f32 %v3236
      %vm3243 = vmor %vm3241, %vm3242
      %v3244 = vsel %vm3243, %v3236, %v3240
      %v3245 = vand.u32 2147483647, %v3024
      %vm3246 = vcmp.eq.f32.partialorder %v3245, 8.507059e+37
      %v3247 = vand.u32 %v3024, 2147483648
      %v3248 = vor.u32 1.1754944e-38, %v3247
      %v3249 = vsel %vm3246, %v3248, %v3244
      %v3250 = vmul.f32 1.0, %v3249
      %v3251 = vrcp.pop %v3025
      %v3252 = vmul.f32 %v3025, %v3251
      %v3253 = vsub.f32 1.0, %v3252
      %v3254 = vmul.f32 %v3251, %v3253
      %v3255 = vadd.f32 %v3251, %v3254
      %vm3256 = vweird.f32 %v3025
      %vm3257 = vweird.f32 %v3251
      %vm3258 = vmor %vm3256, %vm3257
      %v3259 = vsel %vm3258, %v3251, %v3255
      %v3260 = vand.u32 2147483647, %v3025
      %vm3261 = vcmp.eq.f32.partialorder %v3260, 8.507059e+37
      %v3262 = vand.u32 %v3025, 2147483648
      %v3263 = vor.u32 1.1754944e-38, %v3262
      %v3264 = vsel %vm3261, %v3263, %v3259
      %v3265 = vmul.f32 1.0, %v3264
      %v3266 = vrcp.pop %v3026
      %v3267 = vmul.f32 %v3026, %v3266
      %v3268 = vsub.f32 1.0, %v3267
      %v3269 = vmul.f32 %v3266, %v3268
      %v3270 = vadd.f32 %v3266, %v3269
      %vm3271 = vweird.f32 %v3026
      %vm3272 = vweird.f32 %v3266
      %vm3273 = vmor %vm3271, %vm3272
      %v3274 = vsel %vm3273, %v3266, %v3270
      %v3275 = vand.u32 2147483647, %v3026
      %vm3276 = vcmp.eq.f32.partialorder %v3275, 8.507059e+37
      %v3277 = vand.u32 %v3026, 2147483648
      %v3278 = vor.u32 1.1754944e-38, %v3277
      %v3279 = vsel %vm3276, %v3278, %v3274
      %v3280 = vmul.f32 1.0, %v3279
      %v3281 = vrcp.pop %v3027
      %v3282 = vmul.f32 %v3027, %v3281
      %v3283 = vsub.f32 1.0, %v3282
      %v3284 = vmul.f32 %v3281, %v3283
      %v3285 = vadd.f32 %v3281, %v3284
      %vm3286 = vweird.f32 %v3027
      %vm3287 = vweird.f32 %v3281
      %vm3288 = vmor %vm3286, %vm3287
      %v3289 = vsel %vm3288, %v3281, %v3285
      %v3290 = vand.u32 2147483647, %v3027
      %vm3291 = vcmp.eq.f32.partialorder %v3290, 8.507059e+37
      %v3292 = vand.u32 %v3027, 2147483648
      %v3293 = vor.u32 1.1754944e-38, %v3292
      %v3294 = vsel %vm3291, %v3293, %v3289
      %v3295 = vmul.f32 1.0, %v3294
      %v3296 = vrcp.pop %v3028
      %v3297 = vmul.f32 %v3028, %v3296
      %v3298 = vsub.f32 1.0, %v3297
      %v3299 = vmul.f32 %v3296, %v3298
      %v3300 = vadd.f32 %v3296, %v3299
      %vm3301 = vweird.f32 %v3028
      %vm3302 = vweird.f32 %v3296
      %vm3303 = vmor %vm3301, %vm3302
      %v3304 = vsel %vm3303, %v3296, %v3300
      %v3305 = vand.u32 2147483647, %v3028
      %vm3306 = vcmp.eq.f32.partialorder %v3305, 8.507059e+37
      %v3307 = vand.u32 %v3028, 2147483648
      %v3308 = vor.u32 1.1754944e-38, %v3307
      %v3309 = vsel %vm3306, %v3308, %v3304
      %v3310 = vmul.f32 1.0, %v3309
      %v3311 = vrcp.pop %v3029
      %v3312 = vmul.f32 %v3029, %v3311
      %v3313 = vsub.f32 1.0, %v3312
      %v3314 = vmul.f32 %v3311, %v3313
      %v3315 = vadd.f32 %v3311, %v3314
      %vm3316 = vweird.f32 %v3029
      %vm3317 = vweird.f32 %v3311
      %vm3318 = vmor %vm3316, %vm3317
      %v3319 = vsel %vm3318, %v3311, %v3315
      %v3320 = vand.u32 2147483647, %v3029
      %vm3321 = vcmp.eq.f32.partialorder %v3320, 8.507059e+37
      %v3322 = vand.u32 %v3029, 2147483648
      %v3323 = vor.u32 1.1754944e-38, %v3322
      %v3324 = vsel %vm3321, %v3323, %v3319
      %v3325 = vmul.f32 1.0, %v3324
      %v3326 = vrcp.pop %v3030
      %v3327 = vmul.f32 %v3030, %v3326
      %v3328 = vsub.f32 1.0, %v3327
      %v3329 = vmul.f32 %v3326, %v3328
      %v3330 = vadd.f32 %v3326, %v3329
      %vm3331 = vweird.f32 %v3030
      %vm3332 = vweird.f32 %v3326
      %vm3333 = vmor %vm3331, %vm3332
      %v3334 = vsel %vm3333, %v3326, %v3330
      %v3335 = vand.u32 2147483647, %v3030
      %vm3336 = vcmp.eq.f32.partialorder %v3335, 8.507059e+37
      %v3337 = vand.u32 %v3030, 2147483648
      %v3338 = vor.u32 1.1754944e-38, %v3337
      %v3339 = vsel %vm3336, %v3338, %v3334
      %v3340 = vmul.f32 1.0, %v3339
      %v3341 = vrcp.pop %v3031
      %v3342 = vmul.f32 %v3031, %v3341
      %v3343 = vsub.f32 1.0, %v3342
      %v3344 = vmul.f32 %v3341, %v3343
      %v3345 = vadd.f32 %v3341, %v3344
      %vm3346 = vweird.f32 %v3031
      %vm3347 = vweird.f32 %v3341
      %vm3348 = vmor %vm3346, %vm3347
      %v3349 = vsel %vm3348, %v3341, %v3345
      %v3350 = vand.u32 2147483647, %v3031
      %vm3351 = vcmp.eq.f32.partialorder %v3350, 8.507059e+37
      %v3352 = vand.u32 %v3031, 2147483648
      %v3353 = vor.u32 1.1754944e-38, %v3352
      %v3354 = vsel %vm3351, %v3353, %v3349
      %v3355 = vmul.f32 1.0, %v3354
      %v3356 = vrcp.pop %v3032
      %v3357 = vmul.f32 %v3032, %v3356
      %v3358 = vsub.f32 1.0, %v3357
      %v3359 = vmul.f32 %v3356, %v3358
      %v3360 = vadd.f32 %v3356, %v3359
      %vm3361 = vweird.f32 %v3032
      %vm3362 = vweird.f32 %v3356
      %vm3363 = vmor %vm3361, %vm3362
      %v3364 = vsel %vm3363, %v3356, %v3360
      %v3365 = vand.u32 2147483647, %v3032
      %vm3366 = vcmp.eq.f32.partialorder %v3365, 8.507059e+37
      %v3367 = vand.u32 %v3032, 2147483648
      %v3368 = vor.u32 1.1754944e-38, %v3367
      %v3369 = vsel %vm3366, %v3368, %v3364
      %v3370 = vmul.f32 1.0, %v3369
      %v3371 = vrcp.pop %v3033
      %v3372 = vmul.f32 %v3033, %v3371
      %v3373 = vsub.f32 1.0, %v3372
      %v3374 = vmul.f32 %v3371, %v3373
      %v3375 = vadd.f32 %v3371, %v3374
      %vm3376 = vweird.f32 %v3033
      %vm3377 = vweird.f32 %v3371
      %vm3378 = vmor %vm3376, %vm3377
      %v3379 = vsel %vm3378, %v3371, %v3375
      %v3380 = vand.u32 2147483647, %v3033
      %vm3381 = vcmp.eq.f32.partialorder %v3380, 8.507059e+37
      %v3382 = vand.u32 %v3033, 2147483648
      %v3383 = vor.u32 1.1754944e-38, %v3382
      %v3384 = vsel %vm3381, %v3383, %v3379
      %v3385 = vmul.f32 1.0, %v3384
      %v3386 = vrcp.pop %v3034
      %v3387 = vmul.f32 %v3034, %v3386
      %v3388 = vsub.f32 1.0, %v3387
      %v3389 = vmul.f32 %v3386, %v3388
      %v3390 = vadd.f32 %v3386, %v3389
      %vm3391 = vweird.f32 %v3034
      %vm3392 = vweird.f32 %v3386
      %vm3393 = vmor %vm3391, %vm3392
      %v3394 = vsel %vm3393, %v3386, %v3390
      %v3395 = vand.u32 2147483647, %v3034
      %vm3396 = vcmp.eq.f32.partialorder %v3395, 8.507059e+37
      %v3397 = vand.u32 %v3034, 2147483648
      %v3398 = vor.u32 1.1754944e-38, %v3397
      %v3399 = vsel %vm3396, %v3398, %v3394
      %v3400 = vmul.f32 1.0, %v3399
      %v3401 = vrcp.pop %v3035
      %v3402 = vmul.f32 %v3035, %v3401
      %v3403 = vsub.f32 1.0, %v3402
      %v3404 = vmul.f32 %v3401, %v3403
      %v3405 = vadd.f32 %v3401, %v3404
      %vm3406 = vweird.f32 %v3035
      %vm3407 = vweird.f32 %v3401
      %vm3408 = vmor %vm3406, %vm3407
      %v3409 = vsel %vm3408, %v3401, %v3405
      %v3410 = vand.u32 2147483647, %v3035
      %vm3411 = vcmp.eq.f32.partialorder %v3410, 8.507059e+37
      %v3412 = vand.u32 %v3035, 2147483648
      %v3413 = vor.u32 1.1754944e-38, %v3412
      %v3414 = vsel %vm3411, %v3413, %v3409
      %v3415 = vmul.f32 1.0, %v3414
      %v3416 = vrcp.pop %v3036
      %v3417 = vmul.f32 %v3036, %v3416
      %v3418 = vsub.f32 1.0, %v3417
      %v3419 = vmul.f32 %v3416, %v3418
      %v3420 = vadd.f32 %v3416, %v3419
      %vm3421 = vweird.f32 %v3036
      %vm3422 = vweird.f32 %v3416
      %vm3423 = vmor %vm3421, %vm3422
      %v3424 = vsel %vm3423, %v3416, %v3420
      %v3425 = vand.u32 2147483647, %v3036
      %vm3426 = vcmp.eq.f32.partialorder %v3425, 8.507059e+37
      %v3427 = vand.u32 %v3036, 2147483648
      %v3428 = vor.u32 1.1754944e-38, %v3427
      %v3429 = vsel %vm3426, %v3428, %v3424
      %v3430 = vmul.f32 1.0, %v3429
      %v3431 = vrcp.pop %v3037
      %v3432 = vmul.f32 %v3037, %v3431
      %v3433 = vsub.f32 1.0, %v3432
      %v3434 = vmul.f32 %v3431, %v3433
      %v3435 = vadd.f32 %v3431, %v3434
      %vm3436 = vweird.f32 %v3037
      %vm3437 = vweird.f32 %v3431
      %vm3438 = vmor %vm3436, %vm3437
      %v3439 = vsel %vm3438, %v3431, %v3435
      %v3440 = vand.u32 2147483647, %v3037
      %vm3441 = vcmp.eq.f32.partialorder %v3440, 8.507059e+37
      %v3442 = vand.u32 %v3037, 2147483648
      %v3443 = vor.u32 1.1754944e-38, %v3442
      %v3444 = vsel %vm3441, %v3443, %v3439
      %v3445 = vmul.f32 1.0, %v3444
      %v3446 = vrcp.pop %v3038
      %v3447 = vmul.f32 %v3038, %v3446
      %v3448 = vsub.f32 1.0, %v3447
      %v3449 = vmul.f32 %v3446, %v3448
      %v3450 = vadd.f32 %v3446, %v3449
      %vm3451 = vweird.f32 %v3038
      %vm3452 = vweird.f32 %v3446
      %vm3453 = vmor %vm3451, %vm3452
      %v3454 = vsel %vm3453, %v3446, %v3450
      %v3455 = vand.u32 2147483647, %v3038
      %vm3456 = vcmp.eq.f32.partialorder %v3455, 8.507059e+37
      %v3457 = vand.u32 %v3038, 2147483648
      %v3458 = vor.u32 1.1754944e-38, %v3457
      %v3459 = vsel %vm3456, %v3458, %v3454
      %v3460 = vmul.f32 1.0, %v3459
      %v3461 = vrcp.pop %v3039
      %v3462 = vmul.f32 %v3039, %v3461
      %v3463 = vsub.f32 1.0, %v3462
      %v3464 = vmul.f32 %v3461, %v3463
      %v3465 = vadd.f32 %v3461, %v3464
      %vm3466 = vweird.f32 %v3039
      %vm3467 = vweird.f32 %v3461
      %vm3468 = vmor %vm3466, %vm3467
      %v3469 = vsel %vm3468, %v3461, %v3465
      %v3470 = vand.u32 2147483647, %v3039
      %vm3471 = vcmp.eq.f32.partialorder %v3470, 8.507059e+37
      %v3472 = vand.u32 %v3039, 2147483648
      %v3473 = vor.u32 1.1754944e-38, %v3472
      %v3474 = vsel %vm3471, %v3473, %v3469
      %v3475 = vmul.f32 1.0, %v3474
      %v3476 = vrcp.pop %v3040
      %v3477 = vmul.f32 %v3040, %v3476
      %v3478 = vsub.f32 1.0, %v3477
      %v3479 = vmul.f32 %v3476, %v3478
      %v3480 = vadd.f32 %v3476, %v3479
      %vm3481 = vweird.f32 %v3040
      %vm3482 = vweird.f32 %v3476
      %vm3483 = vmor %vm3481, %vm3482
      %v3484 = vsel %vm3483, %v3476, %v3480
      %v3485 = vand.u32 2147483647, %v3040
      %vm3486 = vcmp.eq.f32.partialorder %v3485, 8.507059e+37
      %v3487 = vand.u32 %v3040, 2147483648
      %v3488 = vor.u32 1.1754944e-38, %v3487
      %v3489 = vsel %vm3486, %v3488, %v3484
      %v3490 = vmul.f32 1.0, %v3489
      %v3491 = vrcp.pop %v3041
      %v3492 = vmul.f32 %v3041, %v3491
      %v3493 = vsub.f32 1.0, %v3492
      %v3494 = vmul.f32 %v3491, %v3493
      %v3495 = vadd.f32 %v3491, %v3494
      %vm3496 = vweird.f32 %v3041
      %vm3497 = vweird.f32 %v3491
      %vm3498 = vmor %vm3496, %vm3497
      %v3499 = vsel %vm3498, %v3491, %v3495
      %v3500 = vand.u32 2147483647, %v3041
      %vm3501 = vcmp.eq.f32.partialorder %v3500, 8.507059e+37
      %v3502 = vand.u32 %v3041, 2147483648
      %v3503 = vor.u32 1.1754944e-38, %v3502
      %v3504 = vsel %vm3501, %v3503, %v3499
      %v3505 = vmul.f32 1.0, %v3504
      %v3506 = vrcp.pop %v3042
      %v3507 = vmul.f32 %v3042, %v3506
      %v3508 = vsub.f32 1.0, %v3507
      %v3509 = vmul.f32 %v3506, %v3508
      %v3510 = vadd.f32 %v3506, %v3509
      %vm3511 = vweird.f32 %v3042
      %vm3512 = vweird.f32 %v3506
      %vm3513 = vmor %vm3511, %vm3512
      %v3514 = vsel %vm3513, %v3506, %v3510
      %v3515 = vand.u32 2147483647, %v3042
      %vm3516 = vcmp.eq.f32.partialorder %v3515, 8.507059e+37
      %v3517 = vand.u32 %v3042, 2147483648
      %v3518 = vor.u32 1.1754944e-38, %v3517
      %v3519 = vsel %vm3516, %v3518, %v3514
      %v3520 = vmul.f32 1.0, %v3519
      %v3521 = vrcp.pop %v3043
      %v3522 = vmul.f32 %v3043, %v3521
      %v3523 = vsub.f32 1.0, %v3522
      %v3524 = vmul.f32 %v3521, %v3523
      %v3525 = vadd.f32 %v3521, %v3524
      %vm3526 = vweird.f32 %v3043
      %vm3527 = vweird.f32 %v3521
      %vm3528 = vmor %vm3526, %vm3527
      %v3529 = vsel %vm3528, %v3521, %v3525
      %v3530 = vand.u32 2147483647, %v3043
      %vm3531 = vcmp.eq.f32.partialorder %v3530, 8.507059e+37
      %v3532 = vand.u32 %v3043, 2147483648
      %v3533 = vor.u32 1.1754944e-38, %v3532
      %v3534 = vsel %vm3531, %v3533, %v3529
      %v3535 = vmul.f32 1.0, %v3534
      %v3536 = vrcp.pop %v3044
      %v3537 = vmul.f32 %v3044, %v3536
      %v3538 = vsub.f32 1.0, %v3537
      %v3539 = vmul.f32 %v3536, %v3538
      %v3540 = vadd.f32 %v3536, %v3539
      %vm3541 = vweird.f32 %v3044
      %vm3542 = vweird.f32 %v3536
      %vm3543 = vmor %vm3541, %vm3542
      %v3544 = vsel %vm3543, %v3536, %v3540
      %v3545 = vand.u32 2147483647, %v3044
      %vm3546 = vcmp.eq.f32.partialorder %v3545, 8.507059e+37
      %v3547 = vand.u32 %v3044, 2147483648
      %v3548 = vor.u32 1.1754944e-38, %v3547
      %v3549 = vsel %vm3546, %v3548, %v3544
      %v3550 = vmul.f32 1.0, %v3549
      %v3551 = vrcp.pop %v3045
      %v3552 = vmul.f32 %v3045, %v3551
      %v3553 = vsub.f32 1.0, %v3552
      %v3554 = vmul.f32 %v3551, %v3553
      %v3555 = vadd.f32 %v3551, %v3554
      %vm3556 = vweird.f32 %v3045
      %vm3557 = vweird.f32 %v3551
      %vm3558 = vmor %vm3556, %vm3557
      %v3559 = vsel %vm3558, %v3551, %v3555
      %v3560 = vand.u32 2147483647, %v3045
      %vm3561 = vcmp.eq.f32.partialorder %v3560, 8.507059e+37
      %v3562 = vand.u32 %v3045, 2147483648
      %v3563 = vor.u32 1.1754944e-38, %v3562
      %v3564 = vsel %vm3561, %v3563, %v3559
      %v3565 = vmul.f32 1.0, %v3564
      %v3566 = vrcp.pop %v3046
      %v3567 = vmul.f32 %v3046, %v3566
      %v3568 = vsub.f32 1.0, %v3567
      %v3569 = vmul.f32 %v3566, %v3568
      %v3570 = vadd.f32 %v3566, %v3569
      %vm3571 = vweird.f32 %v3046
      %vm3572 = vweird.f32 %v3566
      %vm3573 = vmor %vm3571, %vm3572
      %v3574 = vsel %vm3573, %v3566, %v3570
      %v3575 = vand.u32 2147483647, %v3046
      %vm3576 = vcmp.eq.f32.partialorder %v3575, 8.507059e+37
      %v3577 = vand.u32 %v3046, 2147483648
      %v3578 = vor.u32 1.1754944e-38, %v3577
      %v3579 = vsel %vm3576, %v3578, %v3574
      %v3580 = vmul.f32 1.0, %v3579
      %v3581 = vrcp.pop %v3047
      %v3582 = vmul.f32 %v3047, %v3581
      %v3583 = vsub.f32 1.0, %v3582
      %v3584 = vmul.f32 %v3581, %v3583
      %v3585 = vadd.f32 %v3581, %v3584
      %vm3586 = vweird.f32 %v3047
      %vm3587 = vweird.f32 %v3581
      %vm3588 = vmor %vm3586, %vm3587
      %v3589 = vsel %vm3588, %v3581, %v3585
      %v3590 = vand.u32 2147483647, %v3047
      %vm3591 = vcmp.eq.f32.partialorder %v3590, 8.507059e+37
      %v3592 = vand.u32 %v3047, 2147483648
      %v3593 = vor.u32 1.1754944e-38, %v3592
      %v3594 = vsel %vm3591, %v3593, %v3589
      %v3595 = vmul.f32 1.0, %v3594
      %v3596 = vrcp.pop %v3048
      %v3597 = vmul.f32 %v3048, %v3596
      %v3598 = vsub.f32 1.0, %v3597
      %v3599 = vmul.f32 %v3596, %v3598
      %v3600 = vadd.f32 %v3596, %v3599
      %vm3601 = vweird.f32 %v3048
      %vm3602 = vweird.f32 %v3596
      %vm3603 = vmor %vm3601, %vm3602
      %v3604 = vsel %vm3603, %v3596, %v3600
      %v3605 = vand.u32 2147483647, %v3048
      %vm3606 = vcmp.eq.f32.partialorder %v3605, 8.507059e+37
      %v3607 = vand.u32 %v3048, 2147483648
      %v3608 = vor.u32 1.1754944e-38, %v3607
      %v3609 = vsel %vm3606, %v3608, %v3604
      %v3610 = vmul.f32 1.0, %v3609
      %v3611 = vrcp.pop %v3049
      %v3612 = vmul.f32 %v3049, %v3611
      %v3613 = vsub.f32 1.0, %v3612
      %v3614 = vmul.f32 %v3611, %v3613
      %v3615 = vadd.f32 %v3611, %v3614
      %vm3616 = vweird.f32 %v3049
      %vm3617 = vweird.f32 %v3611
      %vm3618 = vmor %vm3616, %vm3617
      %v3619 = vsel %vm3618, %v3611, %v3615
      %v3620 = vand.u32 2147483647, %v3049
      %vm3621 = vcmp.eq.f32.partialorder %v3620, 8.507059e+37
      %v3622 = vand.u32 %v3049, 2147483648
      %v3623 = vor.u32 1.1754944e-38, %v3622
      %v3624 = vsel %vm3621, %v3623, %v3619
      %v3625 = vmul.f32 1.0, %v3624
      %v3626 = vrcp.pop %v3050
      %v3627 = vmul.f32 %v3050, %v3626
      %v3628 = vsub.f32 1.0, %v3627
      %v3629 = vmul.f32 %v3626, %v3628
      %v3630 = vadd.f32 %v3626, %v3629
      %vm3631 = vweird.f32 %v3050
      %vm3632 = vweird.f32 %v3626
      %vm3633 = vmor %vm3631, %vm3632
      %v3634 = vsel %vm3633, %v3626, %v3630
      %v3635 = vand.u32 2147483647, %v3050
      %vm3636 = vcmp.eq.f32.partialorder %v3635, 8.507059e+37
      %v3637 = vand.u32 %v3050, 2147483648
      %v3638 = vor.u32 1.1754944e-38, %v3637
      %v3639 = vsel %vm3636, %v3638, %v3634
      %v3640 = vmul.f32 1.0, %v3639
      %v3641 = vrcp.pop %v3051
      %v3642 = vmul.f32 %v3051, %v3641
      %v3643 = vsub.f32 1.0, %v3642
      %v3644 = vmul.f32 %v3641, %v3643
      %v3645 = vadd.f32 %v3641, %v3644
      %vm3646 = vweird.f32 %v3051
      %vm3647 = vweird.f32 %v3641
      %vm3648 = vmor %vm3646, %vm3647
      %v3649 = vsel %vm3648, %v3641, %v3645
      %v3650 = vand.u32 2147483647, %v3051
      %vm3651 = vcmp.eq.f32.partialorder %v3650, 8.507059e+37
      %v3652 = vand.u32 %v3051, 2147483648
      %v3653 = vor.u32 1.1754944e-38, %v3652
      %v3654 = vsel %vm3651, %v3653, %v3649
      %v3655 = vmul.f32 1.0, %v3654
      %v3656 = vrcp.pop %v3052
      %v3657 = vmul.f32 %v3052, %v3656
      %v3658 = vsub.f32 1.0, %v3657
      %v3659 = vmul.f32 %v3656, %v3658
      %v3660 = vadd.f32 %v3656, %v3659
      %vm3661 = vweird.f32 %v3052
      %vm3662 = vweird.f32 %v3656
      %vm3663 = vmor %vm3661, %vm3662
      %v3664 = vsel %vm3663, %v3656, %v3660
      %v3665 = vand.u32 2147483647, %v3052
      %vm3666 = vcmp.eq.f32.partialorder %v3665, 8.507059e+37
      %v3667 = vand.u32 %v3052, 2147483648
      %v3668 = vor.u32 1.1754944e-38, %v3667
      %v3669 = vsel %vm3666, %v3668, %v3664
      %v3670 = vmul.f32 1.0, %v3669
      %v3671 = vrcp.pop %v3053
      %v3672 = vmul.f32 %v3053, %v3671
      %v3673 = vsub.f32 1.0, %v3672
      %v3674 = vmul.f32 %v3671, %v3673
      %v3675 = vadd.f32 %v3671, %v3674
      %vm3676 = vweird.f32 %v3053
      %vm3677 = vweird.f32 %v3671
      %vm3678 = vmor %vm3676, %vm3677
      %v3679 = vsel %vm3678, %v3671, %v3675
      %v3680 = vand.u32 2147483647, %v3053
      %vm3681 = vcmp.eq.f32.partialorder %v3680, 8.507059e+37
      %v3682 = vand.u32 %v3053, 2147483648
      %v3683 = vor.u32 1.1754944e-38, %v3682
      %v3684 = vsel %vm3681, %v3683, %v3679
      %v3685 = vmul.f32 1.0, %v3684
      %v3686 = vrcp.pop %v3054
      %v3687 = vmul.f32 %v3054, %v3686
      %v3688 = vsub.f32 1.0, %v3687
      %v3689 = vmul.f32 %v3686, %v3688
      %v3690 = vadd.f32 %v3686, %v3689
      %vm3691 = vweird.f32 %v3054
      %vm3692 = vweird.f32 %v3686
      %vm3693 = vmor %vm3691, %vm3692
      %v3694 = vsel %vm3693, %v3686, %v3690
      %v3695 = vand.u32 2147483647, %v3054
      %vm3696 = vcmp.eq.f32.partialorder %v3695, 8.507059e+37
      %v3697 = vand.u32 %v3054, 2147483648
      %v3698 = vor.u32 1.1754944e-38, %v3697
      %v3699 = vsel %vm3696, %v3698, %v3694
      %v3700 = vmul.f32 1.0, %v3699
      %v3701 = vrcp.pop %v3055
      %v3702 = vmul.f32 %v3055, %v3701
      %v3703 = vsub.f32 1.0, %v3702
      %v3704 = vmul.f32 %v3701, %v3703
      %v3705 = vadd.f32 %v3701, %v3704
      %vm3706 = vweird.f32 %v3055
      %vm3707 = vweird.f32 %v3701
      %vm3708 = vmor %vm3706, %vm3707
      %v3709 = vsel %vm3708, %v3701, %v3705
      %v3710 = vand.u32 2147483647, %v3055
      %vm3711 = vcmp.eq.f32.partialorder %v3710, 8.507059e+37
      %v3712 = vand.u32 %v3055, 2147483648
      %v3713 = vor.u32 1.1754944e-38, %v3712
      %v3714 = vsel %vm3711, %v3713, %v3709
      %v3715 = vmul.f32 1.0, %v3714
      %v3716 = vrcp.pop %v3056
      %v3717 = vmul.f32 %v3056, %v3716
      %v3718 = vsub.f32 1.0, %v3717
      %v3719 = vmul.f32 %v3716, %v3718
      %v3720 = vadd.f32 %v3716, %v3719
      %vm3721 = vweird.f32 %v3056
      %vm3722 = vweird.f32 %v3716
      %vm3723 = vmor %vm3721, %vm3722
      %v3724 = vsel %vm3723, %v3716, %v3720
      %v3725 = vand.u32 2147483647, %v3056
      %vm3726 = vcmp.eq.f32.partialorder %v3725, 8.507059e+37
      %v3727 = vand.u32 %v3056, 2147483648
      %v3728 = vor.u32 1.1754944e-38, %v3727
      %v3729 = vsel %vm3726, %v3728, %v3724
      %v3730 = vmul.f32 1.0, %v3729
      %v3731 = vrcp.pop %v3057
      %v3732 = vmul.f32 %v3057, %v3731
      %v3733 = vsub.f32 1.0, %v3732
      %v3734 = vmul.f32 %v3731, %v3733
      %v3735 = vadd.f32 %v3731, %v3734
      %vm3736 = vweird.f32 %v3057
      %vm3737 = vweird.f32 %v3731
      %vm3738 = vmor %vm3736, %vm3737
      %v3739 = vsel %vm3738, %v3731, %v3735
      %v3740 = vand.u32 2147483647, %v3057
      %vm3741 = vcmp.eq.f32.partialorder %v3740, 8.507059e+37
      %v3742 = vand.u32 %v3057, 2147483648
      %v3743 = vor.u32 1.1754944e-38, %v3742
      %v3744 = vsel %vm3741, %v3743, %v3739
      %v3745 = vmul.f32 1.0, %v3744
      %v3746 = vrcp.pop %v3058
      %v3747 = vmul.f32 %v3058, %v3746
      %v3748 = vsub.f32 1.0, %v3747
      %v3749 = vmul.f32 %v3746, %v3748
      %v3750 = vadd.f32 %v3746, %v3749
      %vm3751 = vweird.f32 %v3058
      %vm3752 = vweird.f32 %v3746
      %vm3753 = vmor %vm3751, %vm3752
      %v3754 = vsel %vm3753, %v3746, %v3750
      %v3755 = vand.u32 2147483647, %v3058
      %vm3756 = vcmp.eq.f32.partialorder %v3755, 8.507059e+37
      %v3757 = vand.u32 %v3058, 2147483648
      %v3758 = vor.u32 1.1754944e-38, %v3757
      %v3759 = vsel %vm3756, %v3758, %v3754
      %v3760 = vmul.f32 1.0, %v3759
      %v3761 = vrcp.pop %v3059
      %v3762 = vmul.f32 %v3059, %v3761
      %v3763 = vsub.f32 1.0, %v3762
      %v3764 = vmul.f32 %v3761, %v3763
      %v3765 = vadd.f32 %v3761, %v3764
      %vm3766 = vweird.f32 %v3059
      %vm3767 = vweird.f32 %v3761
      %vm3768 = vmor %vm3766, %vm3767
      %v3769 = vsel %vm3768, %v3761, %v3765
      %v3770 = vand.u32 2147483647, %v3059
      %vm3771 = vcmp.eq.f32.partialorder %v3770, 8.507059e+37
      %v3772 = vand.u32 %v3059, 2147483648
      %v3773 = vor.u32 1.1754944e-38, %v3772
      %v3774 = vsel %vm3771, %v3773, %v3769
      %v3775 = vmul.f32 1.0, %v3774
      %v3776 = vrcp.pop %v3060
      %v3777 = vmul.f32 %v3060, %v3776
      %v3778 = vsub.f32 1.0, %v3777
      %v3779 = vmul.f32 %v3776, %v3778
      %v3780 = vadd.f32 %v3776, %v3779
      %vm3781 = vweird.f32 %v3060
      %vm3782 = vweird.f32 %v3776
      %vm3783 = vmor %vm3781, %vm3782
      %v3784 = vsel %vm3783, %v3776, %v3780
      %v3785 = vand.u32 2147483647, %v3060
      %vm3786 = vcmp.eq.f32.partialorder %v3785, 8.507059e+37
      %v3787 = vand.u32 %v3060, 2147483648
      %v3788 = vor.u32 1.1754944e-38, %v3787
      %v3789 = vsel %vm3786, %v3788, %v3784
      %v3790 = vmul.f32 1.0, %v3789
      %v3791 = vrcp.pop %v3061
      %v3792 = vmul.f32 %v3061, %v3791
      %v3793 = vsub.f32 1.0, %v3792
      %v3794 = vmul.f32 %v3791, %v3793
      %v3795 = vadd.f32 %v3791, %v3794
      %vm3796 = vweird.f32 %v3061
      %vm3797 = vweird.f32 %v3791
      %vm3798 = vmor %vm3796, %vm3797
      %v3799 = vsel %vm3798, %v3791, %v3795
      %v3800 = vand.u32 2147483647, %v3061
      %vm3801 = vcmp.eq.f32.partialorder %v3800, 8.507059e+37
      %v3802 = vand.u32 %v3061, 2147483648
      %v3803 = vor.u32 1.1754944e-38, %v3802
      %v3804 = vsel %vm3801, %v3803, %v3799
      %v3805 = vmul.f32 1.0, %v3804
      %v3806 = vrcp.pop %v3062
      %v3807 = vmul.f32 %v3062, %v3806
      %v3808 = vsub.f32 1.0, %v3807
      %v3809 = vmul.f32 %v3806, %v3808
      %v3810 = vadd.f32 %v3806, %v3809
      %vm3811 = vweird.f32 %v3062
      %vm3812 = vweird.f32 %v3806
      %vm3813 = vmor %vm3811, %vm3812
      %v3814 = vsel %vm3813, %v3806, %v3810
      %v3815 = vand.u32 2147483647, %v3062
      %vm3816 = vcmp.eq.f32.partialorder %v3815, 8.507059e+37
      %v3817 = vand.u32 %v3062, 2147483648
      %v3818 = vor.u32 1.1754944e-38, %v3817
      %v3819 = vsel %vm3816, %v3818, %v3814
      %v3820 = vmul.f32 1.0, %v3819
      %v3821 = vrcp.pop %v3063
      %v3822 = vmul.f32 %v3063, %v3821
      %v3823 = vsub.f32 1.0, %v3822
      %v3824 = vmul.f32 %v3821, %v3823
      %v3825 = vadd.f32 %v3821, %v3824
      %vm3826 = vweird.f32 %v3063
      %vm3827 = vweird.f32 %v3821
      %vm3828 = vmor %vm3826, %vm3827
      %v3829 = vsel %vm3828, %v3821, %v3825
      %v3830 = vand.u32 2147483647, %v3063
      %vm3831 = vcmp.eq.f32.partialorder %v3830, 8.507059e+37
      %v3832 = vand.u32 %v3063, 2147483648
      %v3833 = vor.u32 1.1754944e-38, %v3832
      %v3834 = vsel %vm3831, %v3833, %v3829
      %v3835 = vmul.f32 1.0, %v3834
      %v3836 = vrcp.pop %v3064
      %v3837 = vmul.f32 %v3064, %v3836
      %v3838 = vsub.f32 1.0, %v3837
      %v3839 = vmul.f32 %v3836, %v3838
      %v3840 = vadd.f32 %v3836, %v3839
      %vm3841 = vweird.f32 %v3064
      %vm3842 = vweird.f32 %v3836
      %vm3843 = vmor %vm3841, %vm3842
      %v3844 = vsel %vm3843, %v3836, %v3840
      %v3845 = vand.u32 2147483647, %v3064
      %vm3846 = vcmp.eq.f32.partialorder %v3845, 8.507059e+37
      %v3847 = vand.u32 %v3064, 2147483648
      %v3848 = vor.u32 1.1754944e-38, %v3847
      %v3849 = vsel %vm3846, %v3848, %v3844
      %v3850 = vmul.f32 1.0, %v3849
      %v3851 = vrcp.pop %v3065
      %v3852 = vmul.f32 %v3065, %v3851
      %v3853 = vsub.f32 1.0, %v3852
      %v3854 = vmul.f32 %v3851, %v3853
      %v3855 = vadd.f32 %v3851, %v3854
      %vm3856 = vweird.f32 %v3065
      %vm3857 = vweird.f32 %v3851
      %vm3858 = vmor %vm3856, %vm3857
      %v3859 = vsel %vm3858, %v3851, %v3855
      %v3860 = vand.u32 2147483647, %v3065
      %vm3861 = vcmp.eq.f32.partialorder %v3860, 8.507059e+37
      %v3862 = vand.u32 %v3065, 2147483648
      %v3863 = vor.u32 1.1754944e-38, %v3862
      %v3864 = vsel %vm3861, %v3863, %v3859
      %v3865 = vmul.f32 1.0, %v3864
      %v3866 = vrcp.pop %v3066
      %v3867 = vmul.f32 %v3066, %v3866
      %v3868 = vsub.f32 1.0, %v3867
      %v3869 = vmul.f32 %v3866, %v3868
      %v3870 = vadd.f32 %v3866, %v3869
      %vm3871 = vweird.f32 %v3066
      %vm3872 = vweird.f32 %v3866
      %vm3873 = vmor %vm3871, %vm3872
      %v3874 = vsel %vm3873, %v3866, %v3870
      %v3875 = vand.u32 2147483647, %v3066
      %vm3876 = vcmp.eq.f32.partialorder %v3875, 8.507059e+37
      %v3877 = vand.u32 %v3066, 2147483648
      %v3878 = vor.u32 1.1754944e-38, %v3877
      %v3879 = vsel %vm3876, %v3878, %v3874
      %v3880 = vmul.f32 1.0, %v3879
      %v3881 = vrcp.pop %v3067
      %v3882 = vmul.f32 %v3067, %v3881
      %v3883 = vsub.f32 1.0, %v3882
      %v3884 = vmul.f32 %v3881, %v3883
      %v3885 = vadd.f32 %v3881, %v3884
      %vm3886 = vweird.f32 %v3067
      %vm3887 = vweird.f32 %v3881
      %vm3888 = vmor %vm3886, %vm3887
      %v3889 = vsel %vm3888, %v3881, %v3885
      %v3890 = vand.u32 2147483647, %v3067
      %vm3891 = vcmp.eq.f32.partialorder %v3890, 8.507059e+37
      %v3892 = vand.u32 %v3067, 2147483648
      %v3893 = vor.u32 1.1754944e-38, %v3892
      %v3894 = vsel %vm3891, %v3893, %v3889
      %v3895 = vmul.f32 1.0, %v3894
      %v3896 = vrcp.pop %v3068
      %v3897 = vmul.f32 %v3068, %v3896
      %v3898 = vsub.f32 1.0, %v3897
      %v3899 = vmul.f32 %v3896, %v3898
      %v3900 = vadd.f32 %v3896, %v3899
      %vm3901 = vweird.f32 %v3068
      %vm3902 = vweird.f32 %v3896
      %vm3903 = vmor %vm3901, %vm3902
      %v3904 = vsel %vm3903, %v3896, %v3900
      %v3905 = vand.u32 2147483647, %v3068
      %vm3906 = vcmp.eq.f32.partialorder %v3905, 8.507059e+37
      %v3907 = vand.u32 %v3068, 2147483648
      %v3908 = vor.u32 1.1754944e-38, %v3907
      %v3909 = vsel %vm3906, %v3908, %v3904
      %v3910 = vmul.f32 1.0, %v3909
      %v3911 = vrcp.pop %v3069
      %v3912 = vmul.f32 %v3069, %v3911
      %v3913 = vsub.f32 1.0, %v3912
      %v3914 = vmul.f32 %v3911, %v3913
      %v3915 = vadd.f32 %v3911, %v3914
      %vm3916 = vweird.f32 %v3069
      %vm3917 = vweird.f32 %v3911
      %vm3918 = vmor %vm3916, %vm3917
      %v3919 = vsel %vm3918, %v3911, %v3915
      %v3920 = vand.u32 2147483647, %v3069
      %vm3921 = vcmp.eq.f32.partialorder %v3920, 8.507059e+37
      %v3922 = vand.u32 %v3069, 2147483648
      %v3923 = vor.u32 1.1754944e-38, %v3922
      %v3924 = vsel %vm3921, %v3923, %v3919
      %v3925 = vmul.f32 1.0, %v3924
      %v3926 = vrcp.pop %v3070
      %v3927 = vmul.f32 %v3070, %v3926
      %v3928 = vsub.f32 1.0, %v3927
      %v3929 = vmul.f32 %v3926, %v3928
      %v3930 = vadd.f32 %v3926, %v3929
      %vm3931 = vweird.f32 %v3070
      %vm3932 = vweird.f32 %v3926
      %vm3933 = vmor %vm3931, %vm3932
      %v3934 = vsel %vm3933, %v3926, %v3930
      %v3935 = vand.u32 2147483647, %v3070
      %vm3936 = vcmp.eq.f32.partialorder %v3935, 8.507059e+37
      %v3937 = vand.u32 %v3070, 2147483648
      %v3938 = vor.u32 1.1754944e-38, %v3937
      %v3939 = vsel %vm3936, %v3938, %v3934
      %v3940 = vmul.f32 1.0, %v3939
      %v3941 = vrcp.pop %v3071
      %v3942 = vmul.f32 %v3071, %v3941
      %v3943 = vsub.f32 1.0, %v3942
      %v3944 = vmul.f32 %v3941, %v3943
      %v3945 = vadd.f32 %v3941, %v3944
      %vm3946 = vweird.f32 %v3071
      %vm3947 = vweird.f32 %v3941
      %vm3948 = vmor %vm3946, %vm3947
      %v3949 = vsel %vm3948, %v3941, %v3945
      %v3950 = vand.u32 2147483647, %v3071
      %vm3951 = vcmp.eq.f32.partialorder %v3950, 8.507059e+37
      %v3952 = vand.u32 %v3071, 2147483648
      %v3953 = vor.u32 1.1754944e-38, %v3952
      %v3954 = vsel %vm3951, %v3953, %v3949
      %v3955 = vmul.f32 1.0, %v3954
      %v3956 = vrcp.pop %v3072
      %v3957 = vmul.f32 %v3072, %v3956
      %v3958 = vsub.f32 1.0, %v3957
      %v3959 = vmul.f32 %v3956, %v3958
      %v3960 = vadd.f32 %v3956, %v3959
      %vm3961 = vweird.f32 %v3072
      %vm3962 = vweird.f32 %v3956
      %vm3963 = vmor %vm3961, %vm3962
      %v3964 = vsel %vm3963, %v3956, %v3960
      %v3965 = vand.u32 2147483647, %v3072
      %vm3966 = vcmp.eq.f32.partialorder %v3965, 8.507059e+37
      %v3967 = vand.u32 %v3072, 2147483648
      %v3968 = vor.u32 1.1754944e-38, %v3967
      %v3969 = vsel %vm3966, %v3968, %v3964
      %v3970 = vmul.f32 1.0, %v3969
      %v3971 = vrcp.pop %v3073
      %v3972 = vmul.f32 %v3073, %v3971
      %v3973 = vsub.f32 1.0, %v3972
      %v3974 = vmul.f32 %v3971, %v3973
      %v3975 = vadd.f32 %v3971, %v3974
      %vm3976 = vweird.f32 %v3073
      %vm3977 = vweird.f32 %v3971
      %vm3978 = vmor %vm3976, %vm3977
      %v3979 = vsel %vm3978, %v3971, %v3975
      %v3980 = vand.u32 2147483647, %v3073
      %vm3981 = vcmp.eq.f32.partialorder %v3980, 8.507059e+37
      %v3982 = vand.u32 %v3073, 2147483648
      %v3983 = vor.u32 1.1754944e-38, %v3982
      %v3984 = vsel %vm3981, %v3983, %v3979
      %v3985 = vmul.f32 1.0, %v3984
      %v3986 = vrcp.pop %v3074
      %v3987 = vmul.f32 %v3074, %v3986
      %v3988 = vsub.f32 1.0, %v3987
      %v3989 = vmul.f32 %v3986, %v3988
      %v3990 = vadd.f32 %v3986, %v3989
      %vm3991 = vweird.f32 %v3074
      %vm3992 = vweird.f32 %v3986
      %vm3993 = vmor %vm3991, %vm3992
      %v3994 = vsel %vm3993, %v3986, %v3990
      %v3995 = vand.u32 2147483647, %v3074
      %vm3996 = vcmp.eq.f32.partialorder %v3995, 8.507059e+37
      %v3997 = vand.u32 %v3074, 2147483648
      %v3998 = vor.u32 1.1754944e-38, %v3997
      %v3999 = vsel %vm3996, %v3998, %v3994
      %v4000 = vmul.f32 1.0, %v3999
      %v4001 = vrcp.pop %v3075
      %v4002 = vmul.f32 %v3075, %v4001
      %v4003 = vsub.f32 1.0, %v4002
      %v4004 = vmul.f32 %v4001, %v4003
      %v4005 = vadd.f32 %v4001, %v4004
      %vm4006 = vweird.f32 %v3075
      %vm4007 = vweird.f32 %v4001
      %vm4008 = vmor %vm4006, %vm4007
      %v4009 = vsel %vm4008, %v4001, %v4005
      %v4010 = vand.u32 2147483647, %v3075
      %vm4011 = vcmp.eq.f32.partialorder %v4010, 8.507059e+37
      %v4012 = vand.u32 %v3075, 2147483648
      %v4013 = vor.u32 1.1754944e-38, %v4012
      %v4014 = vsel %vm4011, %v4013, %v4009
      %v4015 = vmul.f32 1.0, %v4014
      %v4016 = vrcp.pop %v3076
      %v4017 = vmul.f32 %v3076, %v4016
      %v4018 = vsub.f32 1.0, %v4017
      %v4019 = vmul.f32 %v4016, %v4018
      %v4020 = vadd.f32 %v4016, %v4019
      %vm4021 = vweird.f32 %v3076
      %vm4022 = vweird.f32 %v4016
      %vm4023 = vmor %vm4021, %vm4022
      %v4024 = vsel %vm4023, %v4016, %v4020
      %v4025 = vand.u32 2147483647, %v3076
      %vm4026 = vcmp.eq.f32.partialorder %v4025, 8.507059e+37
      %v4027 = vand.u32 %v3076, 2147483648
      %v4028 = vor.u32 1.1754944e-38, %v4027
      %v4029 = vsel %vm4026, %v4028, %v4024
      %v4030 = vmul.f32 1.0, %v4029
      %v4031 = vrcp.pop %v3077
      %v4032 = vmul.f32 %v3077, %v4031
      %v4033 = vsub.f32 1.0, %v4032
      %v4034 = vmul.f32 %v4031, %v4033
      %v4035 = vadd.f32 %v4031, %v4034
      %vm4036 = vweird.f32 %v3077
      %vm4037 = vweird.f32 %v4031
      %vm4038 = vmor %vm4036, %vm4037
      %v4039 = vsel %vm4038, %v4031, %v4035
      %v4040 = vand.u32 2147483647, %v3077
      %vm4041 = vcmp.eq.f32.partialorder %v4040, 8.507059e+37
      %v4042 = vand.u32 %v3077, 2147483648
      %v4043 = vor.u32 1.1754944e-38, %v4042
      %v4044 = vsel %vm4041, %v4043, %v4039
      %v4045 = vmul.f32 1.0, %v4044
      %v4046 = vrcp.pop %v3078
      %v4047 = vmul.f32 %v3078, %v4046
      %v4048 = vsub.f32 1.0, %v4047
      %v4049 = vmul.f32 %v4046, %v4048
      %v4050 = vadd.f32 %v4046, %v4049
      %vm4051 = vweird.f32 %v3078
      %vm4052 = vweird.f32 %v4046
      %vm4053 = vmor %vm4051, %vm4052
      %v4054 = vsel %vm4053, %v4046, %v4050
      %v4055 = vand.u32 2147483647, %v3078
      %vm4056 = vcmp.eq.f32.partialorder %v4055, 8.507059e+37
      %v4057 = vand.u32 %v3078, 2147483648
      %v4058 = vor.u32 1.1754944e-38, %v4057
      %v4059 = vsel %vm4056, %v4058, %v4054
      %v4060 = vmul.f32 1.0, %v4059
      %v4061 = vrcp.pop %v3079
      %v4062 = vmul.f32 %v3079, %v4061
      %v4063 = vsub.f32 1.0, %v4062
      %v4064 = vmul.f32 %v4061, %v4063
      %v4065 = vadd.f32 %v4061, %v4064
      %vm4066 = vweird.f32 %v3079
      %vm4067 = vweird.f32 %v4061
      %vm4068 = vmor %vm4066, %vm4067
      %v4069 = vsel %vm4068, %v4061, %v4065
      %v4070 = vand.u32 2147483647, %v3079
      %vm4071 = vcmp.eq.f32.partialorder %v4070, 8.507059e+37
      %v4072 = vand.u32 %v3079, 2147483648
      %v4073 = vor.u32 1.1754944e-38, %v4072
      %v4074 = vsel %vm4071, %v4073, %v4069
      %v4075 = vmul.f32 1.0, %v4074
      %v4076 = vrcp.pop %v3080
      %v4077 = vmul.f32 %v3080, %v4076
      %v4078 = vsub.f32 1.0, %v4077
      %v4079 = vmul.f32 %v4076, %v4078
      %v4080 = vadd.f32 %v4076, %v4079
      %vm4081 = vweird.f32 %v3080
      %vm4082 = vweird.f32 %v4076
      %vm4083 = vmor %vm4081, %vm4082
      %v4084 = vsel %vm4083, %v4076, %v4080
      %v4085 = vand.u32 2147483647, %v3080
      %vm4086 = vcmp.eq.f32.partialorder %v4085, 8.507059e+37
      %v4087 = vand.u32 %v3080, 2147483648
      %v4088 = vor.u32 1.1754944e-38, %v4087
      %v4089 = vsel %vm4086, %v4088, %v4084
      %v4090 = vmul.f32 1.0, %v4089
      %v4091 = vrcp.pop %v3081
      %v4092 = vmul.f32 %v3081, %v4091
      %v4093 = vsub.f32 1.0, %v4092
      %v4094 = vmul.f32 %v4091, %v4093
      %v4095 = vadd.f32 %v4091, %v4094
      %vm4096 = vweird.f32 %v3081
      %vm4097 = vweird.f32 %v4091
      %vm4098 = vmor %vm4096, %vm4097
      %v4099 = vsel %vm4098, %v4091, %v4095
      %v4100 = vand.u32 2147483647, %v3081
      %vm4101 = vcmp.eq.f32.partialorder %v4100, 8.507059e+37
      %v4102 = vand.u32 %v3081, 2147483648
      %v4103 = vor.u32 1.1754944e-38, %v4102
      %v4104 = vsel %vm4101, %v4103, %v4099
      %v4105 = vmul.f32 1.0, %v4104
      %v4106 = vrcp.pop %v3082
      %v4107 = vmul.f32 %v3082, %v4106
      %v4108 = vsub.f32 1.0, %v4107
      %v4109 = vmul.f32 %v4106, %v4108
      %v4110 = vadd.f32 %v4106, %v4109
      %vm4111 = vweird.f32 %v3082
      %vm4112 = vweird.f32 %v4106
      %vm4113 = vmor %vm4111, %vm4112
      %v4114 = vsel %vm4113, %v4106, %v4110
      %v4115 = vand.u32 2147483647, %v3082
      %vm4116 = vcmp.eq.f32.partialorder %v4115, 8.507059e+37
      %v4117 = vand.u32 %v3082, 2147483648
      %v4118 = vor.u32 1.1754944e-38, %v4117
      %v4119 = vsel %vm4116, %v4118, %v4114
      %v4120 = vmul.f32 1.0, %v4119
      %v4121 = vrcp.pop %v3083
      %v4122 = vmul.f32 %v3083, %v4121
      %v4123 = vsub.f32 1.0, %v4122
      %v4124 = vmul.f32 %v4121, %v4123
      %v4125 = vadd.f32 %v4121, %v4124
      %vm4126 = vweird.f32 %v3083
      %vm4127 = vweird.f32 %v4121
      %vm4128 = vmor %vm4126, %vm4127
      %v4129 = vsel %vm4128, %v4121, %v4125
      %v4130 = vand.u32 2147483647, %v3083
      %vm4131 = vcmp.eq.f32.partialorder %v4130, 8.507059e+37
      %v4132 = vand.u32 %v3083, 2147483648
      %v4133 = vor.u32 1.1754944e-38, %v4132
      %v4134 = vsel %vm4131, %v4133, %v4129
      %v4135 = vmul.f32 1.0, %v4134
      %v4136 = vrcp.pop %v3084
      %v4137 = vmul.f32 %v3084, %v4136
      %v4138 = vsub.f32 1.0, %v4137
      %v4139 = vmul.f32 %v4136, %v4138
      %v4140 = vadd.f32 %v4136, %v4139
      %vm4141 = vweird.f32 %v3084
      %vm4142 = vweird.f32 %v4136
      %vm4143 = vmor %vm4141, %vm4142
      %v4144 = vsel %vm4143, %v4136, %v4140
      %v4145 = vand.u32 2147483647, %v3084
      %vm4146 = vcmp.eq.f32.partialorder %v4145, 8.507059e+37
      %v4147 = vand.u32 %v3084, 2147483648
      %v4148 = vor.u32 1.1754944e-38, %v4147
      %v4149 = vsel %vm4146, %v4148, %v4144
      %v4150 = vmul.f32 1.0, %v4149
      %v4151 = vrcp.pop %v3085
      %v4152 = vmul.f32 %v3085, %v4151
      %v4153 = vsub.f32 1.0, %v4152
      %v4154 = vmul.f32 %v4151, %v4153
      %v4155 = vadd.f32 %v4151, %v4154
      %vm4156 = vweird.f32 %v3085
      %vm4157 = vweird.f32 %v4151
      %vm4158 = vmor %vm4156, %vm4157
      %v4159 = vsel %vm4158, %v4151, %v4155
      %v4160 = vand.u32 2147483647, %v3085
      %vm4161 = vcmp.eq.f32.partialorder %v4160, 8.507059e+37
      %v4162 = vand.u32 %v3085, 2147483648
      %v4163 = vor.u32 1.1754944e-38, %v4162
      %v4164 = vsel %vm4161, %v4163, %v4159
      %v4165 = vmul.f32 1.0, %v4164
      %v4166 = vrcp.pop %v3086
      %v4167 = vmul.f32 %v3086, %v4166
      %v4168 = vsub.f32 1.0, %v4167
      %v4169 = vmul.f32 %v4166, %v4168
      %v4170 = vadd.f32 %v4166, %v4169
      %vm4171 = vweird.f32 %v3086
      %vm4172 = vweird.f32 %v4166
      %vm4173 = vmor %vm4171, %vm4172
      %v4174 = vsel %vm4173, %v4166, %v4170
      %v4175 = vand.u32 2147483647, %v3086
      %vm4176 = vcmp.eq.f32.partialorder %v4175, 8.507059e+37
      %v4177 = vand.u32 %v3086, 2147483648
      %v4178 = vor.u32 1.1754944e-38, %v4177
      %v4179 = vsel %vm4176, %v4178, %v4174
      %v4180 = vmul.f32 1.0, %v4179
      %v4181 = vrcp.pop %v3087
      %v4182 = vmul.f32 %v3087, %v4181
      %v4183 = vsub.f32 1.0, %v4182
      %v4184 = vmul.f32 %v4181, %v4183
      %v4185 = vadd.f32 %v4181, %v4184
      %vm4186 = vweird.f32 %v3087
      %vm4187 = vweird.f32 %v4181
      %vm4188 = vmor %vm4186, %vm4187
      %v4189 = vsel %vm4188, %v4181, %v4185
      %v4190 = vand.u32 2147483647, %v3087
      %vm4191 = vcmp.eq.f32.partialorder %v4190, 8.507059e+37
      %v4192 = vand.u32 %v3087, 2147483648
      %v4193 = vor.u32 1.1754944e-38, %v4192
      %v4194 = vsel %vm4191, %v4193, %v4189
      %v4195 = vmul.f32 1.0, %v4194
      %v4196 = vrcp.pop %v3088
      %v4197 = vmul.f32 %v3088, %v4196
      %v4198 = vsub.f32 1.0, %v4197
      %v4199 = vmul.f32 %v4196, %v4198
      %v4200 = vadd.f32 %v4196, %v4199
      %vm4201 = vweird.f32 %v3088
      %vm4202 = vweird.f32 %v4196
      %vm4203 = vmor %vm4201, %vm4202
      %v4204 = vsel %vm4203, %v4196, %v4200
      %v4205 = vand.u32 2147483647, %v3088
      %vm4206 = vcmp.eq.f32.partialorder %v4205, 8.507059e+37
      %v4207 = vand.u32 %v3088, 2147483648
      %v4208 = vor.u32 1.1754944e-38, %v4207
      %v4209 = vsel %vm4206, %v4208, %v4204
      %v4210 = vmul.f32 1.0, %v4209
      %v4211 = vrcp.pop %v3089
      %v4212 = vmul.f32 %v3089, %v4211
      %v4213 = vsub.f32 1.0, %v4212
      %v4214 = vmul.f32 %v4211, %v4213
      %v4215 = vadd.f32 %v4211, %v4214
      %vm4216 = vweird.f32 %v3089
      %vm4217 = vweird.f32 %v4211
      %vm4218 = vmor %vm4216, %vm4217
      %v4219 = vsel %vm4218, %v4211, %v4215
      %v4220 = vand.u32 2147483647, %v3089
      %vm4221 = vcmp.eq.f32.partialorder %v4220, 8.507059e+37
      %v4222 = vand.u32 %v3089, 2147483648
      %v4223 = vor.u32 1.1754944e-38, %v4222
      %v4224 = vsel %vm4221, %v4223, %v4219
      %v4225 = vmul.f32 1.0, %v4224
      %v4226 = vrcp.pop %v3090
      %v4227 = vmul.f32 %v3090, %v4226
      %v4228 = vsub.f32 1.0, %v4227
      %v4229 = vmul.f32 %v4226, %v4228
      %v4230 = vadd.f32 %v4226, %v4229
      %vm4231 = vweird.f32 %v3090
      %vm4232 = vweird.f32 %v4226
      %vm4233 = vmor %vm4231, %vm4232
      %v4234 = vsel %vm4233, %v4226, %v4230
      %v4235 = vand.u32 2147483647, %v3090
      %vm4236 = vcmp.eq.f32.partialorder %v4235, 8.507059e+37
      %v4237 = vand.u32 %v3090, 2147483648
      %v4238 = vor.u32 1.1754944e-38, %v4237
      %v4239 = vsel %vm4236, %v4238, %v4234
      %v4240 = vmul.f32 1.0, %v4239
      %v4241 = vrcp.pop %v3091
      %v4242 = vmul.f32 %v3091, %v4241
      %v4243 = vsub.f32 1.0, %v4242
      %v4244 = vmul.f32 %v4241, %v4243
      %v4245 = vadd.f32 %v4241, %v4244
      %vm4246 = vweird.f32 %v3091
      %vm4247 = vweird.f32 %v4241
      %vm4248 = vmor %vm4246, %vm4247
      %v4249 = vsel %vm4248, %v4241, %v4245
      %v4250 = vand.u32 2147483647, %v3091
      %vm4251 = vcmp.eq.f32.partialorder %v4250, 8.507059e+37
      %v4252 = vand.u32 %v3091, 2147483648
      %v4253 = vor.u32 1.1754944e-38, %v4252
      %v4254 = vsel %vm4251, %v4253, %v4249
      %v4255 = vmul.f32 1.0, %v4254
      %v4256 = vrcp.pop %v3092
      %v4257 = vmul.f32 %v3092, %v4256
      %v4258 = vsub.f32 1.0, %v4257
      %v4259 = vmul.f32 %v4256, %v4258
      %v4260 = vadd.f32 %v4256, %v4259
      %vm4261 = vweird.f32 %v3092
      %vm4262 = vweird.f32 %v4256
      %vm4263 = vmor %vm4261, %vm4262
      %v4264 = vsel %vm4263, %v4256, %v4260
      %v4265 = vand.u32 2147483647, %v3092
      %vm4266 = vcmp.eq.f32.partialorder %v4265, 8.507059e+37
      %v4267 = vand.u32 %v3092, 2147483648
      %v4268 = vor.u32 1.1754944e-38, %v4267
      %v4269 = vsel %vm4266, %v4268, %v4264
      %v4270 = vmul.f32 1.0, %v4269
      %v4271 = vrcp.pop %v3093
      %v4272 = vmul.f32 %v3093, %v4271
      %v4273 = vsub.f32 1.0, %v4272
      %v4274 = vmul.f32 %v4271, %v4273
      %v4275 = vadd.f32 %v4271, %v4274
      %vm4276 = vweird.f32 %v3093
      %vm4277 = vweird.f32 %v4271
      %vm4278 = vmor %vm4276, %vm4277
      %v4279 = vsel %vm4278, %v4271, %v4275
      %v4280 = vand.u32 2147483647, %v3093
      %vm4281 = vcmp.eq.f32.partialorder %v4280, 8.507059e+37
      %v4282 = vand.u32 %v3093, 2147483648
      %v4283 = vor.u32 1.1754944e-38, %v4282
      %v4284 = vsel %vm4281, %v4283, %v4279
      %v4285 = vmul.f32 1.0, %v4284
      %v4286 = vrcp.pop %v3094
      %v4287 = vmul.f32 %v3094, %v4286
      %v4288 = vsub.f32 1.0, %v4287
      %v4289 = vmul.f32 %v4286, %v4288
      %v4290 = vadd.f32 %v4286, %v4289
      %vm4291 = vweird.f32 %v3094
      %vm4292 = vweird.f32 %v4286
      %vm4293 = vmor %vm4291, %vm4292
      %v4294 = vsel %vm4293, %v4286, %v4290
      %v4295 = vand.u32 2147483647, %v3094
      %vm4296 = vcmp.eq.f32.partialorder %v4295, 8.507059e+37
      %v4297 = vand.u32 %v3094, 2147483648
      %v4298 = vor.u32 1.1754944e-38, %v4297
      %v4299 = vsel %vm4296, %v4298, %v4294
      %v4300 = vmul.f32 1.0, %v4299
      %v4301 = vrcp.pop %v3095
      %v4302 = vmul.f32 %v3095, %v4301
      %v4303 = vsub.f32 1.0, %v4302
      %v4304 = vmul.f32 %v4301, %v4303
      %v4305 = vadd.f32 %v4301, %v4304
      %vm4306 = vweird.f32 %v3095
      %vm4307 = vweird.f32 %v4301
      %vm4308 = vmor %vm4306, %vm4307
      %v4309 = vsel %vm4308, %v4301, %v4305
      %v4310 = vand.u32 2147483647, %v3095
      %vm4311 = vcmp.eq.f32.partialorder %v4310, 8.507059e+37
      %v4312 = vand.u32 %v3095, 2147483648
      %v4313 = vor.u32 1.1754944e-38, %v4312
      %v4314 = vsel %vm4311, %v4313, %v4309
      %v4315 = vmul.f32 1.0, %v4314
      %v4316 = vrcp.pop %v3096
      %v4317 = vmul.f32 %v3096, %v4316
      %v4318 = vsub.f32 1.0, %v4317
      %v4319 = vmul.f32 %v4316, %v4318
      %v4320 = vadd.f32 %v4316, %v4319
      %vm4321 = vweird.f32 %v3096
      %vm4322 = vweird.f32 %v4316
      %vm4323 = vmor %vm4321, %vm4322
      %v4324 = vsel %vm4323, %v4316, %v4320
      %v4325 = vand.u32 2147483647, %v3096
      %vm4326 = vcmp.eq.f32.partialorder %v4325, 8.507059e+37
      %v4327 = vand.u32 %v3096, 2147483648
      %v4328 = vor.u32 1.1754944e-38, %v4327
      %v4329 = vsel %vm4326, %v4328, %v4324
      %v4330 = vmul.f32 1.0, %v4329
      %v4331 = vrcp.pop %v3097
      %v4332 = vmul.f32 %v3097, %v4331
      %v4333 = vsub.f32 1.0, %v4332
      %v4334 = vmul.f32 %v4331, %v4333
      %v4335 = vadd.f32 %v4331, %v4334
      %vm4336 = vweird.f32 %v3097
      %vm4337 = vweird.f32 %v4331
      %vm4338 = vmor %vm4336, %vm4337
      %v4339 = vsel %vm4338, %v4331, %v4335
      %v4340 = vand.u32 2147483647, %v3097
      %vm4341 = vcmp.eq.f32.partialorder %v4340, 8.507059e+37
      %v4342 = vand.u32 %v3097, 2147483648
      %v4343 = vor.u32 1.1754944e-38, %v4342
      %v4344 = vsel %vm4341, %v4343, %v4339
      %v4345 = vmul.f32 1.0, %v4344
      %v4346 = vrcp.pop %v3098
      %v4347 = vmul.f32 %v3098, %v4346
      %v4348 = vsub.f32 1.0, %v4347
      %v4349 = vmul.f32 %v4346, %v4348
      %v4350 = vadd.f32 %v4346, %v4349
      %vm4351 = vweird.f32 %v3098
      %vm4352 = vweird.f32 %v4346
      %vm4353 = vmor %vm4351, %vm4352
      %v4354 = vsel %vm4353, %v4346, %v4350
      %v4355 = vand.u32 2147483647, %v3098
      %vm4356 = vcmp.eq.f32.partialorder %v4355, 8.507059e+37
      %v4357 = vand.u32 %v3098, 2147483648
      %v4358 = vor.u32 1.1754944e-38, %v4357
      %v4359 = vsel %vm4356, %v4358, %v4354
      %v4360 = vmul.f32 1.0, %v4359
      %v4361 = vrcp.pop %v3099
      %v4362 = vmul.f32 %v3099, %v4361
      %v4363 = vsub.f32 1.0, %v4362
      %v4364 = vmul.f32 %v4361, %v4363
      %v4365 = vadd.f32 %v4361, %v4364
      %vm4366 = vweird.f32 %v3099
      %vm4367 = vweird.f32 %v4361
      %vm4368 = vmor %vm4366, %vm4367
      %v4369 = vsel %vm4368, %v4361, %v4365
      %v4370 = vand.u32 2147483647, %v3099
      %vm4371 = vcmp.eq.f32.partialorder %v4370, 8.507059e+37
      %v4372 = vand.u32 %v3099, 2147483648
      %v4373 = vor.u32 1.1754944e-38, %v4372
      %v4374 = vsel %vm4371, %v4373, %v4369
      %v4375 = vmul.f32 1.0, %v4374
      %v4376 = vrcp.pop %v3100
      %v4377 = vmul.f32 %v3100, %v4376
      %v4378 = vsub.f32 1.0, %v4377
      %v4379 = vmul.f32 %v4376, %v4378
      %v4380 = vadd.f32 %v4376, %v4379
      %vm4381 = vweird.f32 %v3100
      %vm4382 = vweird.f32 %v4376
      %vm4383 = vmor %vm4381, %vm4382
      %v4384 = vsel %vm4383, %v4376, %v4380
      %v4385 = vand.u32 2147483647, %v3100
      %vm4386 = vcmp.eq.f32.partialorder %v4385, 8.507059e+37
      %v4387 = vand.u32 %v3100, 2147483648
      %v4388 = vor.u32 1.1754944e-38, %v4387
      %v4389 = vsel %vm4386, %v4388, %v4384
      %v4390 = vmul.f32 1.0, %v4389
      %v4391 = vrcp.pop %v3101
      %v4392 = vmul.f32 %v3101, %v4391
      %v4393 = vsub.f32 1.0, %v4392
      %v4394 = vmul.f32 %v4391, %v4393
      %v4395 = vadd.f32 %v4391, %v4394
      %vm4396 = vweird.f32 %v3101
      %vm4397 = vweird.f32 %v4391
      %vm4398 = vmor %vm4396, %vm4397
      %v4399 = vsel %vm4398, %v4391, %v4395
      %v4400 = vand.u32 2147483647, %v3101
      %vm4401 = vcmp.eq.f32.partialorder %v4400, 8.507059e+37
      %v4402 = vand.u32 %v3101, 2147483648
      %v4403 = vor.u32 1.1754944e-38, %v4402
      %v4404 = vsel %vm4401, %v4403, %v4399
      %v4405 = vmul.f32 1.0, %v4404
      %v4406 = vrcp.pop %v3102
      %v4407 = vmul.f32 %v3102, %v4406
      %v4408 = vsub.f32 1.0, %v4407
      %v4409 = vmul.f32 %v4406, %v4408
      %v4410 = vadd.f32 %v4406, %v4409
      %vm4411 = vweird.f32 %v3102
      %vm4412 = vweird.f32 %v4406
      %vm4413 = vmor %vm4411, %vm4412
      %v4414 = vsel %vm4413, %v4406, %v4410
      %v4415 = vand.u32 2147483647, %v3102
      %vm4416 = vcmp.eq.f32.partialorder %v4415, 8.507059e+37
      %v4417 = vand.u32 %v3102, 2147483648
      %v4418 = vor.u32 1.1754944e-38, %v4417
      %v4419 = vsel %vm4416, %v4418, %v4414
      %v4420 = vmul.f32 1.0, %v4419
      %v4421 = vrcp.pop %v3103
      %v4422 = vmul.f32 %v3103, %v4421
      %v4423 = vsub.f32 1.0, %v4422
      %v4424 = vmul.f32 %v4421, %v4423
      %v4425 = vadd.f32 %v4421, %v4424
      %vm4426 = vweird.f32 %v3103
      %vm4427 = vweird.f32 %v4421
      %vm4428 = vmor %vm4426, %vm4427
      %v4429 = vsel %vm4428, %v4421, %v4425
      %v4430 = vand.u32 2147483647, %v3103
      %vm4431 = vcmp.eq.f32.partialorder %v4430, 8.507059e+37
      %v4432 = vand.u32 %v3103, 2147483648
      %v4433 = vor.u32 1.1754944e-38, %v4432
      %v4434 = vsel %vm4431, %v4433, %v4429
      %v4435 = vmul.f32 1.0, %v4434
      %v4436 = vrcp.pop %v3104
      %v4437 = vmul.f32 %v3104, %v4436
      %v4438 = vsub.f32 1.0, %v4437
      %v4439 = vmul.f32 %v4436, %v4438
      %v4440 = vadd.f32 %v4436, %v4439
      %vm4441 = vweird.f32 %v3104
      %vm4442 = vweird.f32 %v4436
      %vm4443 = vmor %vm4441, %vm4442
      %v4444 = vsel %vm4443, %v4436, %v4440
      %v4445 = vand.u32 2147483647, %v3104
      %vm4446 = vcmp.eq.f32.partialorder %v4445, 8.507059e+37
      %v4447 = vand.u32 %v3104, 2147483648
      %v4448 = vor.u32 1.1754944e-38, %v4447
      %v4449 = vsel %vm4446, %v4448, %v4444
      %v4450 = vmul.f32 1.0, %v4449
      %v4451 = vrcp.pop %v3105
      %v4452 = vmul.f32 %v3105, %v4451
      %v4453 = vsub.f32 1.0, %v4452
      %v4454 = vmul.f32 %v4451, %v4453
      %v4455 = vadd.f32 %v4451, %v4454
      %vm4456 = vweird.f32 %v3105
      %vm4457 = vweird.f32 %v4451
      %vm4458 = vmor %vm4456, %vm4457
      %v4459 = vsel %vm4458, %v4451, %v4455
      %v4460 = vand.u32 2147483647, %v3105
      %vm4461 = vcmp.eq.f32.partialorder %v4460, 8.507059e+37
      %v4462 = vand.u32 %v3105, 2147483648
      %v4463 = vor.u32 1.1754944e-38, %v4462
      %v4464 = vsel %vm4461, %v4463, %v4459
      %v4465 = vmul.f32 1.0, %v4464
      %v4466 = vrcp.pop %v3106
      %v4467 = vmul.f32 %v3106, %v4466
      %v4468 = vsub.f32 1.0, %v4467
      %v4469 = vmul.f32 %v4466, %v4468
      %v4470 = vadd.f32 %v4466, %v4469
      %vm4471 = vweird.f32 %v3106
      %vm4472 = vweird.f32 %v4466
      %vm4473 = vmor %vm4471, %vm4472
      %v4474 = vsel %vm4473, %v4466, %v4470
      %v4475 = vand.u32 2147483647, %v3106
      %vm4476 = vcmp.eq.f32.partialorder %v4475, 8.507059e+37
      %v4477 = vand.u32 %v3106, 2147483648
      %v4478 = vor.u32 1.1754944e-38, %v4477
      %v4479 = vsel %vm4476, %v4478, %v4474
      %v4480 = vmul.f32 1.0, %v4479
      %v4481 = vrcp.pop %v3107
      %v4482 = vmul.f32 %v3107, %v4481
      %v4483 = vsub.f32 1.0, %v4482
      %v4484 = vmul.f32 %v4481, %v4483
      %v4485 = vadd.f32 %v4481, %v4484
      %vm4486 = vweird.f32 %v3107
      %vm4487 = vweird.f32 %v4481
      %vm4488 = vmor %vm4486, %vm4487
      %v4489 = vsel %vm4488, %v4481, %v4485
      %v4490 = vand.u32 2147483647, %v3107
      %vm4491 = vcmp.eq.f32.partialorder %v4490, 8.507059e+37
      %v4492 = vand.u32 %v3107, 2147483648
      %v4493 = vor.u32 1.1754944e-38, %v4492
      %v4494 = vsel %vm4491, %v4493, %v4489
      %v4495 = vmul.f32 1.0, %v4494
      %v4496 = vrcp.pop %v3108
      %v4497 = vmul.f32 %v3108, %v4496
      %v4498 = vsub.f32 1.0, %v4497
      %v4499 = vmul.f32 %v4496, %v4498
      %v4500 = vadd.f32 %v4496, %v4499
      %vm4501 = vweird.f32 %v3108
      %vm4502 = vweird.f32 %v4496
      %vm4503 = vmor %vm4501, %vm4502
      %v4504 = vsel %vm4503, %v4496, %v4500
      %v4505 = vand.u32 2147483647, %v3108
      %vm4506 = vcmp.eq.f32.partialorder %v4505, 8.507059e+37
      %v4507 = vand.u32 %v3108, 2147483648
      %v4508 = vor.u32 1.1754944e-38, %v4507
      %v4509 = vsel %vm4506, %v4508, %v4504
      %v4510 = vmul.f32 1.0, %v4509
      %v4511 = vrcp.pop %v3109
      %v4512 = vmul.f32 %v3109, %v4511
      %v4513 = vsub.f32 1.0, %v4512
      %v4514 = vmul.f32 %v4511, %v4513
      %v4515 = vadd.f32 %v4511, %v4514
      %vm4516 = vweird.f32 %v3109
      %vm4517 = vweird.f32 %v4511
      %vm4518 = vmor %vm4516, %vm4517
      %v4519 = vsel %vm4518, %v4511, %v4515
      %v4520 = vand.u32 2147483647, %v3109
      %vm4521 = vcmp.eq.f32.partialorder %v4520, 8.507059e+37
      %v4522 = vand.u32 %v3109, 2147483648
      %v4523 = vor.u32 1.1754944e-38, %v4522
      %v4524 = vsel %vm4521, %v4523, %v4519
      %v4525 = vmul.f32 1.0, %v4524
      %v4526 = vrcp.pop %v3110
      %v4527 = vmul.f32 %v3110, %v4526
      %v4528 = vsub.f32 1.0, %v4527
      %v4529 = vmul.f32 %v4526, %v4528
      %v4530 = vadd.f32 %v4526, %v4529
      %vm4531 = vweird.f32 %v3110
      %vm4532 = vweird.f32 %v4526
      %vm4533 = vmor %vm4531, %vm4532
      %v4534 = vsel %vm4533, %v4526, %v4530
      %v4535 = vand.u32 2147483647, %v3110
      %vm4536 = vcmp.eq.f32.partialorder %v4535, 8.507059e+37
      %v4537 = vand.u32 %v3110, 2147483648
      %v4538 = vor.u32 1.1754944e-38, %v4537
      %v4539 = vsel %vm4536, %v4538, %v4534
      %v4540 = vmul.f32 1.0, %v4539
      %v4541 = vrcp.pop %v3111
      %v4542 = vmul.f32 %v3111, %v4541
      %v4543 = vsub.f32 1.0, %v4542
      %v4544 = vmul.f32 %v4541, %v4543
      %v4545 = vadd.f32 %v4541, %v4544
      %vm4546 = vweird.f32 %v3111
      %vm4547 = vweird.f32 %v4541
      %vm4548 = vmor %vm4546, %vm4547
      %v4549 = vsel %vm4548, %v4541, %v4545
      %v4550 = vand.u32 2147483647, %v3111
      %vm4551 = vcmp.eq.f32.partialorder %v4550, 8.507059e+37
      %v4552 = vand.u32 %v3111, 2147483648
      %v4553 = vor.u32 1.1754944e-38, %v4552
      %v4554 = vsel %vm4551, %v4553, %v4549
      %v4555 = vmul.f32 1.0, %v4554
      %v4556 = vrcp.pop %v3112
      %v4557 = vmul.f32 %v3112, %v4556
      %v4558 = vsub.f32 1.0, %v4557
      %v4559 = vmul.f32 %v4556, %v4558
      %v4560 = vadd.f32 %v4556, %v4559
      %vm4561 = vweird.f32 %v3112
      %vm4562 = vweird.f32 %v4556
      %vm4563 = vmor %vm4561, %vm4562
      %v4564 = vsel %vm4563, %v4556, %v4560
      %v4565 = vand.u32 2147483647, %v3112
      %vm4566 = vcmp.eq.f32.partialorder %v4565, 8.507059e+37
      %v4567 = vand.u32 %v3112, 2147483648
      %v4568 = vor.u32 1.1754944e-38, %v4567
      %v4569 = vsel %vm4566, %v4568, %v4564
      %v4570 = vmul.f32 1.0, %v4569
      %v4571 = vrcp.pop %v3113
      %v4572 = vmul.f32 %v3113, %v4571
      %v4573 = vsub.f32 1.0, %v4572
      %v4574 = vmul.f32 %v4571, %v4573
      %v4575 = vadd.f32 %v4571, %v4574
      %vm4576 = vweird.f32 %v3113
      %vm4577 = vweird.f32 %v4571
      %vm4578 = vmor %vm4576, %vm4577
      %v4579 = vsel %vm4578, %v4571, %v4575
      %v4580 = vand.u32 2147483647, %v3113
      %vm4581 = vcmp.eq.f32.partialorder %v4580, 8.507059e+37
      %v4582 = vand.u32 %v3113, 2147483648
      %v4583 = vor.u32 1.1754944e-38, %v4582
      %v4584 = vsel %vm4581, %v4583, %v4579
      %v4585 = vmul.f32 1.0, %v4584
      %v4586 = vrcp.pop %v3114
      %v4587 = vmul.f32 %v3114, %v4586
      %v4588 = vsub.f32 1.0, %v4587
      %v4589 = vmul.f32 %v4586, %v4588
      %v4590 = vadd.f32 %v4586, %v4589
      %vm4591 = vweird.f32 %v3114
      %vm4592 = vweird.f32 %v4586
      %vm4593 = vmor %vm4591, %vm4592
      %v4594 = vsel %vm4593, %v4586, %v4590
      %v4595 = vand.u32 2147483647, %v3114
      %vm4596 = vcmp.eq.f32.partialorder %v4595, 8.507059e+37
      %v4597 = vand.u32 %v3114, 2147483648
      %v4598 = vor.u32 1.1754944e-38, %v4597
      %v4599 = vsel %vm4596, %v4598, %v4594
      %v4600 = vmul.f32 1.0, %v4599
      %v4601 = vrcp.pop %v3115
      %v4602 = vmul.f32 %v3115, %v4601
      %v4603 = vsub.f32 1.0, %v4602
      %v4604 = vmul.f32 %v4601, %v4603
      %v4605 = vadd.f32 %v4601, %v4604
      %vm4606 = vweird.f32 %v3115
      %vm4607 = vweird.f32 %v4601
      %vm4608 = vmor %vm4606, %vm4607
      %v4609 = vsel %vm4608, %v4601, %v4605
      %v4610 = vand.u32 2147483647, %v3115
      %vm4611 = vcmp.eq.f32.partialorder %v4610, 8.507059e+37
      %v4612 = vand.u32 %v3115, 2147483648
      %v4613 = vor.u32 1.1754944e-38, %v4612
      %v4614 = vsel %vm4611, %v4613, %v4609
      %v4615 = vmul.f32 1.0, %v4614
      %v4616 = vrcp.pop %v3116
      %v4617 = vmul.f32 %v3116, %v4616
      %v4618 = vsub.f32 1.0, %v4617
      %v4619 = vmul.f32 %v4616, %v4618
      %v4620 = vadd.f32 %v4616, %v4619
      %vm4621 = vweird.f32 %v3116
      %vm4622 = vweird.f32 %v4616
      %vm4623 = vmor %vm4621, %vm4622
      %v4624 = vsel %vm4623, %v4616, %v4620
      %v4625 = vand.u32 2147483647, %v3116
      %vm4626 = vcmp.eq.f32.partialorder %v4625, 8.507059e+37
      %v4627 = vand.u32 %v3116, 2147483648
      %v4628 = vor.u32 1.1754944e-38, %v4627
      %v4629 = vsel %vm4626, %v4628, %v4624
      %v4630 = vmul.f32 1.0, %v4629
      %v4631 = vrcp.pop %v3117
      %v4632 = vmul.f32 %v3117, %v4631
      %v4633 = vsub.f32 1.0, %v4632
      %v4634 = vmul.f32 %v4631, %v4633
      %v4635 = vadd.f32 %v4631, %v4634
      %vm4636 = vweird.f32 %v3117
      %vm4637 = vweird.f32 %v4631
      %vm4638 = vmor %vm4636, %vm4637
      %v4639 = vsel %vm4638, %v4631, %v4635
      %v4640 = vand.u32 2147483647, %v3117
      %vm4641 = vcmp.eq.f32.partialorder %v4640, 8.507059e+37
      %v4642 = vand.u32 %v3117, 2147483648
      %v4643 = vor.u32 1.1754944e-38, %v4642
      %v4644 = vsel %vm4641, %v4643, %v4639
      %v4645 = vmul.f32 1.0, %v4644
      %v4646 = vrcp.pop %v3118
      %v4647 = vmul.f32 %v3118, %v4646
      %v4648 = vsub.f32 1.0, %v4647
      %v4649 = vmul.f32 %v4646, %v4648
      %v4650 = vadd.f32 %v4646, %v4649
      %vm4651 = vweird.f32 %v3118
      %vm4652 = vweird.f32 %v4646
      %vm4653 = vmor %vm4651, %vm4652
      %v4654 = vsel %vm4653, %v4646, %v4650
      %v4655 = vand.u32 2147483647, %v3118
      %vm4656 = vcmp.eq.f32.partialorder %v4655, 8.507059e+37
      %v4657 = vand.u32 %v3118, 2147483648
      %v4658 = vor.u32 1.1754944e-38, %v4657
      %v4659 = vsel %vm4656, %v4658, %v4654
      %v4660 = vmul.f32 1.0, %v4659
      %v4661 = vrcp.pop %v3119
      %v4662 = vmul.f32 %v3119, %v4661
      %v4663 = vsub.f32 1.0, %v4662
      %v4664 = vmul.f32 %v4661, %v4663
      %v4665 = vadd.f32 %v4661, %v4664
      %vm4666 = vweird.f32 %v3119
      %vm4667 = vweird.f32 %v4661
      %vm4668 = vmor %vm4666, %vm4667
      %v4669 = vsel %vm4668, %v4661, %v4665
      %v4670 = vand.u32 2147483647, %v3119
      %vm4671 = vcmp.eq.f32.partialorder %v4670, 8.507059e+37
      %v4672 = vand.u32 %v3119, 2147483648
      %v4673 = vor.u32 1.1754944e-38, %v4672
      %v4674 = vsel %vm4671, %v4673, %v4669
      %v4675 = vmul.f32 1.0, %v4674
      %v4676 = vrcp.pop %v3120
      %v4677 = vmul.f32 %v3120, %v4676
      %v4678 = vsub.f32 1.0, %v4677
      %v4679 = vmul.f32 %v4676, %v4678
      %v4680 = vadd.f32 %v4676, %v4679
      %vm4681 = vweird.f32 %v3120
      %vm4682 = vweird.f32 %v4676
      %vm4683 = vmor %vm4681, %vm4682
      %v4684 = vsel %vm4683, %v4676, %v4680
      %v4685 = vand.u32 2147483647, %v3120
      %vm4686 = vcmp.eq.f32.partialorder %v4685, 8.507059e+37
      %v4687 = vand.u32 %v3120, 2147483648
      %v4688 = vor.u32 1.1754944e-38, %v4687
      %v4689 = vsel %vm4686, %v4688, %v4684
      %v4690 = vmul.f32 1.0, %v4689
      %v4691 = vrcp.pop %v3121
      %v4692 = vmul.f32 %v3121, %v4691
      %v4693 = vsub.f32 1.0, %v4692
      %v4694 = vmul.f32 %v4691, %v4693
      %v4695 = vadd.f32 %v4691, %v4694
      %vm4696 = vweird.f32 %v3121
      %vm4697 = vweird.f32 %v4691
      %vm4698 = vmor %vm4696, %vm4697
      %v4699 = vsel %vm4698, %v4691, %v4695
      %v4700 = vand.u32 2147483647, %v3121
      %vm4701 = vcmp.eq.f32.partialorder %v4700, 8.507059e+37
      %v4702 = vand.u32 %v3121, 2147483648
      %v4703 = vor.u32 1.1754944e-38, %v4702
      %v4704 = vsel %vm4701, %v4703, %v4699
      %v4705 = vmul.f32 1.0, %v4704
      %v4706 = vrcp.pop %v3122
      %v4707 = vmul.f32 %v3122, %v4706
      %v4708 = vsub.f32 1.0, %v4707
      %v4709 = vmul.f32 %v4706, %v4708
      %v4710 = vadd.f32 %v4706, %v4709
      %vm4711 = vweird.f32 %v3122
      %vm4712 = vweird.f32 %v4706
      %vm4713 = vmor %vm4711, %vm4712
      %v4714 = vsel %vm4713, %v4706, %v4710
      %v4715 = vand.u32 2147483647, %v3122
      %vm4716 = vcmp.eq.f32.partialorder %v4715, 8.507059e+37
      %v4717 = vand.u32 %v3122, 2147483648
      %v4718 = vor.u32 1.1754944e-38, %v4717
      %v4719 = vsel %vm4716, %v4718, %v4714
      %v4720 = vmul.f32 1.0, %v4719
      %v4721 = vrcp.pop %v3123
      %v4722 = vmul.f32 %v3123, %v4721
      %v4723 = vsub.f32 1.0, %v4722
      %v4724 = vmul.f32 %v4721, %v4723
      %v4725 = vadd.f32 %v4721, %v4724
      %vm4726 = vweird.f32 %v3123
      %vm4727 = vweird.f32 %v4721
      %vm4728 = vmor %vm4726, %vm4727
      %v4729 = vsel %vm4728, %v4721, %v4725
      %v4730 = vand.u32 2147483647, %v3123
      %vm4731 = vcmp.eq.f32.partialorder %v4730, 8.507059e+37
      %v4732 = vand.u32 %v3123, 2147483648
      %v4733 = vor.u32 1.1754944e-38, %v4732
      %v4734 = vsel %vm4731, %v4733, %v4729
      %v4735 = vmul.f32 1.0, %v4734
      %v4736 = vrcp.pop %v3124
      %v4737 = vmul.f32 %v3124, %v4736
      %v4738 = vsub.f32 1.0, %v4737
      %v4739 = vmul.f32 %v4736, %v4738
      %v4740 = vadd.f32 %v4736, %v4739
      %vm4741 = vweird.f32 %v3124
      %vm4742 = vweird.f32 %v4736
      %vm4743 = vmor %vm4741, %vm4742
      %v4744 = vsel %vm4743, %v4736, %v4740
      %v4745 = vand.u32 2147483647, %v3124
      %vm4746 = vcmp.eq.f32.partialorder %v4745, 8.507059e+37
      %v4747 = vand.u32 %v3124, 2147483648
      %v4748 = vor.u32 1.1754944e-38, %v4747
      %v4749 = vsel %vm4746, %v4748, %v4744
      %v4750 = vmul.f32 1.0, %v4749
      %v4751 = vrcp.pop %v3125
      %v4752 = vmul.f32 %v3125, %v4751
      %v4753 = vsub.f32 1.0, %v4752
      %v4754 = vmul.f32 %v4751, %v4753
      %v4755 = vadd.f32 %v4751, %v4754
      %vm4756 = vweird.f32 %v3125
      %vm4757 = vweird.f32 %v4751
      %vm4758 = vmor %vm4756, %vm4757
      %v4759 = vsel %vm4758, %v4751, %v4755
      %v4760 = vand.u32 2147483647, %v3125
      %vm4761 = vcmp.eq.f32.partialorder %v4760, 8.507059e+37
      %v4762 = vand.u32 %v3125, 2147483648
      %v4763 = vor.u32 1.1754944e-38, %v4762
      %v4764 = vsel %vm4761, %v4763, %v4759
      %v4765 = vmul.f32 1.0, %v4764
      %v4766 = vrcp.pop %v3126
      %v4767 = vmul.f32 %v3126, %v4766
      %v4768 = vsub.f32 1.0, %v4767
      %v4769 = vmul.f32 %v4766, %v4768
      %v4770 = vadd.f32 %v4766, %v4769
      %vm4771 = vweird.f32 %v3126
      %vm4772 = vweird.f32 %v4766
      %vm4773 = vmor %vm4771, %vm4772
      %v4774 = vsel %vm4773, %v4766, %v4770
      %v4775 = vand.u32 2147483647, %v3126
      %vm4776 = vcmp.eq.f32.partialorder %v4775, 8.507059e+37
      %v4777 = vand.u32 %v3126, 2147483648
      %v4778 = vor.u32 1.1754944e-38, %v4777
      %v4779 = vsel %vm4776, %v4778, %v4774
      %v4780 = vmul.f32 1.0, %v4779
      %v4781 = vrcp.pop %v3127
      %v4782 = vmul.f32 %v3127, %v4781
      %v4783 = vsub.f32 1.0, %v4782
      %v4784 = vmul.f32 %v4781, %v4783
      %v4785 = vadd.f32 %v4781, %v4784
      %vm4786 = vweird.f32 %v3127
      %vm4787 = vweird.f32 %v4781
      %vm4788 = vmor %vm4786, %vm4787
      %v4789 = vsel %vm4788, %v4781, %v4785
      %v4790 = vand.u32 2147483647, %v3127
      %vm4791 = vcmp.eq.f32.partialorder %v4790, 8.507059e+37
      %v4792 = vand.u32 %v3127, 2147483648
      %v4793 = vor.u32 1.1754944e-38, %v4792
      %v4794 = vsel %vm4791, %v4793, %v4789
      %v4795 = vmul.f32 1.0, %v4794
      %v4796 = vrcp.pop %v3128
      %v4797 = vmul.f32 %v3128, %v4796
      %v4798 = vsub.f32 1.0, %v4797
      %v4799 = vmul.f32 %v4796, %v4798
      %v4800 = vadd.f32 %v4796, %v4799
      %vm4801 = vweird.f32 %v3128
      %vm4802 = vweird.f32 %v4796
      %vm4803 = vmor %vm4801, %vm4802
      %v4804 = vsel %vm4803, %v4796, %v4800
      %v4805 = vand.u32 2147483647, %v3128
      %vm4806 = vcmp.eq.f32.partialorder %v4805, 8.507059e+37
      %v4807 = vand.u32 %v3128, 2147483648
      %v4808 = vor.u32 1.1754944e-38, %v4807
      %v4809 = vsel %vm4806, %v4808, %v4804
      %v4810 = vmul.f32 1.0, %v4809
      %v4811 = vrcp.pop %v3129
      %v4812 = vmul.f32 %v3129, %v4811
      %v4813 = vsub.f32 1.0, %v4812
      %v4814 = vmul.f32 %v4811, %v4813
      %v4815 = vadd.f32 %v4811, %v4814
      %vm4816 = vweird.f32 %v3129
      %vm4817 = vweird.f32 %v4811
      %vm4818 = vmor %vm4816, %vm4817
      %v4819 = vsel %vm4818, %v4811, %v4815
      %v4820 = vand.u32 2147483647, %v3129
      %vm4821 = vcmp.eq.f32.partialorder %v4820, 8.507059e+37
      %v4822 = vand.u32 %v3129, 2147483648
      %v4823 = vor.u32 1.1754944e-38, %v4822
      %v4824 = vsel %vm4821, %v4823, %v4819
      %v4825 = vmul.f32 1.0, %v4824
      %v4826 = vrcp.pop %v3130
      %v4827 = vmul.f32 %v3130, %v4826
      %v4828 = vsub.f32 1.0, %v4827
      %v4829 = vmul.f32 %v4826, %v4828
      %v4830 = vadd.f32 %v4826, %v4829
      %vm4831 = vweird.f32 %v3130
      %vm4832 = vweird.f32 %v4826
      %vm4833 = vmor %vm4831, %vm4832
      %v4834 = vsel %vm4833, %v4826, %v4830
      %v4835 = vand.u32 2147483647, %v3130
      %vm4836 = vcmp.eq.f32.partialorder %v4835, 8.507059e+37
      %v4837 = vand.u32 %v3130, 2147483648
      %v4838 = vor.u32 1.1754944e-38, %v4837
      %v4839 = vsel %vm4836, %v4838, %v4834
      %v4840 = vmul.f32 1.0, %v4839
      %v4841 = vrcp.pop %v3131
      %v4842 = vmul.f32 %v3131, %v4841
      %v4843 = vsub.f32 1.0, %v4842
      %v4844 = vmul.f32 %v4841, %v4843
      %v4845 = vadd.f32 %v4841, %v4844
      %vm4846 = vweird.f32 %v3131
      %vm4847 = vweird.f32 %v4841
      %vm4848 = vmor %vm4846, %vm4847
      %v4849 = vsel %vm4848, %v4841, %v4845
      %v4850 = vand.u32 2147483647, %v3131
      %vm4851 = vcmp.eq.f32.partialorder %v4850, 8.507059e+37
      %v4852 = vand.u32 %v3131, 2147483648
      %v4853 = vor.u32 1.1754944e-38, %v4852
      %v4854 = vsel %vm4851, %v4853, %v4849
      %v4855 = vmul.f32 1.0, %v4854
      %v4856 = vrcp.pop %v3132
      %v4857 = vmul.f32 %v3132, %v4856
      %v4858 = vsub.f32 1.0, %v4857
      %v4859 = vmul.f32 %v4856, %v4858
      %v4860 = vadd.f32 %v4856, %v4859
      %vm4861 = vweird.f32 %v3132
      %vm4862 = vweird.f32 %v4856
      %vm4863 = vmor %vm4861, %vm4862
      %v4864 = vsel %vm4863, %v4856, %v4860
      %v4865 = vand.u32 2147483647, %v3132
      %vm4866 = vcmp.eq.f32.partialorder %v4865, 8.507059e+37
      %v4867 = vand.u32 %v3132, 2147483648
      %v4868 = vor.u32 1.1754944e-38, %v4867
      %v4869 = vsel %vm4866, %v4868, %v4864
      %v4870 = vmul.f32 1.0, %v4869
      %v4871 = vrcp.pop %v3133
      %v4872 = vmul.f32 %v3133, %v4871
      %v4873 = vsub.f32 1.0, %v4872
      %v4874 = vmul.f32 %v4871, %v4873
      %v4875 = vadd.f32 %v4871, %v4874
      %vm4876 = vweird.f32 %v3133
      %vm4877 = vweird.f32 %v4871
      %vm4878 = vmor %vm4876, %vm4877
      %v4879 = vsel %vm4878, %v4871, %v4875
      %v4880 = vand.u32 2147483647, %v3133
      %vm4881 = vcmp.eq.f32.partialorder %v4880, 8.507059e+37
      %v4882 = vand.u32 %v3133, 2147483648
      %v4883 = vor.u32 1.1754944e-38, %v4882
      %v4884 = vsel %vm4881, %v4883, %v4879
      %v4885 = vmul.f32 1.0, %v4884
      %v4886 = vrcp.pop %v3134
      %v4887 = vmul.f32 %v3134, %v4886
      %v4888 = vsub.f32 1.0, %v4887
      %v4889 = vmul.f32 %v4886, %v4888
      %v4890 = vadd.f32 %v4886, %v4889
      %vm4891 = vweird.f32 %v3134
      %vm4892 = vweird.f32 %v4886
      %vm4893 = vmor %vm4891, %vm4892
      %v4894 = vsel %vm4893, %v4886, %v4890
      %v4895 = vand.u32 2147483647, %v3134
      %vm4896 = vcmp.eq.f32.partialorder %v4895, 8.507059e+37
      %v4897 = vand.u32 %v3134, 2147483648
      %v4898 = vor.u32 1.1754944e-38, %v4897
      %v4899 = vsel %vm4896, %v4898, %v4894
      %v4900 = vmul.f32 1.0, %v4899
      %v4901 = vrcp.pop %v3135
      %v4902 = vmul.f32 %v3135, %v4901
      %v4903 = vsub.f32 1.0, %v4902
      %v4904 = vmul.f32 %v4901, %v4903
      %v4905 = vadd.f32 %v4901, %v4904
      %vm4906 = vweird.f32 %v3135
      %vm4907 = vweird.f32 %v4901
      %vm4908 = vmor %vm4906, %vm4907
      %v4909 = vsel %vm4908, %v4901, %v4905
      %v4910 = vand.u32 2147483647, %v3135
      %vm4911 = vcmp.eq.f32.partialorder %v4910, 8.507059e+37
      %v4912 = vand.u32 %v3135, 2147483648
      %v4913 = vor.u32 1.1754944e-38, %v4912
      %v4914 = vsel %vm4911, %v4913, %v4909
      %v4915 = vmul.f32 1.0, %v4914
      %v4916 = vrcp.pop %v3136
      %v4917 = vmul.f32 %v3136, %v4916
      %v4918 = vsub.f32 1.0, %v4917
      %v4919 = vmul.f32 %v4916, %v4918
      %v4920 = vadd.f32 %v4916, %v4919
      %vm4921 = vweird.f32 %v3136
      %vm4922 = vweird.f32 %v4916
      %vm4923 = vmor %vm4921, %vm4922
      %v4924 = vsel %vm4923, %v4916, %v4920
      %v4925 = vand.u32 2147483647, %v3136
      %vm4926 = vcmp.eq.f32.partialorder %v4925, 8.507059e+37
      %v4927 = vand.u32 %v3136, 2147483648
      %v4928 = vor.u32 1.1754944e-38, %v4927
      %v4929 = vsel %vm4926, %v4928, %v4924
      %v4930 = vmul.f32 1.0, %v4929
      %v4931 = vrcp.pop %v3137
      %v4932 = vmul.f32 %v3137, %v4931
      %v4933 = vsub.f32 1.0, %v4932
      %v4934 = vmul.f32 %v4931, %v4933
      %v4935 = vadd.f32 %v4931, %v4934
      %vm4936 = vweird.f32 %v3137
      %vm4937 = vweird.f32 %v4931
      %vm4938 = vmor %vm4936, %vm4937
      %v4939 = vsel %vm4938, %v4931, %v4935
      %v4940 = vand.u32 2147483647, %v3137
      %vm4941 = vcmp.eq.f32.partialorder %v4940, 8.507059e+37
      %v4942 = vand.u32 %v3137, 2147483648
      %v4943 = vor.u32 1.1754944e-38, %v4942
      %v4944 = vsel %vm4941, %v4943, %v4939
      %v4945 = vmul.f32 1.0, %v4944
      %v4946 = vrcp.pop %v3138
      %v4947 = vmul.f32 %v3138, %v4946
      %v4948 = vsub.f32 1.0, %v4947
      %v4949 = vmul.f32 %v4946, %v4948
      %v4950 = vadd.f32 %v4946, %v4949
      %vm4951 = vweird.f32 %v3138
      %vm4952 = vweird.f32 %v4946
      %vm4953 = vmor %vm4951, %vm4952
      %v4954 = vsel %vm4953, %v4946, %v4950
      %v4955 = vand.u32 2147483647, %v3138
      %vm4956 = vcmp.eq.f32.partialorder %v4955, 8.507059e+37
      %v4957 = vand.u32 %v3138, 2147483648
      %v4958 = vor.u32 1.1754944e-38, %v4957
      %v4959 = vsel %vm4956, %v4958, %v4954
      %v4960 = vmul.f32 1.0, %v4959
      %v4961 = vrcp.pop %v3139
      %v4962 = vmul.f32 %v3139, %v4961
      %v4963 = vsub.f32 1.0, %v4962
      %v4964 = vmul.f32 %v4961, %v4963
      %v4965 = vadd.f32 %v4961, %v4964
      %vm4966 = vweird.f32 %v3139
      %vm4967 = vweird.f32 %v4961
      %vm4968 = vmor %vm4966, %vm4967
      %v4969 = vsel %vm4968, %v4961, %v4965
      %v4970 = vand.u32 2147483647, %v3139
      %vm4971 = vcmp.eq.f32.partialorder %v4970, 8.507059e+37
      %v4972 = vand.u32 %v3139, 2147483648
      %v4973 = vor.u32 1.1754944e-38, %v4972
      %v4974 = vsel %vm4971, %v4973, %v4969
      %v4975 = vmul.f32 1.0, %v4974
      %v4976 = vrcp.pop %v3140
      %v4977 = vmul.f32 %v3140, %v4976
      %v4978 = vsub.f32 1.0, %v4977
      %v4979 = vmul.f32 %v4976, %v4978
      %v4980 = vadd.f32 %v4976, %v4979
      %vm4981 = vweird.f32 %v3140
      %vm4982 = vweird.f32 %v4976
      %vm4983 = vmor %vm4981, %vm4982
      %v4984 = vsel %vm4983, %v4976, %v4980
      %v4985 = vand.u32 2147483647, %v3140
      %vm4986 = vcmp.eq.f32.partialorder %v4985, 8.507059e+37
      %v4987 = vand.u32 %v3140, 2147483648
      %v4988 = vor.u32 1.1754944e-38, %v4987
      %v4989 = vsel %vm4986, %v4988, %v4984
      %v4990 = vmul.f32 1.0, %v4989
      %v4991 = vrcp.pop %v3141
      %v4992 = vmul.f32 %v3141, %v4991
      %v4993 = vsub.f32 1.0, %v4992
      %v4994 = vmul.f32 %v4991, %v4993
      %v4995 = vadd.f32 %v4991, %v4994
      %vm4996 = vweird.f32 %v3141
      %vm4997 = vweird.f32 %v4991
      %vm4998 = vmor %vm4996, %vm4997
      %v4999 = vsel %vm4998, %v4991, %v4995
      %v5000 = vand.u32 2147483647, %v3141
      %vm5001 = vcmp.eq.f32.partialorder %v5000, 8.507059e+37
      %v5002 = vand.u32 %v3141, 2147483648
      %v5003 = vor.u32 1.1754944e-38, %v5002
      %v5004 = vsel %vm5001, %v5003, %v4999
      %v5005 = vmul.f32 1.0, %v5004
      %v5006 = vrcp.pop %v3142
      %v5007 = vmul.f32 %v3142, %v5006
      %v5008 = vsub.f32 1.0, %v5007
      %v5009 = vmul.f32 %v5006, %v5008
      %v5010 = vadd.f32 %v5006, %v5009
      %vm5011 = vweird.f32 %v3142
      %vm5012 = vweird.f32 %v5006
      %vm5013 = vmor %vm5011, %vm5012
      %v5014 = vsel %vm5013, %v5006, %v5010
      %v5015 = vand.u32 2147483647, %v3142
      %vm5016 = vcmp.eq.f32.partialorder %v5015, 8.507059e+37
      %v5017 = vand.u32 %v3142, 2147483648
      %v5018 = vor.u32 1.1754944e-38, %v5017
      %v5019 = vsel %vm5016, %v5018, %v5014
      %v5020 = vmul.f32 1.0, %v5019
      %v5021 = vrcp.pop %v3143
      %v5022 = vmul.f32 %v3143, %v5021
      %v5023 = vsub.f32 1.0, %v5022
      %v5024 = vmul.f32 %v5021, %v5023
      %v5025 = vadd.f32 %v5021, %v5024
      %vm5026 = vweird.f32 %v3143
      %vm5027 = vweird.f32 %v5021
      %vm5028 = vmor %vm5026, %vm5027
      %v5029 = vsel %vm5028, %v5021, %v5025
      %v5030 = vand.u32 2147483647, %v3143
      %vm5031 = vcmp.eq.f32.partialorder %v5030, 8.507059e+37
      %v5032 = vand.u32 %v3143, 2147483648
      %v5033 = vor.u32 1.1754944e-38, %v5032
      %v5034 = vsel %vm5031, %v5033, %v5029
      %v5035 = vmul.f32 1.0, %v5034
      %v5036 = vrcp.pop %v3144
      %v5037 = vmul.f32 %v3144, %v5036
      %v5038 = vsub.f32 1.0, %v5037
      %v5039 = vmul.f32 %v5036, %v5038
      %v5040 = vadd.f32 %v5036, %v5039
      %vm5041 = vweird.f32 %v3144
      %vm5042 = vweird.f32 %v5036
      %vm5043 = vmor %vm5041, %vm5042
      %v5044 = vsel %vm5043, %v5036, %v5040
      %v5045 = vand.u32 2147483647, %v3144
      %vm5046 = vcmp.eq.f32.partialorder %v5045, 8.507059e+37
      %v5047 = vand.u32 %v3144, 2147483648
      %v5048 = vor.u32 1.1754944e-38, %v5047
      %v5049 = vsel %vm5046, %v5048, %v5044
      %v5050 = vmul.f32 1.0, %v5049
      %v5051 = vrcp.pop %v3145
      %v5052 = vmul.f32 %v3145, %v5051
      %v5053 = vsub.f32 1.0, %v5052
      %v5054 = vmul.f32 %v5051, %v5053
      %v5055 = vadd.f32 %v5051, %v5054
      %vm5056 = vweird.f32 %v3145
      %vm5057 = vweird.f32 %v5051
      %vm5058 = vmor %vm5056, %vm5057
      %v5059 = vsel %vm5058, %v5051, %v5055
      %v5060 = vand.u32 2147483647, %v3145
      %vm5061 = vcmp.eq.f32.partialorder %v5060, 8.507059e+37
      %v5062 = vand.u32 %v3145, 2147483648
      %v5063 = vor.u32 1.1754944e-38, %v5062
      %v5064 = vsel %vm5061, %v5063, %v5059
      %v5065 = vmul.f32 1.0, %v5064
      %v5194 = vperm.slane %v3160, %v2339
      %v5195 = vperm.slane %v3175, %v2341
      %v5196 = vsel %vm2343, %v5195, %v5194
      %v5197 = vperm.slane %v3190, %v2345
      %v5198 = vsel %vm2347, %v5197, %v5196
      %v5199 = vperm.slane %v3205, %v2349
      %v5200 = vsel %vm2351, %v5199, %v5198
      %v5201 = vperm.slane %v3220, %v2353
      %v5202 = vsel %vm2355, %v5201, %v5200
      %v5203 = vperm.slane %v3235, %v2357
      %v5204 = vsel %vm2359, %v5203, %v5202
      %v5205 = vperm.slane %v3250, %v2361
      %v5206 = vsel %vm2363, %v5205, %v5204
      %v5207 = vperm.slane %v3265, %v2365
      %v5208 = vsel %vm2367, %v5207, %v5206
      %v5209 = vperm.slane %v3280, %v2369
      %v5210 = vsel %vm2371, %v5209, %v5208
      %v5211 = vperm.slane %v3295, %v2373
      %v5212 = vsel %vm2375, %v5211, %v5210
      %v5213 = vperm.slane %v3310, %v2377
      %v5214 = vsel %vm2379, %v5213, %v5212
      %v5215 = vperm.slane %v3325, %v2381
      %v5216 = vsel %vm2383, %v5215, %v5214
      %v5217 = vperm.slane %v3340, %v2385
      %v5218 = vsel %vm2387, %v5217, %v5216
      %v5219 = vperm.slane %v3355, %v2389
      %v5220 = vsel %vm2391, %v5219, %v5218
      %v5221 = vperm.slane %v3370, %v2393
      %v5222 = vsel %vm2395, %v5221, %v5220
      %v5223 = vperm.slane %v3385, %v2397
      %v5224 = vsel %vm2399, %v5223, %v5222
      %v5225 = vperm.slane %v3400, %v2339
      %v5226 = vperm.slane %v3415, %v2341
      %v5227 = vsel %vm2343, %v5226, %v5225
      %v5228 = vperm.slane %v3430, %v2345
      %v5229 = vsel %vm2347, %v5228, %v5227
      %v5230 = vperm.slane %v3445, %v2349
      %v5231 = vsel %vm2351, %v5230, %v5229
      %v5232 = vperm.slane %v3460, %v2353
      %v5233 = vsel %vm2355, %v5232, %v5231
      %v5234 = vperm.slane %v3475, %v2357
      %v5235 = vsel %vm2359, %v5234, %v5233
      %v5236 = vperm.slane %v3490, %v2361
      %v5237 = vsel %vm2363, %v5236, %v5235
      %v5238 = vperm.slane %v3505, %v2365
      %v5239 = vsel %vm2367, %v5238, %v5237
      %v5240 = vperm.slane %v3520, %v2369
      %v5241 = vsel %vm2371, %v5240, %v5239
      %v5242 = vperm.slane %v3535, %v2373
      %v5243 = vsel %vm2375, %v5242, %v5241
      %v5244 = vperm.slane %v3550, %v2377
      %v5245 = vsel %vm2379, %v5244, %v5243
      %v5246 = vperm.slane %v3565, %v2381
      %v5247 = vsel %vm2383, %v5246, %v5245
      %v5248 = vperm.slane %v3580, %v2385
      %v5249 = vsel %vm2387, %v5248, %v5247
      %v5250 = vperm.slane %v3595, %v2389
      %v5251 = vsel %vm2391, %v5250, %v5249
      %v5252 = vperm.slane %v3610, %v2393
      %v5253 = vsel %vm2395, %v5252, %v5251
      %v5254 = vperm.slane %v3625, %v2397
      %v5255 = vsel %vm2399, %v5254, %v5253
      %v5256 = vperm.slane %v3640, %v2339
      %v5257 = vperm.slane %v3655, %v2341
      %v5258 = vsel %vm2343, %v5257, %v5256
      %v5259 = vperm.slane %v3670, %v2345
      %v5260 = vsel %vm2347, %v5259, %v5258
      %v5261 = vperm.slane %v3685, %v2349
      %v5262 = vsel %vm2351, %v5261, %v5260
      %v5263 = vperm.slane %v3700, %v2353
      %v5264 = vsel %vm2355, %v5263, %v5262
      %v5265 = vperm.slane %v3715, %v2357
      %v5266 = vsel %vm2359, %v5265, %v5264
      %v5267 = vperm.slane %v3730, %v2361
      %v5268 = vsel %vm2363, %v5267, %v5266
      %v5269 = vperm.slane %v3745, %v2365
      %v5270 = vsel %vm2367, %v5269, %v5268
      %v5271 = vperm.slane %v3760, %v2369
      %v5272 = vsel %vm2371, %v5271, %v5270
      %v5273 = vperm.slane %v3775, %v2373
      %v5274 = vsel %vm2375, %v5273, %v5272
      %v5275 = vperm.slane %v3790, %v2377
      %v5276 = vsel %vm2379, %v5275, %v5274
      %v5277 = vperm.slane %v3805, %v2381
      %v5278 = vsel %vm2383, %v5277, %v5276
      %v5279 = vperm.slane %v3820, %v2385
      %v5280 = vsel %vm2387, %v5279, %v5278
      %v5281 = vperm.slane %v3835, %v2389
      %v5282 = vsel %vm2391, %v5281, %v5280
      %v5283 = vperm.slane %v3850, %v2393
      %v5284 = vsel %vm2395, %v5283, %v5282
      %v5285 = vperm.slane %v3865, %v2397
      %v5286 = vsel %vm2399, %v5285, %v5284
      %v5287 = vperm.slane %v3880, %v2339
      %v5288 = vperm.slane %v3895, %v2341
      %v5289 = vsel %vm2343, %v5288, %v5287
      %v5290 = vperm.slane %v3910, %v2345
      %v5291 = vsel %vm2347, %v5290, %v5289
      %v5292 = vperm.slane %v3925, %v2349
      %v5293 = vsel %vm2351, %v5292, %v5291
      %v5294 = vperm.slane %v3940, %v2353
      %v5295 = vsel %vm2355, %v5294, %v5293
      %v5296 = vperm.slane %v3955, %v2357
      %v5297 = vsel %vm2359, %v5296, %v5295
      %v5298 = vperm.slane %v3970, %v2361
      %v5299 = vsel %vm2363, %v5298, %v5297
      %v5300 = vperm.slane %v3985, %v2365
      %v5301 = vsel %vm2367, %v5300, %v5299
      %v5302 = vperm.slane %v4000, %v2369
      %v5303 = vsel %vm2371, %v5302, %v5301
      %v5304 = vperm.slane %v4015, %v2373
      %v5305 = vsel %vm2375, %v5304, %v5303
      %v5306 = vperm.slane %v4030, %v2377
      %v5307 = vsel %vm2379, %v5306, %v5305
      %v5308 = vperm.slane %v4045, %v2381
      %v5309 = vsel %vm2383, %v5308, %v5307
      %v5310 = vperm.slane %v4060, %v2385
      %v5311 = vsel %vm2387, %v5310, %v5309
      %v5312 = vperm.slane %v4075, %v2389
      %v5313 = vsel %vm2391, %v5312, %v5311
      %v5314 = vperm.slane %v4090, %v2393
      %v5315 = vsel %vm2395, %v5314, %v5313
      %v5316 = vperm.slane %v4105, %v2397
      %v5317 = vsel %vm2399, %v5316, %v5315
      %v5318 = vperm.slane %v4120, %v2339
      %v5319 = vperm.slane %v4135, %v2341
      %v5320 = vsel %vm2343, %v5319, %v5318
      %v5321 = vperm.slane %v4150, %v2345
      %v5322 = vsel %vm2347, %v5321, %v5320
      %v5323 = vperm.slane %v4165, %v2349
      %v5324 = vsel %vm2351, %v5323, %v5322
      %v5325 = vperm.slane %v4180, %v2353
      %v5326 = vsel %vm2355, %v5325, %v5324
      %v5327 = vperm.slane %v4195, %v2357
      %v5328 = vsel %vm2359, %v5327, %v5326
      %v5329 = vperm.slane %v4210, %v2361
      %v5330 = vsel %vm2363, %v5329, %v5328
      %v5331 = vperm.slane %v4225, %v2365
      %v5332 = vsel %vm2367, %v5331, %v5330
      %v5333 = vperm.slane %v4240, %v2369
      %v5334 = vsel %vm2371, %v5333, %v5332
      %v5335 = vperm.slane %v4255, %v2373
      %v5336 = vsel %vm2375, %v5335, %v5334
      %v5337 = vperm.slane %v4270, %v2377
      %v5338 = vsel %vm2379, %v5337, %v5336
      %v5339 = vperm.slane %v4285, %v2381
      %v5340 = vsel %vm2383, %v5339, %v5338
      %v5341 = vperm.slane %v4300, %v2385
      %v5342 = vsel %vm2387, %v5341, %v5340
      %v5343 = vperm.slane %v4315, %v2389
      %v5344 = vsel %vm2391, %v5343, %v5342
      %v5345 = vperm.slane %v4330, %v2393
      %v5346 = vsel %vm2395, %v5345, %v5344
      %v5347 = vperm.slane %v4345, %v2397
      %v5348 = vsel %vm2399, %v5347, %v5346
      %v5349 = vperm.slane %v4360, %v2339
      %v5350 = vperm.slane %v4375, %v2341
      %v5351 = vsel %vm2343, %v5350, %v5349
      %v5352 = vperm.slane %v4390, %v2345
      %v5353 = vsel %vm2347, %v5352, %v5351
      %v5354 = vperm.slane %v4405, %v2349
      %v5355 = vsel %vm2351, %v5354, %v5353
      %v5356 = vperm.slane %v4420, %v2353
      %v5357 = vsel %vm2355, %v5356, %v5355
      %v5358 = vperm.slane %v4435, %v2357
      %v5359 = vsel %vm2359, %v5358, %v5357
      %v5360 = vperm.slane %v4450, %v2361
      %v5361 = vsel %vm2363, %v5360, %v5359
      %v5362 = vperm.slane %v4465, %v2365
      %v5363 = vsel %vm2367, %v5362, %v5361
      %v5364 = vperm.slane %v4480, %v2369
      %v5365 = vsel %vm2371, %v5364, %v5363
      %v5366 = vperm.slane %v4495, %v2373
      %v5367 = vsel %vm2375, %v5366, %v5365
      %v5368 = vperm.slane %v4510, %v2377
      %v5369 = vsel %vm2379, %v5368, %v5367
      %v5370 = vperm.slane %v4525, %v2381
      %v5371 = vsel %vm2383, %v5370, %v5369
      %v5372 = vperm.slane %v4540, %v2385
      %v5373 = vsel %vm2387, %v5372, %v5371
      %v5374 = vperm.slane %v4555, %v2389
      %v5375 = vsel %vm2391, %v5374, %v5373
      %v5376 = vperm.slane %v4570, %v2393
      %v5377 = vsel %vm2395, %v5376, %v5375
      %v5378 = vperm.slane %v4585, %v2397
      %v5379 = vsel %vm2399, %v5378, %v5377
      %v5380 = vperm.slane %v4600, %v2339
      %v5381 = vperm.slane %v4615, %v2341
      %v5382 = vsel %vm2343, %v5381, %v5380
      %v5383 = vperm.slane %v4630, %v2345
      %v5384 = vsel %vm2347, %v5383, %v5382
      %v5385 = vperm.slane %v4645, %v2349
      %v5386 = vsel %vm2351, %v5385, %v5384
      %v5387 = vperm.slane %v4660, %v2353
      %v5388 = vsel %vm2355, %v5387, %v5386
      %v5389 = vperm.slane %v4675, %v2357
      %v5390 = vsel %vm2359, %v5389, %v5388
      %v5391 = vperm.slane %v4690, %v2361
      %v5392 = vsel %vm2363, %v5391, %v5390
      %v5393 = vperm.slane %v4705, %v2365
      %v5394 = vsel %vm2367, %v5393, %v5392
      %v5395 = vperm.slane %v4720, %v2369
      %v5396 = vsel %vm2371, %v5395, %v5394
      %v5397 = vperm.slane %v4735, %v2373
      %v5398 = vsel %vm2375, %v5397, %v5396
      %v5399 = vperm.slane %v4750, %v2377
      %v5400 = vsel %vm2379, %v5399, %v5398
      %v5401 = vperm.slane %v4765, %v2381
      %v5402 = vsel %vm2383, %v5401, %v5400
      %v5403 = vperm.slane %v4780, %v2385
      %v5404 = vsel %vm2387, %v5403, %v5402
      %v5405 = vperm.slane %v4795, %v2389
      %v5406 = vsel %vm2391, %v5405, %v5404
      %v5407 = vperm.slane %v4810, %v2393
      %v5408 = vsel %vm2395, %v5407, %v5406
      %v5409 = vperm.slane %v4825, %v2397
      %v5410 = vsel %vm2399, %v5409, %v5408
      %v5411 = vperm.slane %v4840, %v2339
      %v5412 = vperm.slane %v4855, %v2341
      %v5413 = vsel %vm2343, %v5412, %v5411
      %v5414 = vperm.slane %v4870, %v2345
      %v5415 = vsel %vm2347, %v5414, %v5413
      %v5416 = vperm.slane %v4885, %v2349
      %v5417 = vsel %vm2351, %v5416, %v5415
      %v5418 = vperm.slane %v4900, %v2353
      %v5419 = vsel %vm2355, %v5418, %v5417
      %v5420 = vperm.slane %v4915, %v2357
      %v5421 = vsel %vm2359, %v5420, %v5419
      %v5422 = vperm.slane %v4930, %v2361
      %v5423 = vsel %vm2363, %v5422, %v5421
      %v5424 = vperm.slane %v4945, %v2365
      %v5425 = vsel %vm2367, %v5424, %v5423
      %v5426 = vperm.slane %v4960, %v2369
      %v5427 = vsel %vm2371, %v5426, %v5425
      %v5428 = vperm.slane %v4975, %v2373
      %v5429 = vsel %vm2375, %v5428, %v5427
      %v5430 = vperm.slane %v4990, %v2377
      %v5431 = vsel %vm2379, %v5430, %v5429
      %v5432 = vperm.slane %v5005, %v2381
      %v5433 = vsel %vm2383, %v5432, %v5431
      %v5434 = vperm.slane %v5020, %v2385
      %v5435 = vsel %vm2387, %v5434, %v5433
      %v5436 = vperm.slane %v5035, %v2389
      %v5437 = vsel %vm2391, %v5436, %v5435
      %v5438 = vperm.slane %v5050, %v2393
      %v5439 = vsel %vm2395, %v5438, %v5437
      %v5440 = vperm.slane %v5065, %v2397
      %v5441 = vsel %vm2399, %v5440, %v5439
      %v5442 = vsel %vm2618, %v5255, %v5224
      %v5443 = vsel %vm2620, %v5286, %v5442
      %v5444 = vsel %vm2622, %v5317, %v5443
      %v5445 = vsel %vm2624, %v5348, %v5444
      %v5446 = vsel %vm2626, %v5379, %v5445
      %v5447 = vsel %vm2628, %v5410, %v5446
      %v5448 = vsel %vm2630, %v5441, %v5447
      %5450 = vst [vmem:[%s264] sm:$0xff] %v5448
      %p5451 = scmp.lt.s32.totalorder %s20, 1
      %s5452 = scalar_select %p5451, %s20, 1
      %s5453 = smul.addr %s5452, 8
      %s5454 = scalar_lea.vmem %s5, %s5453
      %p5455 = scmp.lt.s32.totalorder %s20, 1
      %s5456 = scalar_select %p5455, %s20, 1
      %s5457 = smul.addr %s5456, 8
      %s5458 = scalar_lea.vmem %s6, %s5457
      // Predicated region
      $region41: #{motnet_forward.2} parent=39 // pred_check
        %p5459 = pneg %p148
      $region42: #{motnet_forward.2} parent=39 // pred_check_branch
        %5461 = sbr.rel (%p5459) target = $region44
      $region43: #{motnet_forward.2} parent=39 // pred_region
        _
      $region44: #{motnet_forward.2} parent=39 // pred_fallthru
        _
      // Predicated region
      $region45: #{motnet_forward.2} parent=39 // pred_check
        %p5462 = pneg %p174
      $region46: #{motnet_forward.2} parent=39 // pred_check_branch
        %5464 = sbr.rel (%p5462) target = $region48
      $region47: #{motnet_forward.2} parent=39 // pred_region
        _
      $region48: #{motnet_forward.2} parent=39 // pred_fallthru
        _
    $region40: #{motnet_forward.2} parent=5 // pred_fallthru
      _
    %p5465 = scmp.le.s32.totalorder 2, %s15
    // Predicated region
    $region49: #{motnet_forward.2} parent=5 // pred_check
      %p5466 = pneg %p5465
    $region50: #{motnet_forward.2} parent=5 // pred_check_branch
      %5468 = sbr.rel (%p5466) target = $region52
    $region51: #{motnet_forward.2} parent=5 // pred_region
      %s5469 = ssub.s32 %s15, 2
      // Predicated region
      $region53: #{motnet_forward.2} parent=51 // pred_check
        %p5470 = pneg %p154
      $region54: #{motnet_forward.2} parent=51 // pred_check_branch
        %5472 = sbr.rel (%p5470) target = $region56
      $region55: #{motnet_forward.2} parent=51 // pred_region
        %p5473 = scmp.lt.s32.totalorder %s21, 1
        %s5474 = scalar_select %p5473, %s21, 1
        %s5475 = smul.addr %s5474, 8
        %s5476 = scalar_lea.vmem %s5, %s5475
      $region56: #{motnet_forward.2} parent=51 // pred_fallthru
        _
      // Predicated region
      $region57: #{motnet_forward.2} parent=51 // pred_check
        %p5477 = pneg %p180
      $region58: #{motnet_forward.2} parent=51 // pred_check_branch
        %5479 = sbr.rel (%p5477) target = $region60
      $region59: #{motnet_forward.2} parent=51 // pred_region
        %p5480 = scmp.lt.s32.totalorder %s21, 1
        %s5481 = scalar_select %p5480, %s21, 1
        %s5482 = smul.addr %s5481, 8
        %s5483 = scalar_lea.vmem %s6, %s5482
      $region60: #{motnet_forward.2} parent=51 // pred_fallthru
        _
    $region52: #{motnet_forward.2} parent=5 // pred_fallthru
      _
  $region6: #{motnet_forward.2} parent=0 // loop_footer
    %s19 = sadd.s32 1, %s15
  $region7: #{motnet_forward.2} parent=0 // loop_footer_branch
    %14 = sbr.rel target = $region3
  $region8: #{motnet_forward.2} parent=0 // loop_exit
    _

</llo_original>
